<compile_context>
chip_gen: v7x
topology: tpu7x:2x2x1
jax: 0.10.0
libtpu: 0.0.40
codegen_flags: <defaults>
</compile_context>

<pallas_src>
import jax
import jax.numpy as jnp
from jax.experimental import pallas as pl
from jax.experimental.pallas import tpu as pltpu


def _round_up(a, b):
    return (a + b - 1) // b * b


def _make_patch_kernel(B, C, Hp, Wp, p, Dp):
    L, D = Hp * Wp, C * p * p

    # Static reflow plan: breakpoints of the flat stream v at multiples of L
    # (rows of m) and of D (rows of std).  Between consecutive breakpoints the
    # data is lane-contiguous in exactly one row of each matrix, so each
    # segment is a single wide row-to-row copy.
    breaks = sorted(set(range(0, L * D + 1, L)) | set(range(0, L * D + 1, D)))
    segs = [(f0 // D, f0 % D, f0 // L, f0 % L, f1 - f0)
            for f0, f1 in zip(breaks[:-1], breaks[1:])]

    rows_per_img = C * Hp * p

    def kernel(x_ref, o_ref, std_ref, m_ref):
        # x_ref:   (B*C*Hp*p, Wp, p)  input block (row = ((b*C+c)*Hp+hp)*p+ph)
        # o_ref:   (B, L, Dp)         output block (lane-padded)
        # std_ref: (L, D)             scratch: standard patchify std[l, d]
        # m_ref:   (Dp, L)            scratch: reflow m[d, l] = v[d*L + l]

        # Deterministic zeros in the output pad columns (pad rows of m); the
        # wrapper slices the pad away.  Written once, reused for every b.
        if Dp > D:
            m_ref[D:Dp, :] = jnp.zeros((Dp - D, L), dtype=m_ref.dtype)

        for b in range(B):  # small static images-per-grid-step loop
            base = b * rows_per_img
            # ---- Stage 1: x -> std (contiguous (Wp, p) brick copies) -------
            for c in range(C):
                for hp in range(Hp):
                    r0 = hp * Wp
                    for ph in range(p):
                        col0 = (c * p + ph) * p
                        brick = x_ref[base + (c * Hp + hp) * p + ph]   # (Wp, p)
                        std_ref[r0:r0 + Wp, col0:col0 + p] = brick
            # ---- Stage 2: reflow std (L, D) -> m (D, L) --------------------
            # m[d, l] = std.flat[d*L + l]  (lane-contiguous row segments)
            for sr, sc, dr, dc, ln in segs:
                m_ref[dr:dr + 1, dc:dc + ln] = std_ref[sr:sr + 1, sc:sc + ln]
            # ---- Stage 3: single 2-D transpose -> lane-dense output --------
            o_ref[b] = m_ref[...].T                                    # (L, Dp)

    return kernel


def patch_embedding(x, patch_size):
    """Pallas TPU implementation of PatchEmbedding.forward (NCHW input)."""
    N, C, H, W = x.shape
    p = patch_size
    assert H % p == 0 and W % p == 0, (
        "[ERROR] Image's Height or Width is not divisible by the patch size")
    Hp, Wp = H // p, W // p
    L, D = Hp * Wp, C * p * p

    # Lane-dense output: pad last (lane) dim to a multiple of 128 if needed
    # (sliced off below -- wrapper-side layout plumbing only).
    Dp = D if D % 128 == 0 else _round_up(D, 128)

    itemsize = jnp.dtype(x.dtype).itemsize
    rows_per_img = C * Hp * p

    # VMEM budget including (8,128) tile padding of the trailing two dims.
    def vmem_need(b):
        in_blk = b * rows_per_img * _round_up(Wp, 8) * _round_up(p, 128) * itemsize
        out_blk = b * _round_up(L, 8) * _round_up(Dp, 128) * itemsize
        std = _round_up(L, 8) * _round_up(D, 128) * itemsize
        m = _round_up(Dp, 8) * _round_up(L, 128) * itemsize
        return 2 * in_blk + 2 * out_blk + std + m     # in/out double-buffered

    # Batch several small images per grid step (amortizes per-step overhead);
    # large images stay one per step to bound VMEM (v7x has 64 MiB physical).
    B = 1
    for cand in (8, 4, 2):
        if N % cand == 0 and vmem_need(cand) <= 40 * 1024 * 1024:
            B = cand
            break
    grid = (N // B,)

    vmem_limit = int(min(64 * 1024 * 1024,
                         max(32 * 1024 * 1024, int(vmem_need(B) * 1.25))))

    # Free (metadata-only) reshape of the contiguous NCHW input: row index is
    # ((n*C + c)*Hp + hp)*p + ph, so each brick is a natural (Wp, p) slice.
    x3 = x.reshape(N * rows_per_img, Wp, p)

    kernel = _make_patch_kernel(B, C, Hp, Wp, p, Dp)

    # TODO(synk): if a D -> embed_dim projection follows this module, fuse the
    # matmul into this kernel so the MXU hides the pure-relayout work.
    out_padded = pl.pallas_call(
        kernel,
        out_shape=jax.ShapeDtypeStruct((N, L, Dp), x.dtype),
        grid_spec=pltpu.PrefetchScalarGridSpec(
            num_scalar_prefetch=0,
            grid=grid,
            in_specs=[pl.BlockSpec((B * rows_per_img, Wp, p),
                                   lambda n: (n, 0, 0))],
            out_specs=pl.BlockSpec((B, L, Dp), lambda n: (n, 0, 0)),
            scratch_shapes=[
                pltpu.VMEM((L, D), x.dtype),    # std (standard patchify)
                pltpu.VMEM((Dp, L), x.dtype),   # m   (reflowed, pre-transpose)
            ],
        ),
        compiler_params=pltpu.CompilerParams(
            dimension_semantics=("parallel",),
            vmem_limit_bytes=vmem_limit),
    )(x3)

    return out_padded if Dp == D else out_padded[..., :D]


if __name__ == "__main__":
    N, C, H, W, p = 2, 4, 16, 16, 4
    key = jax.random.PRNGKey(0)
    x = jax.random.normal(key, (N, C, H, W), dtype=jnp.float32)

    out = patch_embedding(x, p)
    out = jax.block_until_ready(out)

    # Pure-JAX reference reproducing the torch op chain exactly.
    Hp, Wp = H // p, W // p
    ref = x.reshape(N, C, Hp, p, Wp, p).transpose(0, 2, 4, 1, 3, 5)
    ref = ref.reshape(N, C * p * p, Hp * Wp).transpose(0, 2, 1)

    assert out.shape == (N, Hp * Wp, C * p * p), out.shape
    assert out.dtype == x.dtype
    assert jnp.array_equal(out, ref), "Pallas output mismatch vs reference"
    print("KERNEL_OK")
</pallas_src>

<mosaic_0001>
module attributes {stable_mosaic.version = 11 : i64} {
  func.func @kernel(%arg0: i32, %arg1: memref<128x4x4xf32, #tpu.memory_space<vmem>>, %arg2: memref<2x16x128xf32, #tpu.memory_space<vmem>>, %arg3: memref<16x64xf32, #tpu.memory_space<vmem>>, %arg4: memref<128x16xf32, #tpu.memory_space<vmem>>) attributes {dimension_semantics = [#tpu.dimension_semantics<parallel>], iteration_bounds = array<i64: 1>, scalar_prefetch = 0 : i64, scratch_operands = 2 : i64, tpu.core_type = #tpu.core_type<tc>, window_params = [{transform_indices = @transform_0, window_bounds = array<i64: 128, 4, 4>}, {transform_indices = @transform_1, window_bounds = array<i64: 2, 16, 128>}]} {
    %cst = arith.constant 0.000000e+00 : f32
    %0 = vector.broadcast %cst : f32 to vector<64x16xf32>
    %c64 = arith.constant 64 : index
    %c0 = arith.constant 0 : index
    %1 = vector.load %arg4[%c64, %c0] : memref<128x16xf32, #tpu.memory_space<vmem>>, vector<64x16xf32>
    tpu.vector_store %arg4[%c64, %c0], %0 {strides = array<i32>} : memref<128x16xf32, #tpu.memory_space<vmem>>, vector<64x16xf32>,
    %c0_0 = arith.constant 0 : index
    %c0_1 = arith.constant 0 : index
    %c0_2 = arith.constant 0 : index
    %2 = vector.load %arg1[%c0_0, %c0_1, %c0_2] : memref<128x4x4xf32, #tpu.memory_space<vmem>>, vector<1x4x4xf32>
    %3 = vector.shape_cast %2 : vector<1x4x4xf32> to vector<4x4xf32>
    %c0_3 = arith.constant 0 : index
    %c0_4 = arith.constant 0 : index
    %4 = vector.load %arg3[%c0_3, %c0_4] : memref<16x64xf32, #tpu.memory_space<vmem>>, vector<4x4xf32>
    tpu.vector_store %arg3[%c0_3, %c0_4], %3 {strides = array<i32>} : memref<16x64xf32, #tpu.memory_space<vmem>>, vector<4x4xf32>,
    %c1 = arith.constant 1 : index
    %c0_5 = arith.constant 0 : index
    %c0_6 = arith.constant 0 : index
    %5 = vector.load %arg1[%c1, %c0_5, %c0_6] : memref<128x4x4xf32, #tpu.memory_space<vmem>>, vector<1x4x4xf32>
    %6 = vector.shape_cast %5 : vector<1x4x4xf32> to vector<4x4xf32>
    %c0_7 = arith.constant 0 : index
    %c4 = arith.constant 4 : index
    %7 = vector.load %arg3[%c0_7, %c4] : memref<16x64xf32, #tpu.memory_space<vmem>>, vector<4x4xf32>
    tpu.vector_store %arg3[%c0_7, %c4], %6 {strides = array<i32>} : memref<16x64xf32, #tpu.memory_space<vmem>>, vector<4x4xf32>,
    %c2 = arith.constant 2 : index
    %c0_8 = arith.constant 0 : index
    %c0_9 = arith.constant 0 : index
    %8 = vector.load %arg1[%c2, %c0_8, %c0_9] : memref<128x4x4xf32, #tpu.memory_space<vmem>>, vector<1x4x4xf32>
    %9 = vector.shape_cast %8 : vector<1x4x4xf32> to vector<4x4xf32>
    %c0_10 = arith.constant 0 : index
    %c8 = arith.constant 8 : index
    %10 = vector.load %arg3[%c0_10, %c8] : memref<16x64xf32, #tpu.memory_space<vmem>>, vector<4x4xf32>
    tpu.vector_store %arg3[%c0_10, %c8], %9 {strides = array<i32>} : memref<16x64xf32, #tpu.memory_space<vmem>>, vector<4x4xf32>,
    %c3 = arith.constant 3 : index
    %c0_11 = arith.constant 0 : index
    %c0_12 = arith.constant 0 : index
    %11 = vector.load %arg1[%c3, %c0_11, %c0_12] : memref<128x4x4xf32, #tpu.memory_space<vmem>>, vector<1x4x4xf32>
    %12 = vector.shape_cast %11 : vector<1x4x4xf32> to vector<4x4xf32>
    %c0_13 = arith.constant 0 : index
    %c12 = arith.constant 12 : index
    %13 = vector.load %arg3[%c0_13, %c12] : memref<16x64xf32, #tpu.memory_space<vmem>>, vector<4x4xf32>
    tpu.vector_store %arg3[%c0_13, %c12], %12 {strides = array<i32>} : memref<16x64xf32, #tpu.memory_space<vmem>>, vector<4x4xf32>,
    %c4_14 = arith.constant 4 : index
    %c0_15 = arith.constant 0 : index
    %c0_16 = arith.constant 0 : index
    %14 = vector.load %arg1[%c4_14, %c0_15, %c0_16] : memref<128x4x4xf32, #tpu.memory_space<vmem>>, vector<1x4x4xf32>
    %15 = vector.shape_cast %14 : vector<1x4x4xf32> to vector<4x4xf32>
    %c4_17 = arith.constant 4 : index
    %c0_18 = arith.constant 0 : index
    %16 = vector.load %arg3[%c4_17, %c0_18] : memref<16x64xf32, #tpu.memory_space<vmem>>, vector<4x4xf32>
    tpu.vector_store %arg3[%c4_17, %c0_18], %15 {strides = array<i32>} : memref<16x64xf32, #tpu.memory_space<vmem>>, vector<4x4xf32>,
    %c5 = arith.constant 5 : index
    %c0_19 = arith.constant 0 : index
    %c0_20 = arith.constant 0 : index
    %17 = vector.load %arg1[%c5, %c0_19, %c0_20] : memref<128x4x4xf32, #tpu.memory_space<vmem>>, vector<1x4x4xf32>
    %18 = vector.shape_cast %17 : vector<1x4x4xf32> to vector<4x4xf32>
    %c4_21 = arith.constant 4 : index
    %c4_22 = arith.constant 4 : index
    %19 = vector.load %arg3[%c4_21, %c4_22] : memref<16x64xf32, #tpu.memory_space<vmem>>, vector<4x4xf32>
    tpu.vector_store %arg3[%c4_21, %c4_22], %18 {strides = array<i32>} : memref<16x64xf32, #tpu.memory_space<vmem>>, vector<4x4xf32>,
    %c6 = arith.constant 6 : index
    %c0_23 = arith.constant 0 : index
    %c0_24 = arith.constant 0 : index
    %20 = vector.load %arg1[%c6, %c0_23, %c0_24] : memref<128x4x4xf32, #tpu.memory_space<vmem>>, vector<1x4x4xf32>
    %21 = vector.shape_cast %20 : vector<1x4x4xf32> to vector<4x4xf32>
    %c4_25 = arith.constant 4 : index
    %c8_26 = arith.constant 8 : index
    %22 = vector.load %arg3[%c4_25, %c8_26] : memref<16x64xf32, #tpu.memory_space<vmem>>, vector<4x4xf32>
    tpu.vector_store %arg3[%c4_25, %c8_26], %21 {strides = array<i32>} : memref<16x64xf32, #tpu.memory_space<vmem>>, vector<4x4xf32>,
    %c7 = arith.constant 7 : index
    %c0_27 = arith.constant 0 : index
    %c0_28 = arith.constant 0 : index
    %23 = vector.load %arg1[%c7, %c0_27, %c0_28] : memref<128x4x4xf32, #tpu.memory_space<vmem>>, vector<1x4x4xf32>
    %24 = vector.shape_cast %23 : vector<1x4x4xf32> to vector<4x4xf32>
    %c4_29 = arith.constant 4 : index
    %c12_30 = arith.constant 12 : index
    %25 = vector.load %arg3[%c4_29, %c12_30] : memref<16x64xf32, #tpu.memory_space<vmem>>, vector<4x4xf32>
    tpu.vector_store %arg3[%c4_29, %c12_30], %24 {strides = array<i32>} : memref<16x64xf32, #tpu.memory_space<vmem>>, vector<4x4xf32>,
    %c8_31 = arith.constant 8 : index
    %c0_32 = arith.constant 0 : index
    %c0_33 = arith.constant 0 : index
    %26 = vector.load %arg1[%c8_31, %c0_32, %c0_33] : memref<128x4x4xf32, #tpu.memory_space<vmem>>, vector<1x4x4xf32>
    %27 = vector.shape_cast %26 : vector<1x4x4xf32> to vector<4x4xf32>
    %c8_34 = arith.constant 8 : index
    %c0_35 = arith.constant 0 : index
    %28 = vector.load %arg3[%c8_34, %c0_35] : memref<16x64xf32, #tpu.memory_space<vmem>>, vector<4x4xf32>
    tpu.vector_store %arg3[%c8_34, %c0_35], %27 {strides = array<i32>} : memref<16x64xf32, #tpu.memory_space<vmem>>, vector<4x4xf32>,
    %c9 = arith.constant 9 : index
    %c0_36 = arith.constant 0 : index
    %c0_37 = arith.constant 0 : index
    %29 = vector.load %arg1[%c9, %c0_36, %c0_37] : memref<128x4x4xf32, #tpu.memory_space<vmem>>, vector<1x4x4xf32>
    %30 = vector.shape_cast %29 : vector<1x4x4xf32> to vector<4x4xf32>
    %c8_38 = arith.constant 8 : index
    %c4_39 = arith.constant 4 : index
    %31 = vector.load %arg3[%c8_38, %c4_39] : memref<16x64xf32, #tpu.memory_space<vmem>>, vector<4x4xf32>
    tpu.vector_store %arg3[%c8_38, %c4_39], %30 {strides = array<i32>} : memref<16x64xf32, #tpu.memory_space<vmem>>, vector<4x4xf32>,
    %c10 = arith.constant 10 : index
    %c0_40 = arith.constant 0 : index
    %c0_41 = arith.constant 0 : index
    %32 = vector.load %arg1[%c10, %c0_40, %c0_41] : memref<128x4x4xf32, #tpu.memory_space<vmem>>, vector<1x4x4xf32>
    %33 = vector.shape_cast %32 : vector<1x4x4xf32> to vector<4x4xf32>
    %c8_42 = arith.constant 8 : index
    %c8_43 = arith.constant 8 : index
    %34 = vector.load %arg3[%c8_42, %c8_43] : memref<16x64xf32, #tpu.memory_space<vmem>>, vector<4x4xf32>
    tpu.vector_store %arg3[%c8_42, %c8_43], %33 {strides = array<i32>} : memref<16x64xf32, #tpu.memory_space<vmem>>, vector<4x4xf32>,
    %c11 = arith.constant 11 : index
    %c0_44 = arith.constant 0 : index
    %c0_45 = arith.constant 0 : index
    %35 = vector.load %arg1[%c11, %c0_44, %c0_45] : memref<128x4x4xf32, #tpu.memory_space<vmem>>, vector<1x4x4xf32>
    %36 = vector.shape_cast %35 : vector<1x4x4xf32> to vector<4x4xf32>
    %c8_46 = arith.constant 8 : index
    %c12_47 = arith.constant 12 : index
    %37 = vector.load %arg3[%c8_46, %c12_47] : memref<16x64xf32, #tpu.memory_space<vmem>>, vector<4x4xf32>
    tpu.vector_store %arg3[%c8_46, %c12_47], %36 {strides = array<i32>} : memref<16x64xf32, #tpu.memory_space<vmem>>, vector<4x4xf32>,
    %c12_48 = arith.constant 12 : index
    %c0_49 = arith.constant 0 : index
    %c0_50 = arith.constant 0 : index
    %38 = vector.load %arg1[%c12_48, %c0_49, %c0_50] : memref<128x4x4xf32, #tpu.memory_space<vmem>>, vector<1x4x4xf32>
    %39 = vector.shape_cast %38 : vector<1x4x4xf32> to vector<4x4xf32>
    %c12_51 = arith.constant 12 : index
    %c0_52 = arith.constant 0 : index
    %40 = vector.load %arg3[%c12_51, %c0_52] : memref<16x64xf32, #tpu.memory_space<vmem>>, vector<4x4xf32>
    tpu.vector_store %arg3[%c12_51, %c0_52], %39 {strides = array<i32>} : memref<16x64xf32, #tpu.memory_space<vmem>>, vector<4x4xf32>,
    %c13 = arith.constant 13 : index
    %c0_53 = arith.constant 0 : index
    %c0_54 = arith.constant 0 : index
    %41 = vector.load %arg1[%c13, %c0_53, %c0_54] : memref<128x4x4xf32, #tpu.memory_space<vmem>>, vector<1x4x4xf32>
    %42 = vector.shape_cast %41 : vector<1x4x4xf32> to vector<4x4xf32>
    %c12_55 = arith.constant 12 : index
    %c4_56 = arith.constant 4 : index
    %43 = vector.load %arg3[%c12_55, %c4_56] : memref<16x64xf32, #tpu.memory_space<vmem>>, vector<4x4xf32>
    tpu.vector_store %arg3[%c12_55, %c4_56], %42 {strides = array<i32>} : memref<16x64xf32, #tpu.memory_space<vmem>>, vector<4x4xf32>,
    %c14 = arith.constant 14 : index
    %c0_57 = arith.constant 0 : index
    %c0_58 = arith.constant 0 : index
    %44 = vector.load %arg1[%c14, %c0_57, %c0_58] : memref<128x4x4xf32, #tpu.memory_space<vmem>>, vector<1x4x4xf32>
    %45 = vector.shape_cast %44 : vector<1x4x4xf32> to vector<4x4xf32>
    %c12_59 = arith.constant 12 : index
    %c8_60 = arith.constant 8 : index
    %46 = vector.load %arg3[%c12_59, %c8_60] : memref<16x64xf32, #tpu.memory_space<vmem>>, vector<4x4xf32>
    tpu.vector_store %arg3[%c12_59, %c8_60], %45 {strides = array<i32>} : memref<16x64xf32, #tpu.memory_space<vmem>>, vector<4x4xf32>,
    %c15 = arith.constant 15 : index
    %c0_61 = arith.constant 0 : index
    %c0_62 = arith.constant 0 : index
    %47 = vector.load %arg1[%c15, %c0_61, %c0_62] : memref<128x4x4xf32, #tpu.memory_space<vmem>>, vector<1x4x4xf32>
    %48 = vector.shape_cast %47 : vector<1x4x4xf32> to vector<4x4xf32>
    %c12_63 = arith.constant 12 : index
    %c12_64 = arith.constant 12 : index
    %49 = vector.load %arg3[%c12_63, %c12_64] : memref<16x64xf32, #tpu.memory_space<vmem>>, vector<4x4xf32>
    tpu.vector_store %arg3[%c12_63, %c12_64], %48 {strides = array<i32>} : memref<16x64xf32, #tpu.memory_space<vmem>>, vector<4x4xf32>,
    %c16 = arith.constant 16 : index
    %c0_65 = arith.constant 0 : index
    %c0_66 = arith.constant 0 : index
    %50 = vector.load %arg1[%c16, %c0_65, %c0_66] : memref<128x4x4xf32, #tpu.memory_space<vmem>>, vector<1x4x4xf32>
    %51 = vector.shape_cast %50 : vector<1x4x4xf32> to vector<4x4xf32>
    %c0_67 = arith.constant 0 : index
    %c16_68 = arith.constant 16 : index
    %52 = vector.load %arg3[%c0_67, %c16_68] : memref<16x64xf32, #tpu.memory_space<vmem>>, vector<4x4xf32>
    tpu.vector_store %arg3[%c0_67, %c16_68], %51 {strides = array<i32>} : memref<16x64xf32, #tpu.memory_space<vmem>>, vector<4x4xf32>,
    %c17 = arith.constant 17 : index
    %c0_69 = arith.constant 0 : index
    %c0_70 = arith.constant 0 : index
    %53 = vector.load %arg1[%c17, %c0_69, %c0_70] : memref<128x4x4xf32, #tpu.memory_space<vmem>>, vector<1x4x4xf32>
    %54 = vector.shape_cast %53 : vector<1x4x4xf32> to vector<4x4xf32>
    %c0_71 = arith.constant 0 : index
    %c20 = arith.constant 20 : index
    %55 = vector.load %arg3[%c0_71, %c20] : memref<16x64xf32, #tpu.memory_space<vmem>>, vector<4x4xf32>
    tpu.vector_store %arg3[%c0_71, %c20], %54 {strides = array<i32>} : memref<16x64xf32, #tpu.memory_space<vmem>>, vector<4x4xf32>,
    %c18 = arith.constant 18 : index
    %c0_72 = arith.constant 0 : index
    %c0_73 = arith.constant 0 : index
    %56 = vector.load %arg1[%c18, %c0_72, %c0_73] : memref<128x4x4xf32, #tpu.memory_space<vmem>>, vector<1x4x4xf32>
    %57 = vector.shape_cast %56 : vector<1x4x4xf32> to vector<4x4xf32>
    %c0_74 = arith.constant 0 : index
    %c24 = arith.constant 24 : index
    %58 = vector.load %arg3[%c0_74, %c24] : memref<16x64xf32, #tpu.memory_space<vmem>>, vector<4x4xf32>
    tpu.vector_store %arg3[%c0_74, %c24], %57 {strides = array<i32>} : memref<16x64xf32, #tpu.memory_space<vmem>>, vector<4x4xf32>,
    %c19 = arith.constant 19 : index
    %c0_75 = arith.constant 0 : index
    %c0_76 = arith.constant 0 : index
    %59 = vector.load %arg1[%c19, %c0_75, %c0_76] : memref<128x4x4xf32, #tpu.memory_space<vmem>>, vector<1x4x4xf32>
    %60 = vector.shape_cast %59 : vector<1x4x4xf32> to vector<4x4xf32>
    %c0_77 = arith.constant 0 : index
    %c28 = arith.constant 28 : index
    %61 = vector.load %arg3[%c0_77, %c28] : memref<16x64xf32, #tpu.memory_space<vmem>>, vector<4x4xf32>
    tpu.vector_store %arg3[%c0_77, %c28], %60 {strides = array<i32>} : memref<16x64xf32, #tpu.memory_space<vmem>>, vector<4x4xf32>,
    %c20_78 = arith.constant 20 : index
    %c0_79 = arith.constant 0 : index
    %c0_80 = arith.constant 0 : index
    %62 = vector.load %arg1[%c20_78, %c0_79, %c0_80] : memref<128x4x4xf32, #tpu.memory_space<vmem>>, vector<1x4x4xf32>
    %63 = vector.shape_cast %62 : vector<1x4x4xf32> to vector<4x4xf32>
    %c4_81 = arith.constant 4 : index
    %c16_82 = arith.constant 16 : index
    %64 = vector.load %arg3[%c4_81, %c16_82] : memref<16x64xf32, #tpu.memory_space<vmem>>, vector<4x4xf32>
    tpu.vector_store %arg3[%c4_81, %c16_82], %63 {strides = array<i32>} : memref<16x64xf32, #tpu.memory_space<vmem>>, vector<4x4xf32>,
    %c21 = arith.constant 21 : index
    %c0_83 = arith.constant 0 : index
    %c0_84 = arith.constant 0 : index
    %65 = vector.load %arg1[%c21, %c0_83, %c0_84] : memref<128x4x4xf32, #tpu.memory_space<vmem>>, vector<1x4x4xf32>
    %66 = vector.shape_cast %65 : vector<1x4x4xf32> to vector<4x4xf32>
    %c4_85 = arith.constant 4 : index
    %c20_86 = arith.constant 20 : index
    %67 = vector.load %arg3[%c4_85, %c20_86] : memref<16x64xf32, #tpu.memory_space<vmem>>, vector<4x4xf32>
    tpu.vector_store %arg3[%c4_85, %c20_86], %66 {strides = array<i32>} : memref<16x64xf32, #tpu.memory_space<vmem>>, vector<4x4xf32>,
    %c22 = arith.constant 22 : index
    %c0_87 = arith.constant 0 : index
    %c0_88 = arith.constant 0 : index
    %68 = vector.load %arg1[%c22, %c0_87, %c0_88] : memref<128x4x4xf32, #tpu.memory_space<vmem>>, vector<1x4x4xf32>
    %69 = vector.shape_cast %68 : vector<1x4x4xf32> to vector<4x4xf32>
    %c4_89 = arith.constant 4 : index
    %c24_90 = arith.constant 24 : index
    %70 = vector.load %arg3[%c4_89, %c24_90] : memref<16x64xf32, #tpu.memory_space<vmem>>, vector<4x4xf32>
    tpu.vector_store %arg3[%c4_89, %c24_90], %69 {strides = array<i32>} : memref<16x64xf32, #tpu.memory_space<vmem>>, vector<4x4xf32>,
    %c23 = arith.constant 23 : index
    %c0_91 = arith.constant 0 : index
    %c0_92 = arith.constant 0 : index
    %71 = vector.load %arg1[%c23, %c0_91, %c0_92] : memref<128x4x4xf32, #tpu.memory_space<vmem>>, vector<1x4x4xf32>
    %72 = vector.shape_cast %71 : vector<1x4x4xf32> to vector<4x4xf32>
    %c4_93 = arith.constant 4 : index
    %c28_94 = arith.constant 28 : index
    %73 = vector.load %arg3[%c4_93, %c28_94] : memref<16x64xf32, #tpu.memory_space<vmem>>, vector<4x4xf32>
    tpu.vector_store %arg3[%c4_93, %c28_94], %72 {strides = array<i32>} : memref<16x64xf32, #tpu.memory_space<vmem>>, vector<4x4xf32>,
    %c24_95 = arith.constant 24 : index
    %c0_96 = arith.constant 0 : index
    %c0_97 = arith.constant 0 : index
    %74 = vector.load %arg1[%c24_95, %c0_96, %c0_97] : memref<128x4x4xf32, #tpu.memory_space<vmem>>, vector<1x4x4xf32>
    %75 = vector.shape_cast %74 : vector<1x4x4xf32> to vector<4x4xf32>
    %c8_98 = arith.constant 8 : index
    %c16_99 = arith.constant 16 : index
    %76 = vector.load %arg3[%c8_98, %c16_99] : memref<16x64xf32, #tpu.memory_space<vmem>>, vector<4x4xf32>
    tpu.vector_store %arg3[%c8_98, %c16_99], %75 {strides = array<i32>} : memref<16x64xf32, #tpu.memory_space<vmem>>, vector<4x4xf32>,
    %c25 = arith.constant 25 : index
    %c0_100 = arith.constant 0 : index
    %c0_101 = arith.constant 0 : index
    %77 = vector.load %arg1[%c25, %c0_100, %c0_101] : memref<128x4x4xf32, #tpu.memory_space<vmem>>, vector<1x4x4xf32>
    %78 = vector.shape_cast %77 : vector<1x4x4xf32> to vector<4x4xf32>
    %c8_102 = arith.constant 8 : index
    %c20_103 = arith.constant 20 : index
    %79 = vector.load %arg3[%c8_102, %c20_103] : memref<16x64xf32, #tpu.memory_space<vmem>>, vector<4x4xf32>
    tpu.vector_store %arg3[%c8_102, %c20_103], %78 {strides = array<i32>} : memref<16x64xf32, #tpu.memory_space<vmem>>, vector<4x4xf32>,
    %c26 = arith.constant 26 : index
    %c0_104 = arith.constant 0 : index
    %c0_105 = arith.constant 0 : index
    %80 = vector.load %arg1[%c26, %c0_104, %c0_105] : memref<128x4x4xf32, #tpu.memory_space<vmem>>, vector<1x4x4xf32>
    %81 = vector.shape_cast %80 : vector<1x4x4xf32> to vector<4x4xf32>
    %c8_106 = arith.constant 8 : index
    %c24_107 = arith.constant 24 : index
    %82 = vector.load %arg3[%c8_106, %c24_107] : memref<16x64xf32, #tpu.memory_space<vmem>>, vector<4x4xf32>
    tpu.vector_store %arg3[%c8_106, %c24_107], %81 {strides = array<i32>} : memref<16x64xf32, #tpu.memory_space<vmem>>, vector<4x4xf32>,
    %c27 = arith.constant 27 : index
    %c0_108 = arith.constant 0 : index
    %c0_109 = arith.constant 0 : index
    %83 = vector.load %arg1[%c27, %c0_108, %c0_109] : memref<128x4x4xf32, #tpu.memory_space<vmem>>, vector<1x4x4xf32>
    %84 = vector.shape_cast %83 : vector<1x4x4xf32> to vector<4x4xf32>
    %c8_110 = arith.constant 8 : index
    %c28_111 = arith.constant 28 : index
    %85 = vector.load %arg3[%c8_110, %c28_111] : memref<16x64xf32, #tpu.memory_space<vmem>>, vector<4x4xf32>
    tpu.vector_store %arg3[%c8_110, %c28_111], %84 {strides = array<i32>} : memref<16x64xf32, #tpu.memory_space<vmem>>, vector<4x4xf32>,
    %c28_112 = arith.constant 28 : index
    %c0_113 = arith.constant 0 : index
    %c0_114 = arith.constant 0 : index
    %86 = vector.load %arg1[%c28_112, %c0_113, %c0_114] : memref<128x4x4xf32, #tpu.memory_space<vmem>>, vector<1x4x4xf32>
    %87 = vector.shape_cast %86 : vector<1x4x4xf32> to vector<4x4xf32>
    %c12_115 = arith.constant 12 : index
    %c16_116 = arith.constant 16 : index
    %88 = vector.load %arg3[%c12_115, %c16_116] : memref<16x64xf32, #tpu.memory_space<vmem>>, vector<4x4xf32>
    tpu.vector_store %arg3[%c12_115, %c16_116], %87 {strides = array<i32>} : memref<16x64xf32, #tpu.memory_space<vmem>>, vector<4x4xf32>,
    %c29 = arith.constant 29 : index
    %c0_117 = arith.constant 0 : index
    %c0_118 = arith.constant 0 : index
    %89 = vector.load %arg1[%c29, %c0_117, %c0_118] : memref<128x4x4xf32, #tpu.memory_space<vmem>>, vector<1x4x4xf32>
    %90 = vector.shape_cast %89 : vector<1x4x4xf32> to vector<4x4xf32>
    %c12_119 = arith.constant 12 : index
    %c20_120 = arith.constant 20 : index
    %91 = vector.load %arg3[%c12_119, %c20_120] : memref<16x64xf32, #tpu.memory_space<vmem>>, vector<4x4xf32>
    tpu.vector_store %arg3[%c12_119, %c20_120], %90 {strides = array<i32>} : memref<16x64xf32, #tpu.memory_space<vmem>>, vector<4x4xf32>,
    %c30 = arith.constant 30 : index
    %c0_121 = arith.constant 0 : index
    %c0_122 = arith.constant 0 : index
    %92 = vector.load %arg1[%c30, %c0_121, %c0_122] : memref<128x4x4xf32, #tpu.memory_space<vmem>>, vector<1x4x4xf32>
    %93 = vector.shape_cast %92 : vector<1x4x4xf32> to vector<4x4xf32>
    %c12_123 = arith.constant 12 : index
    %c24_124 = arith.constant 24 : index
    %94 = vector.load %arg3[%c12_123, %c24_124] : memref<16x64xf32, #tpu.memory_space<vmem>>, vector<4x4xf32>
    tpu.vector_store %arg3[%c12_123, %c24_124], %93 {strides = array<i32>} : memref<16x64xf32, #tpu.memory_space<vmem>>, vector<4x4xf32>,
    %c31 = arith.constant 31 : index
    %c0_125 = arith.constant 0 : index
    %c0_126 = arith.constant 0 : index
    %95 = vector.load %arg1[%c31, %c0_125, %c0_126] : memref<128x4x4xf32, #tpu.memory_space<vmem>>, vector<1x4x4xf32>
    %96 = vector.shape_cast %95 : vector<1x4x4xf32> to vector<4x4xf32>
    %c12_127 = arith.constant 12 : index
    %c28_128 = arith.constant 28 : index
    %97 = vector.load %arg3[%c12_127, %c28_128] : memref<16x64xf32, #tpu.memory_space<vmem>>, vector<4x4xf32>
    tpu.vector_store %arg3[%c12_127, %c28_128], %96 {strides = array<i32>} : memref<16x64xf32, #tpu.memory_space<vmem>>, vector<4x4xf32>,
    %c32 = arith.constant 32 : index
    %c0_129 = arith.constant 0 : index
    %c0_130 = arith.constant 0 : index
    %98 = vector.load %arg1[%c32, %c0_129, %c0_130] : memref<128x4x4xf32, #tpu.memory_space<vmem>>, vector<1x4x4xf32>
    %99 = vector.shape_cast %98 : vector<1x4x4xf32> to vector<4x4xf32>
    %c0_131 = arith.constant 0 : index
    %c32_132 = arith.constant 32 : index
    %100 = vector.load %arg3[%c0_131, %c32_132] : memref<16x64xf32, #tpu.memory_space<vmem>>, vector<4x4xf32>
    tpu.vector_store %arg3[%c0_131, %c32_132], %99 {strides = array<i32>} : memref<16x64xf32, #tpu.memory_space<vmem>>, vector<4x4xf32>,
    %c33 = arith.constant 33 : index
    %c0_133 = arith.constant 0 : index
    %c0_134 = arith.constant 0 : index
    %101 = vector.load %arg1[%c33, %c0_133, %c0_134] : memref<128x4x4xf32, #tpu.memory_space<vmem>>, vector<1x4x4xf32>
    %102 = vector.shape_cast %101 : vector<1x4x4xf32> to vector<4x4xf32>
    %c0_135 = arith.constant 0 : index
    %c36 = arith.constant 36 : index
    %103 = vector.load %arg3[%c0_135, %c36] : memref<16x64xf32, #tpu.memory_space<vmem>>, vector<4x4xf32>
    tpu.vector_store %arg3[%c0_135, %c36], %102 {strides = array<i32>} : memref<16x64xf32, #tpu.memory_space<vmem>>, vector<4x4xf32>,
    %c34 = arith.constant 34 : index
    %c0_136 = arith.constant 0 : index
    %c0_137 = arith.constant 0 : index
    %104 = vector.load %arg1[%c34, %c0_136, %c0_137] : memref<128x4x4xf32, #tpu.memory_space<vmem>>, vector<1x4x4xf32>
    %105 = vector.shape_cast %104 : vector<1x4x4xf32> to vector<4x4xf32>
    %c0_138 = arith.constant 0 : index
    %c40 = arith.constant 40 : index
    %106 = vector.load %arg3[%c0_138, %c40] : memref<16x64xf32, #tpu.memory_space<vmem>>, vector<4x4xf32>
    tpu.vector_store %arg3[%c0_138, %c40], %105 {strides = array<i32>} : memref<16x64xf32, #tpu.memory_space<vmem>>, vector<4x4xf32>,
    %c35 = arith.constant 35 : index
    %c0_139 = arith.constant 0 : index
    %c0_140 = arith.constant 0 : index
    %107 = vector.load %arg1[%c35, %c0_139, %c0_140] : memref<128x4x4xf32, #tpu.memory_space<vmem>>, vector<1x4x4xf32>
    %108 = vector.shape_cast %107 : vector<1x4x4xf32> to vector<4x4xf32>
    %c0_141 = arith.constant 0 : index
    %c44 = arith.constant 44 : index
    %109 = vector.load %arg3[%c0_141, %c44] : memref<16x64xf32, #tpu.memory_space<vmem>>, vector<4x4xf32>
    tpu.vector_store %arg3[%c0_141, %c44], %108 {strides = array<i32>} : memref<16x64xf32, #tpu.memory_space<vmem>>, vector<4x4xf32>,
    %c36_142 = arith.constant 36 : index
    %c0_143 = arith.constant 0 : index
    %c0_144 = arith.constant 0 : index
    %110 = vector.load %arg1[%c36_142, %c0_143, %c0_144] : memref<128x4x4xf32, #tpu.memory_space<vmem>>, vector<1x4x4xf32>
    %111 = vector.shape_cast %110 : vector<1x4x4xf32> to vector<4x4xf32>
    %c4_145 = arith.constant 4 : index
    %c32_146 = arith.constant 32 : index
    %112 = vector.load %arg3[%c4_145, %c32_146] : memref<16x64xf32, #tpu.memory_space<vmem>>, vector<4x4xf32>
    tpu.vector_store %arg3[%c4_145, %c32_146], %111 {strides = array<i32>} : memref<16x64xf32, #tpu.memory_space<vmem>>, vector<4x4xf32>,
    %c37 = arith.constant 37 : index
    %c0_147 = arith.constant 0 : index
    %c0_148 = arith.constant 0 : index
    %113 = vector.load %arg1[%c37, %c0_147, %c0_148] : memref<128x4x4xf32, #tpu.memory_space<vmem>>, vector<1x4x4xf32>
    %114 = vector.shape_cast %113 : vector<1x4x4xf32> to vector<4x4xf32>
    %c4_149 = arith.constant 4 : index
    %c36_150 = arith.constant 36 : index
    %115 = vector.load %arg3[%c4_149, %c36_150] : memref<16x64xf32, #tpu.memory_space<vmem>>, vector<4x4xf32>
    tpu.vector_store %arg3[%c4_149, %c36_150], %114 {strides = array<i32>} : memref<16x64xf32, #tpu.memory_space<vmem>>, vector<4x4xf32>,
    %c38 = arith.constant 38 : index
    %c0_151 = arith.constant 0 : index
    %c0_152 = arith.constant 0 : index
    %116 = vector.load %arg1[%c38, %c0_151, %c0_152] : memref<128x4x4xf32, #tpu.memory_space<vmem>>, vector<1x4x4xf32>
    %117 = vector.shape_cast %116 : vector<1x4x4xf32> to vector<4x4xf32>
    %c4_153 = arith.constant 4 : index
    %c40_154 = arith.constant 40 : index
    %118 = vector.load %arg3[%c4_153, %c40_154] : memref<16x64xf32, #tpu.memory_space<vmem>>, vector<4x4xf32>
    tpu.vector_store %arg3[%c4_153, %c40_154], %117 {strides = array<i32>} : memref<16x64xf32, #tpu.memory_space<vmem>>, vector<4x4xf32>,
    %c39 = arith.constant 39 : index
    %c0_155 = arith.constant 0 : index
    %c0_156 = arith.constant 0 : index
    %119 = vector.load %arg1[%c39, %c0_155, %c0_156] : memref<128x4x4xf32, #tpu.memory_space<vmem>>, vector<1x4x4xf32>
    %120 = vector.shape_cast %119 : vector<1x4x4xf32> to vector<4x4xf32>
    %c4_157 = arith.constant 4 : index
    %c44_158 = arith.constant 44 : index
    %121 = vector.load %arg3[%c4_157, %c44_158] : memref<16x64xf32, #tpu.memory_space<vmem>>, vector<4x4xf32>
    tpu.vector_store %arg3[%c4_157, %c44_158], %120 {strides = array<i32>} : memref<16x64xf32, #tpu.memory_space<vmem>>, vector<4x4xf32>,
    %c40_159 = arith.constant 40 : index
    %c0_160 = arith.constant 0 : index
    %c0_161 = arith.constant 0 : index
    %122 = vector.load %arg1[%c40_159, %c0_160, %c0_161] : memref<128x4x4xf32, #tpu.memory_space<vmem>>, vector<1x4x4xf32>
    %123 = vector.shape_cast %122 : vector<1x4x4xf32> to vector<4x4xf32>
    %c8_162 = arith.constant 8 : index
    %c32_163 = arith.constant 32 : index
    %124 = vector.load %arg3[%c8_162, %c32_163] : memref<16x64xf32, #tpu.memory_space<vmem>>, vector<4x4xf32>
    tpu.vector_store %arg3[%c8_162, %c32_163], %123 {strides = array<i32>} : memref<16x64xf32, #tpu.memory_space<vmem>>, vector<4x4xf32>,
    %c41 = arith.constant 41 : index
    %c0_164 = arith.constant 0 : index
    %c0_165 = arith.constant 0 : index
    %125 = vector.load %arg1[%c41, %c0_164, %c0_165] : memref<128x4x4xf32, #tpu.memory_space<vmem>>, vector<1x4x4xf32>
    %126 = vector.shape_cast %125 : vector<1x4x4xf32> to vector<4x4xf32>
    %c8_166 = arith.constant 8 : index
    %c36_167 = arith.constant 36 : index
    %127 = vector.load %arg3[%c8_166, %c36_167] : memref<16x64xf32, #tpu.memory_space<vmem>>, vector<4x4xf32>
    tpu.vector_store %arg3[%c8_166, %c36_167], %126 {strides = array<i32>} : memref<16x64xf32, #tpu.memory_space<vmem>>, vector<4x4xf32>,
    %c42 = arith.constant 42 : index
    %c0_168 = arith.constant 0 : index
    %c0_169 = arith.constant 0 : index
    %128 = vector.load %arg1[%c42, %c0_168, %c0_169] : memref<128x4x4xf32, #tpu.memory_space<vmem>>, vector<1x4x4xf32>
    %129 = vector.shape_cast %128 : vector<1x4x4xf32> to vector<4x4xf32>
    %c8_170 = arith.constant 8 : index
    %c40_171 = arith.constant 40 : index
    %130 = vector.load %arg3[%c8_170, %c40_171] : memref<16x64xf32, #tpu.memory_space<vmem>>, vector<4x4xf32>
    tpu.vector_store %arg3[%c8_170, %c40_171], %129 {strides = array<i32>} : memref<16x64xf32, #tpu.memory_space<vmem>>, vector<4x4xf32>,
    %c43 = arith.constant 43 : index
    %c0_172 = arith.constant 0 : index
    %c0_173 = arith.constant 0 : index
    %131 = vector.load %arg1[%c43, %c0_172, %c0_173] : memref<128x4x4xf32, #tpu.memory_space<vmem>>, vector<1x4x4xf32>
    %132 = vector.shape_cast %131 : vector<1x4x4xf32> to vector<4x4xf32>
    %c8_174 = arith.constant 8 : index
    %c44_175 = arith.constant 44 : index
    %133 = vector.load %arg3[%c8_174, %c44_175] : memref<16x64xf32, #tpu.memory_space<vmem>>, vector<4x4xf32>
    tpu.vector_store %arg3[%c8_174, %c44_175], %132 {strides = array<i32>} : memref<16x64xf32, #tpu.memory_space<vmem>>, vector<4x4xf32>,
    %c44_176 = arith.constant 44 : index
    %c0_177 = arith.constant 0 : index
    %c0_178 = arith.constant 0 : index
    %134 = vector.load %arg1[%c44_176, %c0_177, %c0_178] : memref<128x4x4xf32, #tpu.memory_space<vmem>>, vector<1x4x4xf32>
    %135 = vector.shape_cast %134 : vector<1x4x4xf32> to vector<4x4xf32>
    %c12_179 = arith.constant 12 : index
    %c32_180 = arith.constant 32 : index
    %136 = vector.load %arg3[%c12_179, %c32_180] : memref<16x64xf32, #tpu.memory_space<vmem>>, vector<4x4xf32>
    tpu.vector_store %arg3[%c12_179, %c32_180], %135 {strides = array<i32>} : memref<16x64xf32, #tpu.memory_space<vmem>>, vector<4x4xf32>,
    %c45 = arith.constant 45 : index
    %c0_181 = arith.constant 0 : index
    %c0_182 = arith.constant 0 : index
    %137 = vector.load %arg1[%c45, %c0_181, %c0_182] : memref<128x4x4xf32, #tpu.memory_space<vmem>>, vector<1x4x4xf32>
    %138 = vector.shape_cast %137 : vector<1x4x4xf32> to vector<4x4xf32>
    %c12_183 = arith.constant 12 : index
    %c36_184 = arith.constant 36 : index
    %139 = vector.load %arg3[%c12_183, %c36_184] : memref<16x64xf32, #tpu.memory_space<vmem>>, vector<4x4xf32>
    tpu.vector_store %arg3[%c12_183, %c36_184], %138 {strides = array<i32>} : memref<16x64xf32, #tpu.memory_space<vmem>>, vector<4x4xf32>,
    %c46 = arith.constant 46 : index
    %c0_185 = arith.constant 0 : index
    %c0_186 = arith.constant 0 : index
    %140 = vector.load %arg1[%c46, %c0_185, %c0_186] : memref<128x4x4xf32, #tpu.memory_space<vmem>>, vector<1x4x4xf32>
    %141 = vector.shape_cast %140 : vector<1x4x4xf32> to vector<4x4xf32>
    %c12_187 = arith.constant 12 : index
    %c40_188 = arith.constant 40 : index
    %142 = vector.load %arg3[%c12_187, %c40_188] : memref<16x64xf32, #tpu.memory_space<vmem>>, vector<4x4xf32>
    tpu.vector_store %arg3[%c12_187, %c40_188], %141 {strides = array<i32>} : memref<16x64xf32, #tpu.memory_space<vmem>>, vector<4x4xf32>,
    %c47 = arith.constant 47 : index
    %c0_189 = arith.constant 0 : index
    %c0_190 = arith.constant 0 : index
    %143 = vector.load %arg1[%c47, %c0_189, %c0_190] : memref<128x4x4xf32, #tpu.memory_space<vmem>>, vector<1x4x4xf32>
    %144 = vector.shape_cast %143 : vector<1x4x4xf32> to vector<4x4xf32>
    %c12_191 = arith.constant 12 : index
    %c44_192 = arith.constant 44 : index
    %145 = vector.load %arg3[%c12_191, %c44_192] : memref<16x64xf32, #tpu.memory_space<vmem>>, vector<4x4xf32>
    tpu.vector_store %arg3[%c12_191, %c44_192], %144 {strides = array<i32>} : memref<16x64xf32, #tpu.memory_space<vmem>>, vector<4x4xf32>,
    %c48 = arith.constant 48 : index
    %c0_193 = arith.constant 0 : index
    %c0_194 = arith.constant 0 : index
    %146 = vector.load %arg1[%c48, %c0_193, %c0_194] : memref<128x4x4xf32, #tpu.memory_space<vmem>>, vector<1x4x4xf32>
    %147 = vector.shape_cast %146 : vector<1x4x4xf32> to vector<4x4xf32>
    %c0_195 = arith.constant 0 : index
    %c48_196 = arith.constant 48 : index
    %148 = vector.load %arg3[%c0_195, %c48_196] : memref<16x64xf32, #tpu.memory_space<vmem>>, vector<4x4xf32>
    tpu.vector_store %arg3[%c0_195, %c48_196], %147 {strides = array<i32>} : memref<16x64xf32, #tpu.memory_space<vmem>>, vector<4x4xf32>,
    %c49 = arith.constant 49 : index
    %c0_197 = arith.constant 0 : index
    %c0_198 = arith.constant 0 : index
    %149 = vector.load %arg1[%c49, %c0_197, %c0_198] : memref<128x4x4xf32, #tpu.memory_space<vmem>>, vector<1x4x4xf32>
    %150 = vector.shape_cast %149 : vector<1x4x4xf32> to vector<4x4xf32>
    %c0_199 = arith.constant 0 : index
    %c52 = arith.constant 52 : index
    %151 = vector.load %arg3[%c0_199, %c52] : memref<16x64xf32, #tpu.memory_space<vmem>>, vector<4x4xf32>
    tpu.vector_store %arg3[%c0_199, %c52], %150 {strides = array<i32>} : memref<16x64xf32, #tpu.memory_space<vmem>>, vector<4x4xf32>,
    %c50 = arith.constant 50 : index
    %c0_200 = arith.constant 0 : index
    %c0_201 = arith.constant 0 : index
    %152 = vector.load %arg1[%c50, %c0_200, %c0_201] : memref<128x4x4xf32, #tpu.memory_space<vmem>>, vector<1x4x4xf32>
    %153 = vector.shape_cast %152 : vector<1x4x4xf32> to vector<4x4xf32>
    %c0_202 = arith.constant 0 : index
    %c56 = arith.constant 56 : index
    %154 = vector.load %arg3[%c0_202, %c56] : memref<16x64xf32, #tpu.memory_space<vmem>>, vector<4x4xf32>
    tpu.vector_store %arg3[%c0_202, %c56], %153 {strides = array<i32>} : memref<16x64xf32, #tpu.memory_space<vmem>>, vector<4x4xf32>,
    %c51 = arith.constant 51 : index
    %c0_203 = arith.constant 0 : index
    %c0_204 = arith.constant 0 : index
    %155 = vector.load %arg1[%c51, %c0_203, %c0_204] : memref<128x4x4xf32, #tpu.memory_space<vmem>>, vector<1x4x4xf32>
    %156 = vector.shape_cast %155 : vector<1x4x4xf32> to vector<4x4xf32>
    %c0_205 = arith.constant 0 : index
    %c60 = arith.constant 60 : index
    %157 = vector.load %arg3[%c0_205, %c60] : memref<16x64xf32, #tpu.memory_space<vmem>>, vector<4x4xf32>
    tpu.vector_store %arg3[%c0_205, %c60], %156 {strides = array<i32>} : memref<16x64xf32, #tpu.memory_space<vmem>>, vector<4x4xf32>,
    %c52_206 = arith.constant 52 : index
    %c0_207 = arith.constant 0 : index
    %c0_208 = arith.constant 0 : index
    %158 = vector.load %arg1[%c52_206, %c0_207, %c0_208] : memref<128x4x4xf32, #tpu.memory_space<vmem>>, vector<1x4x4xf32>
    %159 = vector.shape_cast %158 : vector<1x4x4xf32> to vector<4x4xf32>
    %c4_209 = arith.constant 4 : index
    %c48_210 = arith.constant 48 : index
    %160 = vector.load %arg3[%c4_209, %c48_210] : memref<16x64xf32, #tpu.memory_space<vmem>>, vector<4x4xf32>
    tpu.vector_store %arg3[%c4_209, %c48_210], %159 {strides = array<i32>} : memref<16x64xf32, #tpu.memory_space<vmem>>, vector<4x4xf32>,
    %c53 = arith.constant 53 : index
    %c0_211 = arith.constant 0 : index
    %c0_212 = arith.constant 0 : index
    %161 = vector.load %arg1[%c53, %c0_211, %c0_212] : memref<128x4x4xf32, #tpu.memory_space<vmem>>, vector<1x4x4xf32>
    %162 = vector.shape_cast %161 : vector<1x4x4xf32> to vector<4x4xf32>
    %c4_213 = arith.constant 4 : index
    %c52_214 = arith.constant 52 : index
    %163 = vector.load %arg3[%c4_213, %c52_214] : memref<16x64xf32, #tpu.memory_space<vmem>>, vector<4x4xf32>
    tpu.vector_store %arg3[%c4_213, %c52_214], %162 {strides = array<i32>} : memref<16x64xf32, #tpu.memory_space<vmem>>, vector<4x4xf32>,
    %c54 = arith.constant 54 : index
    %c0_215 = arith.constant 0 : index
    %c0_216 = arith.constant 0 : index
    %164 = vector.load %arg1[%c54, %c0_215, %c0_216] : memref<128x4x4xf32, #tpu.memory_space<vmem>>, vector<1x4x4xf32>
    %165 = vector.shape_cast %164 : vector<1x4x4xf32> to vector<4x4xf32>
    %c4_217 = arith.constant 4 : index
    %c56_218 = arith.constant 56 : index
    %166 = vector.load %arg3[%c4_217, %c56_218] : memref<16x64xf32, #tpu.memory_space<vmem>>, vector<4x4xf32>
    tpu.vector_store %arg3[%c4_217, %c56_218], %165 {strides = array<i32>} : memref<16x64xf32, #tpu.memory_space<vmem>>, vector<4x4xf32>,
    %c55 = arith.constant 55 : index
    %c0_219 = arith.constant 0 : index
    %c0_220 = arith.constant 0 : index
    %167 = vector.load %arg1[%c55, %c0_219, %c0_220] : memref<128x4x4xf32, #tpu.memory_space<vmem>>, vector<1x4x4xf32>
    %168 = vector.shape_cast %167 : vector<1x4x4xf32> to vector<4x4xf32>
    %c4_221 = arith.constant 4 : index
    %c60_222 = arith.constant 60 : index
    %169 = vector.load %arg3[%c4_221, %c60_222] : memref<16x64xf32, #tpu.memory_space<vmem>>, vector<4x4xf32>
    tpu.vector_store %arg3[%c4_221, %c60_222], %168 {strides = array<i32>} : memref<16x64xf32, #tpu.memory_space<vmem>>, vector<4x4xf32>,
    %c56_223 = arith.constant 56 : index
    %c0_224 = arith.constant 0 : index
    %c0_225 = arith.constant 0 : index
    %170 = vector.load %arg1[%c56_223, %c0_224, %c0_225] : memref<128x4x4xf32, #tpu.memory_space<vmem>>, vector<1x4x4xf32>
    %171 = vector.shape_cast %170 : vector<1x4x4xf32> to vector<4x4xf32>
    %c8_226 = arith.constant 8 : index
    %c48_227 = arith.constant 48 : index
    %172 = vector.load %arg3[%c8_226, %c48_227] : memref<16x64xf32, #tpu.memory_space<vmem>>, vector<4x4xf32>
    tpu.vector_store %arg3[%c8_226, %c48_227], %171 {strides = array<i32>} : memref<16x64xf32, #tpu.memory_space<vmem>>, vector<4x4xf32>,
    %c57 = arith.constant 57 : index
    %c0_228 = arith.constant 0 : index
    %c0_229 = arith.constant 0 : index
    %173 = vector.load %arg1[%c57, %c0_228, %c0_229] : memref<128x4x4xf32, #tpu.memory_space<vmem>>, vector<1x4x4xf32>
    %174 = vector.shape_cast %173 : vector<1x4x4xf32> to vector<4x4xf32>
    %c8_230 = arith.constant 8 : index
    %c52_231 = arith.constant 52 : index
    %175 = vector.load %arg3[%c8_230, %c52_231] : memref<16x64xf32, #tpu.memory_space<vmem>>, vector<4x4xf32>
    tpu.vector_store %arg3[%c8_230, %c52_231], %174 {strides = array<i32>} : memref<16x64xf32, #tpu.memory_space<vmem>>, vector<4x4xf32>,
    %c58 = arith.constant 58 : index
    %c0_232 = arith.constant 0 : index
    %c0_233 = arith.constant 0 : index
    %176 = vector.load %arg1[%c58, %c0_232, %c0_233] : memref<128x4x4xf32, #tpu.memory_space<vmem>>, vector<1x4x4xf32>
    %177 = vector.shape_cast %176 : vector<1x4x4xf32> to vector<4x4xf32>
    %c8_234 = arith.constant 8 : index
    %c56_235 = arith.constant 56 : index
    %178 = vector.load %arg3[%c8_234, %c56_235] : memref<16x64xf32, #tpu.memory_space<vmem>>, vector<4x4xf32>
    tpu.vector_store %arg3[%c8_234, %c56_235], %177 {strides = array<i32>} : memref<16x64xf32, #tpu.memory_space<vmem>>, vector<4x4xf32>,
    %c59 = arith.constant 59 : index
    %c0_236 = arith.constant 0 : index
    %c0_237 = arith.constant 0 : index
    %179 = vector.load %arg1[%c59, %c0_236, %c0_237] : memref<128x4x4xf32, #tpu.memory_space<vmem>>, vector<1x4x4xf32>
    %180 = vector.shape_cast %179 : vector<1x4x4xf32> to vector<4x4xf32>
    %c8_238 = arith.constant 8 : index
    %c60_239 = arith.constant 60 : index
    %181 = vector.load %arg3[%c8_238, %c60_239] : memref<16x64xf32, #tpu.memory_space<vmem>>, vector<4x4xf32>
    tpu.vector_store %arg3[%c8_238, %c60_239], %180 {strides = array<i32>} : memref<16x64xf32, #tpu.memory_space<vmem>>, vector<4x4xf32>,
    %c60_240 = arith.constant 60 : index
    %c0_241 = arith.constant 0 : index
    %c0_242 = arith.constant 0 : index
    %182 = vector.load %arg1[%c60_240, %c0_241, %c0_242] : memref<128x4x4xf32, #tpu.memory_space<vmem>>, vector<1x4x4xf32>
    %183 = vector.shape_cast %182 : vector<1x4x4xf32> to vector<4x4xf32>
    %c12_243 = arith.constant 12 : index
    %c48_244 = arith.constant 48 : index
    %184 = vector.load %arg3[%c12_243, %c48_244] : memref<16x64xf32, #tpu.memory_space<vmem>>, vector<4x4xf32>
    tpu.vector_store %arg3[%c12_243, %c48_244], %183 {strides = array<i32>} : memref<16x64xf32, #tpu.memory_space<vmem>>, vector<4x4xf32>,
    %c61 = arith.constant 61 : index
    %c0_245 = arith.constant 0 : index
    %c0_246 = arith.constant 0 : index
    %185 = vector.load %arg1[%c61, %c0_245, %c0_246] : memref<128x4x4xf32, #tpu.memory_space<vmem>>, vector<1x4x4xf32>
    %186 = vector.shape_cast %185 : vector<1x4x4xf32> to vector<4x4xf32>
    %c12_247 = arith.constant 12 : index
    %c52_248 = arith.constant 52 : index
    %187 = vector.load %arg3[%c12_247, %c52_248] : memref<16x64xf32, #tpu.memory_space<vmem>>, vector<4x4xf32>
    tpu.vector_store %arg3[%c12_247, %c52_248], %186 {strides = array<i32>} : memref<16x64xf32, #tpu.memory_space<vmem>>, vector<4x4xf32>,
    %c62 = arith.constant 62 : index
    %c0_249 = arith.constant 0 : index
    %c0_250 = arith.constant 0 : index
    %188 = vector.load %arg1[%c62, %c0_249, %c0_250] : memref<128x4x4xf32, #tpu.memory_space<vmem>>, vector<1x4x4xf32>
    %189 = vector.shape_cast %188 : vector<1x4x4xf32> to vector<4x4xf32>
    %c12_251 = arith.constant 12 : index
    %c56_252 = arith.constant 56 : index
    %190 = vector.load %arg3[%c12_251, %c56_252] : memref<16x64xf32, #tpu.memory_space<vmem>>, vector<4x4xf32>
    tpu.vector_store %arg3[%c12_251, %c56_252], %189 {strides = array<i32>} : memref<16x64xf32, #tpu.memory_space<vmem>>, vector<4x4xf32>,
    %c63 = arith.constant 63 : index
    %c0_253 = arith.constant 0 : index
    %c0_254 = arith.constant 0 : index
    %191 = vector.load %arg1[%c63, %c0_253, %c0_254] : memref<128x4x4xf32, #tpu.memory_space<vmem>>, vector<1x4x4xf32>
    %192 = vector.shape_cast %191 : vector<1x4x4xf32> to vector<4x4xf32>
    %c12_255 = arith.constant 12 : index
    %c60_256 = arith.constant 60 : index
    %193 = vector.load %arg3[%c12_255, %c60_256] : memref<16x64xf32, #tpu.memory_space<vmem>>, vector<4x4xf32>
    tpu.vector_store %arg3[%c12_255, %c60_256], %192 {strides = array<i32>} : memref<16x64xf32, #tpu.memory_space<vmem>>, vector<4x4xf32>,
    %c0_257 = arith.constant 0 : index
    %c0_258 = arith.constant 0 : index
    %194 = vector.load %arg3[%c0_257, %c0_258] : memref<16x64xf32, #tpu.memory_space<vmem>>, vector<1x16xf32>
    %c0_259 = arith.constant 0 : index
    %c0_260 = arith.constant 0 : index
    %195 = vector.load %arg4[%c0_259, %c0_260] : memref<128x16xf32, #tpu.memory_space<vmem>>, vector<1x16xf32>
    tpu.vector_store %arg4[%c0_259, %c0_260], %194 {strides = array<i32>} : memref<128x16xf32, #tpu.memory_space<vmem>>, vector<1x16xf32>,
    %c0_261 = arith.constant 0 : index
    %c16_262 = arith.constant 16 : index
    %196 = vector.load %arg3[%c0_261, %c16_262] : memref<16x64xf32, #tpu.memory_space<vmem>>, vector<1x16xf32>
    %c1_263 = arith.constant 1 : index
    %c0_264 = arith.constant 0 : index
    %197 = vector.load %arg4[%c1_263, %c0_264] : memref<128x16xf32, #tpu.memory_space<vmem>>, vector<1x16xf32>
    tpu.vector_store %arg4[%c1_263, %c0_264], %196 {strides = array<i32>} : memref<128x16xf32, #tpu.memory_space<vmem>>, vector<1x16xf32>,
    %c0_265 = arith.constant 0 : index
    %c32_266 = arith.constant 32 : index
    %198 = vector.load %arg3[%c0_265, %c32_266] : memref<16x64xf32, #tpu.memory_space<vmem>>, vector<1x16xf32>
    %c2_267 = arith.constant 2 : index
    %c0_268 = arith.constant 0 : index
    %199 = vector.load %arg4[%c2_267, %c0_268] : memref<128x16xf32, #tpu.memory_space<vmem>>, vector<1x16xf32>
    tpu.vector_store %arg4[%c2_267, %c0_268], %198 {strides = array<i32>} : memref<128x16xf32, #tpu.memory_space<vmem>>, vector<1x16xf32>,
    %c0_269 = arith.constant 0 : index
    %c48_270 = arith.constant 48 : index
    %200 = vector.load %arg3[%c0_269, %c48_270] : memref<16x64xf32, #tpu.memory_space<vmem>>, vector<1x16xf32>
    %c3_271 = arith.constant 3 : index
    %c0_272 = arith.constant 0 : index
    %201 = vector.load %arg4[%c3_271, %c0_272] : memref<128x16xf32, #tpu.memory_space<vmem>>, vector<1x16xf32>
    tpu.vector_store %arg4[%c3_271, %c0_272], %200 {strides = array<i32>} : memref<128x16xf32, #tpu.memory_space<vmem>>, vector<1x16xf32>,
    %c1_273 = arith.constant 1 : index
    %c0_274 = arith.constant 0 : index
    %202 = vector.load %arg3[%c1_273, %c0_274] : memref<16x64xf32, #tpu.memory_space<vmem>>, vector<1x16xf32>
    %c4_275 = arith.constant 4 : index
    %c0_276 = arith.constant 0 : index
    %203 = vector.load %arg4[%c4_275, %c0_276] : memref<128x16xf32, #tpu.memory_space<vmem>>, vector<1x16xf32>
    tpu.vector_store %arg4[%c4_275, %c0_276], %202 {strides = array<i32>} : memref<128x16xf32, #tpu.memory_space<vmem>>, vector<1x16xf32>,
    %c1_277 = arith.constant 1 : index
    %c16_278 = arith.constant 16 : index
    %204 = vector.load %arg3[%c1_277, %c16_278] : memref<16x64xf32, #tpu.memory_space<vmem>>, vector<1x16xf32>
    %c5_279 = arith.constant 5 : index
    %c0_280 = arith.constant 0 : index
    %205 = vector.load %arg4[%c5_279, %c0_280] : memref<128x16xf32, #tpu.memory_space<vmem>>, vector<1x16xf32>
    tpu.vector_store %arg4[%c5_279, %c0_280], %204 {strides = array<i32>} : memref<128x16xf32, #tpu.memory_space<vmem>>, vector<1x16xf32>,
    %c1_281 = arith.constant 1 : index
    %c32_282 = arith.constant 32 : index
    %206 = vector.load %arg3[%c1_281, %c32_282] : memref<16x64xf32, #tpu.memory_space<vmem>>, vector<1x16xf32>
    %c6_283 = arith.constant 6 : index
    %c0_284 = arith.constant 0 : index
    %207 = vector.load %arg4[%c6_283, %c0_284] : memref<128x16xf32, #tpu.memory_space<vmem>>, vector<1x16xf32>
    tpu.vector_store %arg4[%c6_283, %c0_284], %206 {strides = array<i32>} : memref<128x16xf32, #tpu.memory_space<vmem>>, vector<1x16xf32>,
    %c1_285 = arith.constant 1 : index
    %c48_286 = arith.constant 48 : index
    %208 = vector.load %arg3[%c1_285, %c48_286] : memref<16x64xf32, #tpu.memory_space<vmem>>, vector<1x16xf32>
    %c7_287 = arith.constant 7 : index
    %c0_288 = arith.constant 0 : index
    %209 = vector.load %arg4[%c7_287, %c0_288] : memref<128x16xf32, #tpu.memory_space<vmem>>, vector<1x16xf32>
    tpu.vector_store %arg4[%c7_287, %c0_288], %208 {strides = array<i32>} : memref<128x16xf32, #tpu.memory_space<vmem>>, vector<1x16xf32>,
    %c2_289 = arith.constant 2 : index
    %c0_290 = arith.constant 0 : index
    %210 = vector.load %arg3[%c2_289, %c0_290] : memref<16x64xf32, #tpu.memory_space<vmem>>, vector<1x16xf32>
    %c8_291 = arith.constant 8 : index
    %c0_292 = arith.constant 0 : index
    %211 = vector.load %arg4[%c8_291, %c0_292] : memref<128x16xf32, #tpu.memory_space<vmem>>, vector<1x16xf32>
    tpu.vector_store %arg4[%c8_291, %c0_292], %210 {strides = array<i32>} : memref<128x16xf32, #tpu.memory_space<vmem>>, vector<1x16xf32>,
    %c2_293 = arith.constant 2 : index
    %c16_294 = arith.constant 16 : index
    %212 = vector.load %arg3[%c2_293, %c16_294] : memref<16x64xf32, #tpu.memory_space<vmem>>, vector<1x16xf32>
    %c9_295 = arith.constant 9 : index
    %c0_296 = arith.constant 0 : index
    %213 = vector.load %arg4[%c9_295, %c0_296] : memref<128x16xf32, #tpu.memory_space<vmem>>, vector<1x16xf32>
    tpu.vector_store %arg4[%c9_295, %c0_296], %212 {strides = array<i32>} : memref<128x16xf32, #tpu.memory_space<vmem>>, vector<1x16xf32>,
    %c2_297 = arith.constant 2 : index
    %c32_298 = arith.constant 32 : index
    %214 = vector.load %arg3[%c2_297, %c32_298] : memref<16x64xf32, #tpu.memory_space<vmem>>, vector<1x16xf32>
    %c10_299 = arith.constant 10 : index
    %c0_300 = arith.constant 0 : index
    %215 = vector.load %arg4[%c10_299, %c0_300] : memref<128x16xf32, #tpu.memory_space<vmem>>, vector<1x16xf32>
    tpu.vector_store %arg4[%c10_299, %c0_300], %214 {strides = array<i32>} : memref<128x16xf32, #tpu.memory_space<vmem>>, vector<1x16xf32>,
    %c2_301 = arith.constant 2 : index
    %c48_302 = arith.constant 48 : index
    %216 = vector.load %arg3[%c2_301, %c48_302] : memref<16x64xf32, #tpu.memory_space<vmem>>, vector<1x16xf32>
    %c11_303 = arith.constant 11 : index
    %c0_304 = arith.constant 0 : index
    %217 = vector.load %arg4[%c11_303, %c0_304] : memref<128x16xf32, #tpu.memory_space<vmem>>, vector<1x16xf32>
    tpu.vector_store %arg4[%c11_303, %c0_304], %216 {strides = array<i32>} : memref<128x16xf32, #tpu.memory_space<vmem>>, vector<1x16xf32>,
    %c3_305 = arith.constant 3 : index
    %c0_306 = arith.constant 0 : index
    %218 = vector.load %arg3[%c3_305, %c0_306] : memref<16x64xf32, #tpu.memory_space<vmem>>, vector<1x16xf32>
    %c12_307 = arith.constant 12 : index
    %c0_308 = arith.constant 0 : index
    %219 = vector.load %arg4[%c12_307, %c0_308] : memref<128x16xf32, #tpu.memory_space<vmem>>, vector<1x16xf32>
    tpu.vector_store %arg4[%c12_307, %c0_308], %218 {strides = array<i32>} : memref<128x16xf32, #tpu.memory_space<vmem>>, vector<1x16xf32>,
    %c3_309 = arith.constant 3 : index
    %c16_310 = arith.constant 16 : index
    %220 = vector.load %arg3[%c3_309, %c16_310] : memref<16x64xf32, #tpu.memory_space<vmem>>, vector<1x16xf32>
    %c13_311 = arith.constant 13 : index
    %c0_312 = arith.constant 0 : index
    %221 = vector.load %arg4[%c13_311, %c0_312] : memref<128x16xf32, #tpu.memory_space<vmem>>, vector<1x16xf32>
    tpu.vector_store %arg4[%c13_311, %c0_312], %220 {strides = array<i32>} : memref<128x16xf32, #tpu.memory_space<vmem>>, vector<1x16xf32>,
    %c3_313 = arith.constant 3 : index
    %c32_314 = arith.constant 32 : index
    %222 = vector.load %arg3[%c3_313, %c32_314] : memref<16x64xf32, #tpu.memory_space<vmem>>, vector<1x16xf32>
    %c14_315 = arith.constant 14 : index
    %c0_316 = arith.constant 0 : index
    %223 = vector.load %arg4[%c14_315, %c0_316] : memref<128x16xf32, #tpu.memory_space<vmem>>, vector<1x16xf32>
    tpu.vector_store %arg4[%c14_315, %c0_316], %222 {strides = array<i32>} : memref<128x16xf32, #tpu.memory_space<vmem>>, vector<1x16xf32>,
    %c3_317 = arith.constant 3 : index
    %c48_318 = arith.constant 48 : index
    %224 = vector.load %arg3[%c3_317, %c48_318] : memref<16x64xf32, #tpu.memory_space<vmem>>, vector<1x16xf32>
    %c15_319 = arith.constant 15 : index
    %c0_320 = arith.constant 0 : index
    %225 = vector.load %arg4[%c15_319, %c0_320] : memref<128x16xf32, #tpu.memory_space<vmem>>, vector<1x16xf32>
    tpu.vector_store %arg4[%c15_319, %c0_320], %224 {strides = array<i32>} : memref<128x16xf32, #tpu.memory_space<vmem>>, vector<1x16xf32>,
    %c4_321 = arith.constant 4 : index
    %c0_322 = arith.constant 0 : index
    %226 = vector.load %arg3[%c4_321, %c0_322] : memref<16x64xf32, #tpu.memory_space<vmem>>, vector<1x16xf32>
    %c16_323 = arith.constant 16 : index
    %c0_324 = arith.constant 0 : index
    %227 = vector.load %arg4[%c16_323, %c0_324] : memref<128x16xf32, #tpu.memory_space<vmem>>, vector<1x16xf32>
    tpu.vector_store %arg4[%c16_323, %c0_324], %226 {strides = array<i32>} : memref<128x16xf32, #tpu.memory_space<vmem>>, vector<1x16xf32>,
    %c4_325 = arith.constant 4 : index
    %c16_326 = arith.constant 16 : index
    %228 = vector.load %arg3[%c4_325, %c16_326] : memref<16x64xf32, #tpu.memory_space<vmem>>, vector<1x16xf32>
    %c17_327 = arith.constant 17 : index
    %c0_328 = arith.constant 0 : index
    %229 = vector.load %arg4[%c17_327, %c0_328] : memref<128x16xf32, #tpu.memory_space<vmem>>, vector<1x16xf32>
    tpu.vector_store %arg4[%c17_327, %c0_328], %228 {strides = array<i32>} : memref<128x16xf32, #tpu.memory_space<vmem>>, vector<1x16xf32>,
    %c4_329 = arith.constant 4 : index
    %c32_330 = arith.constant 32 : index
    %230 = vector.load %arg3[%c4_329, %c32_330] : memref<16x64xf32, #tpu.memory_space<vmem>>, vector<1x16xf32>
    %c18_331 = arith.constant 18 : index
    %c0_332 = arith.constant 0 : index
    %231 = vector.load %arg4[%c18_331, %c0_332] : memref<128x16xf32, #tpu.memory_space<vmem>>, vector<1x16xf32>
    tpu.vector_store %arg4[%c18_331, %c0_332], %230 {strides = array<i32>} : memref<128x16xf32, #tpu.memory_space<vmem>>, vector<1x16xf32>,
    %c4_333 = arith.constant 4 : index
    %c48_334 = arith.constant 48 : index
    %232 = vector.load %arg3[%c4_333, %c48_334] : memref<16x64xf32, #tpu.memory_space<vmem>>, vector<1x16xf32>
    %c19_335 = arith.constant 19 : index
    %c0_336 = arith.constant 0 : index
    %233 = vector.load %arg4[%c19_335, %c0_336] : memref<128x16xf32, #tpu.memory_space<vmem>>, vector<1x16xf32>
    tpu.vector_store %arg4[%c19_335, %c0_336], %232 {strides = array<i32>} : memref<128x16xf32, #tpu.memory_space<vmem>>, vector<1x16xf32>,
    %c5_337 = arith.constant 5 : index
    %c0_338 = arith.constant 0 : index
    %234 = vector.load %arg3[%c5_337, %c0_338] : memref<16x64xf32, #tpu.memory_space<vmem>>, vector<1x16xf32>
    %c20_339 = arith.constant 20 : index
    %c0_340 = arith.constant 0 : index
    %235 = vector.load %arg4[%c20_339, %c0_340] : memref<128x16xf32, #tpu.memory_space<vmem>>, vector<1x16xf32>
    tpu.vector_store %arg4[%c20_339, %c0_340], %234 {strides = array<i32>} : memref<128x16xf32, #tpu.memory_space<vmem>>, vector<1x16xf32>,
    %c5_341 = arith.constant 5 : index
    %c16_342 = arith.constant 16 : index
    %236 = vector.load %arg3[%c5_341, %c16_342] : memref<16x64xf32, #tpu.memory_space<vmem>>, vector<1x16xf32>
    %c21_343 = arith.constant 21 : index
    %c0_344 = arith.constant 0 : index
    %237 = vector.load %arg4[%c21_343, %c0_344] : memref<128x16xf32, #tpu.memory_space<vmem>>, vector<1x16xf32>
    tpu.vector_store %arg4[%c21_343, %c0_344], %236 {strides = array<i32>} : memref<128x16xf32, #tpu.memory_space<vmem>>, vector<1x16xf32>,
    %c5_345 = arith.constant 5 : index
    %c32_346 = arith.constant 32 : index
    %238 = vector.load %arg3[%c5_345, %c32_346] : memref<16x64xf32, #tpu.memory_space<vmem>>, vector<1x16xf32>
    %c22_347 = arith.constant 22 : index
    %c0_348 = arith.constant 0 : index
    %239 = vector.load %arg4[%c22_347, %c0_348] : memref<128x16xf32, #tpu.memory_space<vmem>>, vector<1x16xf32>
    tpu.vector_store %arg4[%c22_347, %c0_348], %238 {strides = array<i32>} : memref<128x16xf32, #tpu.memory_space<vmem>>, vector<1x16xf32>,
    %c5_349 = arith.constant 5 : index
    %c48_350 = arith.constant 48 : index
    %240 = vector.load %arg3[%c5_349, %c48_350] : memref<16x64xf32, #tpu.memory_space<vmem>>, vector<1x16xf32>
    %c23_351 = arith.constant 23 : index
    %c0_352 = arith.constant 0 : index
    %241 = vector.load %arg4[%c23_351, %c0_352] : memref<128x16xf32, #tpu.memory_space<vmem>>, vector<1x16xf32>
    tpu.vector_store %arg4[%c23_351, %c0_352], %240 {strides = array<i32>} : memref<128x16xf32, #tpu.memory_space<vmem>>, vector<1x16xf32>,
    %c6_353 = arith.constant 6 : index
    %c0_354 = arith.constant 0 : index
    %242 = vector.load %arg3[%c6_353, %c0_354] : memref<16x64xf32, #tpu.memory_space<vmem>>, vector<1x16xf32>
    %c24_355 = arith.constant 24 : index
    %c0_356 = arith.constant 0 : index
    %243 = vector.load %arg4[%c24_355, %c0_356] : memref<128x16xf32, #tpu.memory_space<vmem>>, vector<1x16xf32>
    tpu.vector_store %arg4[%c24_355, %c0_356], %242 {strides = array<i32>} : memref<128x16xf32, #tpu.memory_space<vmem>>, vector<1x16xf32>,
    %c6_357 = arith.constant 6 : index
    %c16_358 = arith.constant 16 : index
    %244 = vector.load %arg3[%c6_357, %c16_358] : memref<16x64xf32, #tpu.memory_space<vmem>>, vector<1x16xf32>
    %c25_359 = arith.constant 25 : index
    %c0_360 = arith.constant 0 : index
    %245 = vector.load %arg4[%c25_359, %c0_360] : memref<128x16xf32, #tpu.memory_space<vmem>>, vector<1x16xf32>
    tpu.vector_store %arg4[%c25_359, %c0_360], %244 {strides = array<i32>} : memref<128x16xf32, #tpu.memory_space<vmem>>, vector<1x16xf32>,
    %c6_361 = arith.constant 6 : index
    %c32_362 = arith.constant 32 : index
    %246 = vector.load %arg3[%c6_361, %c32_362] : memref<16x64xf32, #tpu.memory_space<vmem>>, vector<1x16xf32>
    %c26_363 = arith.constant 26 : index
    %c0_364 = arith.constant 0 : index
    %247 = vector.load %arg4[%c26_363, %c0_364] : memref<128x16xf32, #tpu.memory_space<vmem>>, vector<1x16xf32>
    tpu.vector_store %arg4[%c26_363, %c0_364], %246 {strides = array<i32>} : memref<128x16xf32, #tpu.memory_space<vmem>>, vector<1x16xf32>,
    %c6_365 = arith.constant 6 : index
    %c48_366 = arith.constant 48 : index
    %248 = vector.load %arg3[%c6_365, %c48_366] : memref<16x64xf32, #tpu.memory_space<vmem>>, vector<1x16xf32>
    %c27_367 = arith.constant 27 : index
    %c0_368 = arith.constant 0 : index
    %249 = vector.load %arg4[%c27_367, %c0_368] : memref<128x16xf32, #tpu.memory_space<vmem>>, vector<1x16xf32>
    tpu.vector_store %arg4[%c27_367, %c0_368], %248 {strides = array<i32>} : memref<128x16xf32, #tpu.memory_space<vmem>>, vector<1x16xf32>,
    %c7_369 = arith.constant 7 : index
    %c0_370 = arith.constant 0 : index
    %250 = vector.load %arg3[%c7_369, %c0_370] : memref<16x64xf32, #tpu.memory_space<vmem>>, vector<1x16xf32>
    %c28_371 = arith.constant 28 : index
    %c0_372 = arith.constant 0 : index
    %251 = vector.load %arg4[%c28_371, %c0_372] : memref<128x16xf32, #tpu.memory_space<vmem>>, vector<1x16xf32>
    tpu.vector_store %arg4[%c28_371, %c0_372], %250 {strides = array<i32>} : memref<128x16xf32, #tpu.memory_space<vmem>>, vector<1x16xf32>,
    %c7_373 = arith.constant 7 : index
    %c16_374 = arith.constant 16 : index
    %252 = vector.load %arg3[%c7_373, %c16_374] : memref<16x64xf32, #tpu.memory_space<vmem>>, vector<1x16xf32>
    %c29_375 = arith.constant 29 : index
    %c0_376 = arith.constant 0 : index
    %253 = vector.load %arg4[%c29_375, %c0_376] : memref<128x16xf32, #tpu.memory_space<vmem>>, vector<1x16xf32>
    tpu.vector_store %arg4[%c29_375, %c0_376], %252 {strides = array<i32>} : memref<128x16xf32, #tpu.memory_space<vmem>>, vector<1x16xf32>,
    %c7_377 = arith.constant 7 : index
    %c32_378 = arith.constant 32 : index
    %254 = vector.load %arg3[%c7_377, %c32_378] : memref<16x64xf32, #tpu.memory_space<vmem>>, vector<1x16xf32>
    %c30_379 = arith.constant 30 : index
    %c0_380 = arith.constant 0 : index
    %255 = vector.load %arg4[%c30_379, %c0_380] : memref<128x16xf32, #tpu.memory_space<vmem>>, vector<1x16xf32>
    tpu.vector_store %arg4[%c30_379, %c0_380], %254 {strides = array<i32>} : memref<128x16xf32, #tpu.memory_space<vmem>>, vector<1x16xf32>,
    %c7_381 = arith.constant 7 : index
    %c48_382 = arith.constant 48 : index
    %256 = vector.load %arg3[%c7_381, %c48_382] : memref<16x64xf32, #tpu.memory_space<vmem>>, vector<1x16xf32>
    %c31_383 = arith.constant 31 : index
    %c0_384 = arith.constant 0 : index
    %257 = vector.load %arg4[%c31_383, %c0_384] : memref<128x16xf32, #tpu.memory_space<vmem>>, vector<1x16xf32>
    tpu.vector_store %arg4[%c31_383, %c0_384], %256 {strides = array<i32>} : memref<128x16xf32, #tpu.memory_space<vmem>>, vector<1x16xf32>,
    %c8_385 = arith.constant 8 : index
    %c0_386 = arith.constant 0 : index
    %258 = vector.load %arg3[%c8_385, %c0_386] : memref<16x64xf32, #tpu.memory_space<vmem>>, vector<1x16xf32>
    %c32_387 = arith.constant 32 : index
    %c0_388 = arith.constant 0 : index
    %259 = vector.load %arg4[%c32_387, %c0_388] : memref<128x16xf32, #tpu.memory_space<vmem>>, vector<1x16xf32>
    tpu.vector_store %arg4[%c32_387, %c0_388], %258 {strides = array<i32>} : memref<128x16xf32, #tpu.memory_space<vmem>>, vector<1x16xf32>,
    %c8_389 = arith.constant 8 : index
    %c16_390 = arith.constant 16 : index
    %260 = vector.load %arg3[%c8_389, %c16_390] : memref<16x64xf32, #tpu.memory_space<vmem>>, vector<1x16xf32>
    %c33_391 = arith.constant 33 : index
    %c0_392 = arith.constant 0 : index
    %261 = vector.load %arg4[%c33_391, %c0_392] : memref<128x16xf32, #tpu.memory_space<vmem>>, vector<1x16xf32>
    tpu.vector_store %arg4[%c33_391, %c0_392], %260 {strides = array<i32>} : memref<128x16xf32, #tpu.memory_space<vmem>>, vector<1x16xf32>,
    %c8_393 = arith.constant 8 : index
    %c32_394 = arith.constant 32 : index
    %262 = vector.load %arg3[%c8_393, %c32_394] : memref<16x64xf32, #tpu.memory_space<vmem>>, vector<1x16xf32>
    %c34_395 = arith.constant 34 : index
    %c0_396 = arith.constant 0 : index
    %263 = vector.load %arg4[%c34_395, %c0_396] : memref<128x16xf32, #tpu.memory_space<vmem>>, vector<1x16xf32>
    tpu.vector_store %arg4[%c34_395, %c0_396], %262 {strides = array<i32>} : memref<128x16xf32, #tpu.memory_space<vmem>>, vector<1x16xf32>,
    %c8_397 = arith.constant 8 : index
    %c48_398 = arith.constant 48 : index
    %264 = vector.load %arg3[%c8_397, %c48_398] : memref<16x64xf32, #tpu.memory_space<vmem>>, vector<1x16xf32>
    %c35_399 = arith.constant 35 : index
    %c0_400 = arith.constant 0 : index
    %265 = vector.load %arg4[%c35_399, %c0_400] : memref<128x16xf32, #tpu.memory_space<vmem>>, vector<1x16xf32>
    tpu.vector_store %arg4[%c35_399, %c0_400], %264 {strides = array<i32>} : memref<128x16xf32, #tpu.memory_space<vmem>>, vector<1x16xf32>,
    %c9_401 = arith.constant 9 : index
    %c0_402 = arith.constant 0 : index
    %266 = vector.load %arg3[%c9_401, %c0_402] : memref<16x64xf32, #tpu.memory_space<vmem>>, vector<1x16xf32>
    %c36_403 = arith.constant 36 : index
    %c0_404 = arith.constant 0 : index
    %267 = vector.load %arg4[%c36_403, %c0_404] : memref<128x16xf32, #tpu.memory_space<vmem>>, vector<1x16xf32>
    tpu.vector_store %arg4[%c36_403, %c0_404], %266 {strides = array<i32>} : memref<128x16xf32, #tpu.memory_space<vmem>>, vector<1x16xf32>,
    %c9_405 = arith.constant 9 : index
    %c16_406 = arith.constant 16 : index
    %268 = vector.load %arg3[%c9_405, %c16_406] : memref<16x64xf32, #tpu.memory_space<vmem>>, vector<1x16xf32>
    %c37_407 = arith.constant 37 : index
    %c0_408 = arith.constant 0 : index
    %269 = vector.load %arg4[%c37_407, %c0_408] : memref<128x16xf32, #tpu.memory_space<vmem>>, vector<1x16xf32>
    tpu.vector_store %arg4[%c37_407, %c0_408], %268 {strides = array<i32>} : memref<128x16xf32, #tpu.memory_space<vmem>>, vector<1x16xf32>,
    %c9_409 = arith.constant 9 : index
    %c32_410 = arith.constant 32 : index
    %270 = vector.load %arg3[%c9_409, %c32_410] : memref<16x64xf32, #tpu.memory_space<vmem>>, vector<1x16xf32>
    %c38_411 = arith.constant 38 : index
    %c0_412 = arith.constant 0 : index
    %271 = vector.load %arg4[%c38_411, %c0_412] : memref<128x16xf32, #tpu.memory_space<vmem>>, vector<1x16xf32>
    tpu.vector_store %arg4[%c38_411, %c0_412], %270 {strides = array<i32>} : memref<128x16xf32, #tpu.memory_space<vmem>>, vector<1x16xf32>,
    %c9_413 = arith.constant 9 : index
    %c48_414 = arith.constant 48 : index
    %272 = vector.load %arg3[%c9_413, %c48_414] : memref<16x64xf32, #tpu.memory_space<vmem>>, vector<1x16xf32>
    %c39_415 = arith.constant 39 : index
    %c0_416 = arith.constant 0 : index
    %273 = vector.load %arg4[%c39_415, %c0_416] : memref<128x16xf32, #tpu.memory_space<vmem>>, vector<1x16xf32>
    tpu.vector_store %arg4[%c39_415, %c0_416], %272 {strides = array<i32>} : memref<128x16xf32, #tpu.memory_space<vmem>>, vector<1x16xf32>,
    %c10_417 = arith.constant 10 : index
    %c0_418 = arith.constant 0 : index
    %274 = vector.load %arg3[%c10_417, %c0_418] : memref<16x64xf32, #tpu.memory_space<vmem>>, vector<1x16xf32>
    %c40_419 = arith.constant 40 : index
    %c0_420 = arith.constant 0 : index
    %275 = vector.load %arg4[%c40_419, %c0_420] : memref<128x16xf32, #tpu.memory_space<vmem>>, vector<1x16xf32>
    tpu.vector_store %arg4[%c40_419, %c0_420], %274 {strides = array<i32>} : memref<128x16xf32, #tpu.memory_space<vmem>>, vector<1x16xf32>,
    %c10_421 = arith.constant 10 : index
    %c16_422 = arith.constant 16 : index
    %276 = vector.load %arg3[%c10_421, %c16_422] : memref<16x64xf32, #tpu.memory_space<vmem>>, vector<1x16xf32>
    %c41_423 = arith.constant 41 : index
    %c0_424 = arith.constant 0 : index
    %277 = vector.load %arg4[%c41_423, %c0_424] : memref<128x16xf32, #tpu.memory_space<vmem>>, vector<1x16xf32>
    tpu.vector_store %arg4[%c41_423, %c0_424], %276 {strides = array<i32>} : memref<128x16xf32, #tpu.memory_space<vmem>>, vector<1x16xf32>,
    %c10_425 = arith.constant 10 : index
    %c32_426 = arith.constant 32 : index
    %278 = vector.load %arg3[%c10_425, %c32_426] : memref<16x64xf32, #tpu.memory_space<vmem>>, vector<1x16xf32>
    %c42_427 = arith.constant 42 : index
    %c0_428 = arith.constant 0 : index
    %279 = vector.load %arg4[%c42_427, %c0_428] : memref<128x16xf32, #tpu.memory_space<vmem>>, vector<1x16xf32>
    tpu.vector_store %arg4[%c42_427, %c0_428], %278 {strides = array<i32>} : memref<128x16xf32, #tpu.memory_space<vmem>>, vector<1x16xf32>,
    %c10_429 = arith.constant 10 : index
    %c48_430 = arith.constant 48 : index
    %280 = vector.load %arg3[%c10_429, %c48_430] : memref<16x64xf32, #tpu.memory_space<vmem>>, vector<1x16xf32>
    %c43_431 = arith.constant 43 : index
    %c0_432 = arith.constant 0 : index
    %281 = vector.load %arg4[%c43_431, %c0_432] : memref<128x16xf32, #tpu.memory_space<vmem>>, vector<1x16xf32>
    tpu.vector_store %arg4[%c43_431, %c0_432], %280 {strides = array<i32>} : memref<128x16xf32, #tpu.memory_space<vmem>>, vector<1x16xf32>,
    %c11_433 = arith.constant 11 : index
    %c0_434 = arith.constant 0 : index
    %282 = vector.load %arg3[%c11_433, %c0_434] : memref<16x64xf32, #tpu.memory_space<vmem>>, vector<1x16xf32>
    %c44_435 = arith.constant 44 : index
    %c0_436 = arith.constant 0 : index
    %283 = vector.load %arg4[%c44_435, %c0_436] : memref<128x16xf32, #tpu.memory_space<vmem>>, vector<1x16xf32>
    tpu.vector_store %arg4[%c44_435, %c0_436], %282 {strides = array<i32>} : memref<128x16xf32, #tpu.memory_space<vmem>>, vector<1x16xf32>,
    %c11_437 = arith.constant 11 : index
    %c16_438 = arith.constant 16 : index
    %284 = vector.load %arg3[%c11_437, %c16_438] : memref<16x64xf32, #tpu.memory_space<vmem>>, vector<1x16xf32>
    %c45_439 = arith.constant 45 : index
    %c0_440 = arith.constant 0 : index
    %285 = vector.load %arg4[%c45_439, %c0_440] : memref<128x16xf32, #tpu.memory_space<vmem>>, vector<1x16xf32>
    tpu.vector_store %arg4[%c45_439, %c0_440], %284 {strides = array<i32>} : memref<128x16xf32, #tpu.memory_space<vmem>>, vector<1x16xf32>,
    %c11_441 = arith.constant 11 : index
    %c32_442 = arith.constant 32 : index
    %286 = vector.load %arg3[%c11_441, %c32_442] : memref<16x64xf32, #tpu.memory_space<vmem>>, vector<1x16xf32>
    %c46_443 = arith.constant 46 : index
    %c0_444 = arith.constant 0 : index
    %287 = vector.load %arg4[%c46_443, %c0_444] : memref<128x16xf32, #tpu.memory_space<vmem>>, vector<1x16xf32>
    tpu.vector_store %arg4[%c46_443, %c0_444], %286 {strides = array<i32>} : memref<128x16xf32, #tpu.memory_space<vmem>>, vector<1x16xf32>,
    %c11_445 = arith.constant 11 : index
    %c48_446 = arith.constant 48 : index
    %288 = vector.load %arg3[%c11_445, %c48_446] : memref<16x64xf32, #tpu.memory_space<vmem>>, vector<1x16xf32>
    %c47_447 = arith.constant 47 : index
    %c0_448 = arith.constant 0 : index
    %289 = vector.load %arg4[%c47_447, %c0_448] : memref<128x16xf32, #tpu.memory_space<vmem>>, vector<1x16xf32>
    tpu.vector_store %arg4[%c47_447, %c0_448], %288 {strides = array<i32>} : memref<128x16xf32, #tpu.memory_space<vmem>>, vector<1x16xf32>,
    %c12_449 = arith.constant 12 : index
    %c0_450 = arith.constant 0 : index
    %290 = vector.load %arg3[%c12_449, %c0_450] : memref<16x64xf32, #tpu.memory_space<vmem>>, vector<1x16xf32>
    %c48_451 = arith.constant 48 : index
    %c0_452 = arith.constant 0 : index
    %291 = vector.load %arg4[%c48_451, %c0_452] : memref<128x16xf32, #tpu.memory_space<vmem>>, vector<1x16xf32>
    tpu.vector_store %arg4[%c48_451, %c0_452], %290 {strides = array<i32>} : memref<128x16xf32, #tpu.memory_space<vmem>>, vector<1x16xf32>,
    %c12_453 = arith.constant 12 : index
    %c16_454 = arith.constant 16 : index
    %292 = vector.load %arg3[%c12_453, %c16_454] : memref<16x64xf32, #tpu.memory_space<vmem>>, vector<1x16xf32>
    %c49_455 = arith.constant 49 : index
    %c0_456 = arith.constant 0 : index
    %293 = vector.load %arg4[%c49_455, %c0_456] : memref<128x16xf32, #tpu.memory_space<vmem>>, vector<1x16xf32>
    tpu.vector_store %arg4[%c49_455, %c0_456], %292 {strides = array<i32>} : memref<128x16xf32, #tpu.memory_space<vmem>>, vector<1x16xf32>,
    %c12_457 = arith.constant 12 : index
    %c32_458 = arith.constant 32 : index
    %294 = vector.load %arg3[%c12_457, %c32_458] : memref<16x64xf32, #tpu.memory_space<vmem>>, vector<1x16xf32>
    %c50_459 = arith.constant 50 : index
    %c0_460 = arith.constant 0 : index
    %295 = vector.load %arg4[%c50_459, %c0_460] : memref<128x16xf32, #tpu.memory_space<vmem>>, vector<1x16xf32>
    tpu.vector_store %arg4[%c50_459, %c0_460], %294 {strides = array<i32>} : memref<128x16xf32, #tpu.memory_space<vmem>>, vector<1x16xf32>,
    %c12_461 = arith.constant 12 : index
    %c48_462 = arith.constant 48 : index
    %296 = vector.load %arg3[%c12_461, %c48_462] : memref<16x64xf32, #tpu.memory_space<vmem>>, vector<1x16xf32>
    %c51_463 = arith.constant 51 : index
    %c0_464 = arith.constant 0 : index
    %297 = vector.load %arg4[%c51_463, %c0_464] : memref<128x16xf32, #tpu.memory_space<vmem>>, vector<1x16xf32>
    tpu.vector_store %arg4[%c51_463, %c0_464], %296 {strides = array<i32>} : memref<128x16xf32, #tpu.memory_space<vmem>>, vector<1x16xf32>,
    %c13_465 = arith.constant 13 : index
    %c0_466 = arith.constant 0 : index
    %298 = vector.load %arg3[%c13_465, %c0_466] : memref<16x64xf32, #tpu.memory_space<vmem>>, vector<1x16xf32>
    %c52_467 = arith.constant 52 : index
    %c0_468 = arith.constant 0 : index
    %299 = vector.load %arg4[%c52_467, %c0_468] : memref<128x16xf32, #tpu.memory_space<vmem>>, vector<1x16xf32>
    tpu.vector_store %arg4[%c52_467, %c0_468], %298 {strides = array<i32>} : memref<128x16xf32, #tpu.memory_space<vmem>>, vector<1x16xf32>,
    %c13_469 = arith.constant 13 : index
    %c16_470 = arith.constant 16 : index
    %300 = vector.load %arg3[%c13_469, %c16_470] : memref<16x64xf32, #tpu.memory_space<vmem>>, vector<1x16xf32>
    %c53_471 = arith.constant 53 : index
    %c0_472 = arith.constant 0 : index
    %301 = vector.load %arg4[%c53_471, %c0_472] : memref<128x16xf32, #tpu.memory_space<vmem>>, vector<1x16xf32>
    tpu.vector_store %arg4[%c53_471, %c0_472], %300 {strides = array<i32>} : memref<128x16xf32, #tpu.memory_space<vmem>>, vector<1x16xf32>,
    %c13_473 = arith.constant 13 : index
    %c32_474 = arith.constant 32 : index
    %302 = vector.load %arg3[%c13_473, %c32_474] : memref<16x64xf32, #tpu.memory_space<vmem>>, vector<1x16xf32>
    %c54_475 = arith.constant 54 : index
    %c0_476 = arith.constant 0 : index
    %303 = vector.load %arg4[%c54_475, %c0_476] : memref<128x16xf32, #tpu.memory_space<vmem>>, vector<1x16xf32>
    tpu.vector_store %arg4[%c54_475, %c0_476], %302 {strides = array<i32>} : memref<128x16xf32, #tpu.memory_space<vmem>>, vector<1x16xf32>,
    %c13_477 = arith.constant 13 : index
    %c48_478 = arith.constant 48 : index
    %304 = vector.load %arg3[%c13_477, %c48_478] : memref<16x64xf32, #tpu.memory_space<vmem>>, vector<1x16xf32>
    %c55_479 = arith.constant 55 : index
    %c0_480 = arith.constant 0 : index
    %305 = vector.load %arg4[%c55_479, %c0_480] : memref<128x16xf32, #tpu.memory_space<vmem>>, vector<1x16xf32>
    tpu.vector_store %arg4[%c55_479, %c0_480], %304 {strides = array<i32>} : memref<128x16xf32, #tpu.memory_space<vmem>>, vector<1x16xf32>,
    %c14_481 = arith.constant 14 : index
    %c0_482 = arith.constant 0 : index
    %306 = vector.load %arg3[%c14_481, %c0_482] : memref<16x64xf32, #tpu.memory_space<vmem>>, vector<1x16xf32>
    %c56_483 = arith.constant 56 : index
    %c0_484 = arith.constant 0 : index
    %307 = vector.load %arg4[%c56_483, %c0_484] : memref<128x16xf32, #tpu.memory_space<vmem>>, vector<1x16xf32>
    tpu.vector_store %arg4[%c56_483, %c0_484], %306 {strides = array<i32>} : memref<128x16xf32, #tpu.memory_space<vmem>>, vector<1x16xf32>,
    %c14_485 = arith.constant 14 : index
    %c16_486 = arith.constant 16 : index
    %308 = vector.load %arg3[%c14_485, %c16_486] : memref<16x64xf32, #tpu.memory_space<vmem>>, vector<1x16xf32>
    %c57_487 = arith.constant 57 : index
    %c0_488 = arith.constant 0 : index
    %309 = vector.load %arg4[%c57_487, %c0_488] : memref<128x16xf32, #tpu.memory_space<vmem>>, vector<1x16xf32>
    tpu.vector_store %arg4[%c57_487, %c0_488], %308 {strides = array<i32>} : memref<128x16xf32, #tpu.memory_space<vmem>>, vector<1x16xf32>,
    %c14_489 = arith.constant 14 : index
    %c32_490 = arith.constant 32 : index
    %310 = vector.load %arg3[%c14_489, %c32_490] : memref<16x64xf32, #tpu.memory_space<vmem>>, vector<1x16xf32>
    %c58_491 = arith.constant 58 : index
    %c0_492 = arith.constant 0 : index
    %311 = vector.load %arg4[%c58_491, %c0_492] : memref<128x16xf32, #tpu.memory_space<vmem>>, vector<1x16xf32>
    tpu.vector_store %arg4[%c58_491, %c0_492], %310 {strides = array<i32>} : memref<128x16xf32, #tpu.memory_space<vmem>>, vector<1x16xf32>,
    %c14_493 = arith.constant 14 : index
    %c48_494 = arith.constant 48 : index
    %312 = vector.load %arg3[%c14_493, %c48_494] : memref<16x64xf32, #tpu.memory_space<vmem>>, vector<1x16xf32>
    %c59_495 = arith.constant 59 : index
    %c0_496 = arith.constant 0 : index
    %313 = vector.load %arg4[%c59_495, %c0_496] : memref<128x16xf32, #tpu.memory_space<vmem>>, vector<1x16xf32>
    tpu.vector_store %arg4[%c59_495, %c0_496], %312 {strides = array<i32>} : memref<128x16xf32, #tpu.memory_space<vmem>>, vector<1x16xf32>,
    %c15_497 = arith.constant 15 : index
    %c0_498 = arith.constant 0 : index
    %314 = vector.load %arg3[%c15_497, %c0_498] : memref<16x64xf32, #tpu.memory_space<vmem>>, vector<1x16xf32>
    %c60_499 = arith.constant 60 : index
    %c0_500 = arith.constant 0 : index
    %315 = vector.load %arg4[%c60_499, %c0_500] : memref<128x16xf32, #tpu.memory_space<vmem>>, vector<1x16xf32>
    tpu.vector_store %arg4[%c60_499, %c0_500], %314 {strides = array<i32>} : memref<128x16xf32, #tpu.memory_space<vmem>>, vector<1x16xf32>,
    %c15_501 = arith.constant 15 : index
    %c16_502 = arith.constant 16 : index
    %316 = vector.load %arg3[%c15_501, %c16_502] : memref<16x64xf32, #tpu.memory_space<vmem>>, vector<1x16xf32>
    %c61_503 = arith.constant 61 : index
    %c0_504 = arith.constant 0 : index
    %317 = vector.load %arg4[%c61_503, %c0_504] : memref<128x16xf32, #tpu.memory_space<vmem>>, vector<1x16xf32>
    tpu.vector_store %arg4[%c61_503, %c0_504], %316 {strides = array<i32>} : memref<128x16xf32, #tpu.memory_space<vmem>>, vector<1x16xf32>,
    %c15_505 = arith.constant 15 : index
    %c32_506 = arith.constant 32 : index
    %318 = vector.load %arg3[%c15_505, %c32_506] : memref<16x64xf32, #tpu.memory_space<vmem>>, vector<1x16xf32>
    %c62_507 = arith.constant 62 : index
    %c0_508 = arith.constant 0 : index
    %319 = vector.load %arg4[%c62_507, %c0_508] : memref<128x16xf32, #tpu.memory_space<vmem>>, vector<1x16xf32>
    tpu.vector_store %arg4[%c62_507, %c0_508], %318 {strides = array<i32>} : memref<128x16xf32, #tpu.memory_space<vmem>>, vector<1x16xf32>,
    %c15_509 = arith.constant 15 : index
    %c48_510 = arith.constant 48 : index
    %320 = vector.load %arg3[%c15_509, %c48_510] : memref<16x64xf32, #tpu.memory_space<vmem>>, vector<1x16xf32>
    %c63_511 = arith.constant 63 : index
    %c0_512 = arith.constant 0 : index
    %321 = vector.load %arg4[%c63_511, %c0_512] : memref<128x16xf32, #tpu.memory_space<vmem>>, vector<1x16xf32>
    tpu.vector_store %arg4[%c63_511, %c0_512], %320 {strides = array<i32>} : memref<128x16xf32, #tpu.memory_space<vmem>>, vector<1x16xf32>,
    %c0_513 = arith.constant 0 : index
    %c0_514 = arith.constant 0 : index
    %322 = vector.load %arg4[%c0_513, %c0_514] : memref<128x16xf32, #tpu.memory_space<vmem>>, vector<128x16xf32>
    %323 = tpu.transpose %322, [1, 0] : vector<128x16xf32> -> vector<16x128xf32>
    %c0_515 = arith.constant 0 : index
    %c0_516 = arith.constant 0 : index
    %c0_517 = arith.constant 0 : index
    %324 = vector.load %arg2[%c0_515, %c0_516, %c0_517] : memref<2x16x128xf32, #tpu.memory_space<vmem>>, vector<1x16x128xf32>
    %325 = vector.shape_cast %324 : vector<1x16x128xf32> to vector<16x128xf32>
    %326 = vector.shape_cast %323 : vector<16x128xf32> to vector<1x16x128xf32>
    tpu.vector_store %arg2[%c0_515, %c0_516, %c0_517], %326 {strides = array<i32>} : memref<2x16x128xf32, #tpu.memory_space<vmem>>, vector<1x16x128xf32>,
    %c64_518 = arith.constant 64 : index
    %c0_519 = arith.constant 0 : index
    %c0_520 = arith.constant 0 : index
    %327 = vector.load %arg1[%c64_518, %c0_519, %c0_520] : memref<128x4x4xf32, #tpu.memory_space<vmem>>, vector<1x4x4xf32>
    %328 = vector.shape_cast %327 : vector<1x4x4xf32> to vector<4x4xf32>
    %c0_521 = arith.constant 0 : index
    %c0_522 = arith.constant 0 : index
    %329 = vector.load %arg3[%c0_521, %c0_522] : memref<16x64xf32, #tpu.memory_space<vmem>>, vector<4x4xf32>
    tpu.vector_store %arg3[%c0_521, %c0_522], %328 {strides = array<i32>} : memref<16x64xf32, #tpu.memory_space<vmem>>, vector<4x4xf32>,
    %c65 = arith.constant 65 : index
    %c0_523 = arith.constant 0 : index
    %c0_524 = arith.constant 0 : index
    %330 = vector.load %arg1[%c65, %c0_523, %c0_524] : memref<128x4x4xf32, #tpu.memory_space<vmem>>, vector<1x4x4xf32>
    %331 = vector.shape_cast %330 : vector<1x4x4xf32> to vector<4x4xf32>
    %c0_525 = arith.constant 0 : index
    %c4_526 = arith.constant 4 : index
    %332 = vector.load %arg3[%c0_525, %c4_526] : memref<16x64xf32, #tpu.memory_space<vmem>>, vector<4x4xf32>
    tpu.vector_store %arg3[%c0_525, %c4_526], %331 {strides = array<i32>} : memref<16x64xf32, #tpu.memory_space<vmem>>, vector<4x4xf32>,
    %c66 = arith.constant 66 : index
    %c0_527 = arith.constant 0 : index
    %c0_528 = arith.constant 0 : index
    %333 = vector.load %arg1[%c66, %c0_527, %c0_528] : memref<128x4x4xf32, #tpu.memory_space<vmem>>, vector<1x4x4xf32>
    %334 = vector.shape_cast %333 : vector<1x4x4xf32> to vector<4x4xf32>
    %c0_529 = arith.constant 0 : index
    %c8_530 = arith.constant 8 : index
    %335 = vector.load %arg3[%c0_529, %c8_530] : memref<16x64xf32, #tpu.memory_space<vmem>>, vector<4x4xf32>
    tpu.vector_store %arg3[%c0_529, %c8_530], %334 {strides = array<i32>} : memref<16x64xf32, #tpu.memory_space<vmem>>, vector<4x4xf32>,
    %c67 = arith.constant 67 : index
    %c0_531 = arith.constant 0 : index
    %c0_532 = arith.constant 0 : index
    %336 = vector.load %arg1[%c67, %c0_531, %c0_532] : memref<128x4x4xf32, #tpu.memory_space<vmem>>, vector<1x4x4xf32>
    %337 = vector.shape_cast %336 : vector<1x4x4xf32> to vector<4x4xf32>
    %c0_533 = arith.constant 0 : index
    %c12_534 = arith.constant 12 : index
    %338 = vector.load %arg3[%c0_533, %c12_534] : memref<16x64xf32, #tpu.memory_space<vmem>>, vector<4x4xf32>
    tpu.vector_store %arg3[%c0_533, %c12_534], %337 {strides = array<i32>} : memref<16x64xf32, #tpu.memory_space<vmem>>, vector<4x4xf32>,
    %c68 = arith.constant 68 : index
    %c0_535 = arith.constant 0 : index
    %c0_536 = arith.constant 0 : index
    %339 = vector.load %arg1[%c68, %c0_535, %c0_536] : memref<128x4x4xf32, #tpu.memory_space<vmem>>, vector<1x4x4xf32>
    %340 = vector.shape_cast %339 : vector<1x4x4xf32> to vector<4x4xf32>
    %c4_537 = arith.constant 4 : index
    %c0_538 = arith.constant 0 : index
    %341 = vector.load %arg3[%c4_537, %c0_538] : memref<16x64xf32, #tpu.memory_space<vmem>>, vector<4x4xf32>
    tpu.vector_store %arg3[%c4_537, %c0_538], %340 {strides = array<i32>} : memref<16x64xf32, #tpu.memory_space<vmem>>, vector<4x4xf32>,
    %c69 = arith.constant 69 : index
    %c0_539 = arith.constant 0 : index
    %c0_540 = arith.constant 0 : index
    %342 = vector.load %arg1[%c69, %c0_539, %c0_540] : memref<128x4x4xf32, #tpu.memory_space<vmem>>, vector<1x4x4xf32>
    %343 = vector.shape_cast %342 : vector<1x4x4xf32> to vector<4x4xf32>
    %c4_541 = arith.constant 4 : index
    %c4_542 = arith.constant 4 : index
    %344 = vector.load %arg3[%c4_541, %c4_542] : memref<16x64xf32, #tpu.memory_space<vmem>>, vector<4x4xf32>
    tpu.vector_store %arg3[%c4_541, %c4_542], %343 {strides = array<i32>} : memref<16x64xf32, #tpu.memory_space<vmem>>, vector<4x4xf32>,
    %c70 = arith.constant 70 : index
    %c0_543 = arith.constant 0 : index
    %c0_544 = arith.constant 0 : index
    %345 = vector.load %arg1[%c70, %c0_543, %c0_544] : memref<128x4x4xf32, #tpu.memory_space<vmem>>, vector<1x4x4xf32>
    %346 = vector.shape_cast %345 : vector<1x4x4xf32> to vector<4x4xf32>
    %c4_545 = arith.constant 4 : index
    %c8_546 = arith.constant 8 : index
    %347 = vector.load %arg3[%c4_545, %c8_546] : memref<16x64xf32, #tpu.memory_space<vmem>>, vector<4x4xf32>
    tpu.vector_store %arg3[%c4_545, %c8_546], %346 {strides = array<i32>} : memref<16x64xf32, #tpu.memory_space<vmem>>, vector<4x4xf32>,
    %c71 = arith.constant 71 : index
    %c0_547 = arith.constant 0 : index
    %c0_548 = arith.constant 0 : index
    %348 = vector.load %arg1[%c71, %c0_547, %c0_548] : memref<128x4x4xf32, #tpu.memory_space<vmem>>, vector<1x4x4xf32>
    %349 = vector.shape_cast %348 : vector<1x4x4xf32> to vector<4x4xf32>
    %c4_549 = arith.constant 4 : index
    %c12_550 = arith.constant 12 : index
    %350 = vector.load %arg3[%c4_549, %c12_550] : memref<16x64xf32, #tpu.memory_space<vmem>>, vector<4x4xf32>
    tpu.vector_store %arg3[%c4_549, %c12_550], %349 {strides = array<i32>} : memref<16x64xf32, #tpu.memory_space<vmem>>, vector<4x4xf32>,
    %c72 = arith.constant 72 : index
    %c0_551 = arith.constant 0 : index
    %c0_552 = arith.constant 0 : index
    %351 = vector.load %arg1[%c72, %c0_551, %c0_552] : memref<128x4x4xf32, #tpu.memory_space<vmem>>, vector<1x4x4xf32>
    %352 = vector.shape_cast %351 : vector<1x4x4xf32> to vector<4x4xf32>
    %c8_553 = arith.constant 8 : index
    %c0_554 = arith.constant 0 : index
    %353 = vector.load %arg3[%c8_553, %c0_554] : memref<16x64xf32, #tpu.memory_space<vmem>>, vector<4x4xf32>
    tpu.vector_store %arg3[%c8_553, %c0_554], %352 {strides = array<i32>} : memref<16x64xf32, #tpu.memory_space<vmem>>, vector<4x4xf32>,
    %c73 = arith.constant 73 : index
    %c0_555 = arith.constant 0 : index
    %c0_556 = arith.constant 0 : index
    %354 = vector.load %arg1[%c73, %c0_555, %c0_556] : memref<128x4x4xf32, #tpu.memory_space<vmem>>, vector<1x4x4xf32>
    %355 = vector.shape_cast %354 : vector<1x4x4xf32> to vector<4x4xf32>
    %c8_557 = arith.constant 8 : index
    %c4_558 = arith.constant 4 : index
    %356 = vector.load %arg3[%c8_557, %c4_558] : memref<16x64xf32, #tpu.memory_space<vmem>>, vector<4x4xf32>
    tpu.vector_store %arg3[%c8_557, %c4_558], %355 {strides = array<i32>} : memref<16x64xf32, #tpu.memory_space<vmem>>, vector<4x4xf32>,
    %c74 = arith.constant 74 : index
    %c0_559 = arith.constant 0 : index
    %c0_560 = arith.constant 0 : index
    %357 = vector.load %arg1[%c74, %c0_559, %c0_560] : memref<128x4x4xf32, #tpu.memory_space<vmem>>, vector<1x4x4xf32>
    %358 = vector.shape_cast %357 : vector<1x4x4xf32> to vector<4x4xf32>
    %c8_561 = arith.constant 8 : index
    %c8_562 = arith.constant 8 : index
    %359 = vector.load %arg3[%c8_561, %c8_562] : memref<16x64xf32, #tpu.memory_space<vmem>>, vector<4x4xf32>
    tpu.vector_store %arg3[%c8_561, %c8_562], %358 {strides = array<i32>} : memref<16x64xf32, #tpu.memory_space<vmem>>, vector<4x4xf32>,
    %c75 = arith.constant 75 : index
    %c0_563 = arith.constant 0 : index
    %c0_564 = arith.constant 0 : index
    %360 = vector.load %arg1[%c75, %c0_563, %c0_564] : memref<128x4x4xf32, #tpu.memory_space<vmem>>, vector<1x4x4xf32>
    %361 = vector.shape_cast %360 : vector<1x4x4xf32> to vector<4x4xf32>
    %c8_565 = arith.constant 8 : index
    %c12_566 = arith.constant 12 : index
    %362 = vector.load %arg3[%c8_565, %c12_566] : memref<16x64xf32, #tpu.memory_space<vmem>>, vector<4x4xf32>
    tpu.vector_store %arg3[%c8_565, %c12_566], %361 {strides = array<i32>} : memref<16x64xf32, #tpu.memory_space<vmem>>, vector<4x4xf32>,
    %c76 = arith.constant 76 : index
    %c0_567 = arith.constant 0 : index
    %c0_568 = arith.constant 0 : index
    %363 = vector.load %arg1[%c76, %c0_567, %c0_568] : memref<128x4x4xf32, #tpu.memory_space<vmem>>, vector<1x4x4xf32>
    %364 = vector.shape_cast %363 : vector<1x4x4xf32> to vector<4x4xf32>
    %c12_569 = arith.constant 12 : index
    %c0_570 = arith.constant 0 : index
    %365 = vector.load %arg3[%c12_569, %c0_570] : memref<16x64xf32, #tpu.memory_space<vmem>>, vector<4x4xf32>
    tpu.vector_store %arg3[%c12_569, %c0_570], %364 {strides = array<i32>} : memref<16x64xf32, #tpu.memory_space<vmem>>, vector<4x4xf32>,
    %c77 = arith.constant 77 : index
    %c0_571 = arith.constant 0 : index
    %c0_572 = arith.constant 0 : index
    %366 = vector.load %arg1[%c77, %c0_571, %c0_572] : memref<128x4x4xf32, #tpu.memory_space<vmem>>, vector<1x4x4xf32>
    %367 = vector.shape_cast %366 : vector<1x4x4xf32> to vector<4x4xf32>
    %c12_573 = arith.constant 12 : index
    %c4_574 = arith.constant 4 : index
    %368 = vector.load %arg3[%c12_573, %c4_574] : memref<16x64xf32, #tpu.memory_space<vmem>>, vector<4x4xf32>
    tpu.vector_store %arg3[%c12_573, %c4_574], %367 {strides = array<i32>} : memref<16x64xf32, #tpu.memory_space<vmem>>, vector<4x4xf32>,
    %c78 = arith.constant 78 : index
    %c0_575 = arith.constant 0 : index
    %c0_576 = arith.constant 0 : index
    %369 = vector.load %arg1[%c78, %c0_575, %c0_576] : memref<128x4x4xf32, #tpu.memory_space<vmem>>, vector<1x4x4xf32>
    %370 = vector.shape_cast %369 : vector<1x4x4xf32> to vector<4x4xf32>
    %c12_577 = arith.constant 12 : index
    %c8_578 = arith.constant 8 : index
    %371 = vector.load %arg3[%c12_577, %c8_578] : memref<16x64xf32, #tpu.memory_space<vmem>>, vector<4x4xf32>
    tpu.vector_store %arg3[%c12_577, %c8_578], %370 {strides = array<i32>} : memref<16x64xf32, #tpu.memory_space<vmem>>, vector<4x4xf32>,
    %c79 = arith.constant 79 : index
    %c0_579 = arith.constant 0 : index
    %c0_580 = arith.constant 0 : index
    %372 = vector.load %arg1[%c79, %c0_579, %c0_580] : memref<128x4x4xf32, #tpu.memory_space<vmem>>, vector<1x4x4xf32>
    %373 = vector.shape_cast %372 : vector<1x4x4xf32> to vector<4x4xf32>
    %c12_581 = arith.constant 12 : index
    %c12_582 = arith.constant 12 : index
    %374 = vector.load %arg3[%c12_581, %c12_582] : memref<16x64xf32, #tpu.memory_space<vmem>>, vector<4x4xf32>
    tpu.vector_store %arg3[%c12_581, %c12_582], %373 {strides = array<i32>} : memref<16x64xf32, #tpu.memory_space<vmem>>, vector<4x4xf32>,
    %c80 = arith.constant 80 : index
    %c0_583 = arith.constant 0 : index
    %c0_584 = arith.constant 0 : index
    %375 = vector.load %arg1[%c80, %c0_583, %c0_584] : memref<128x4x4xf32, #tpu.memory_space<vmem>>, vector<1x4x4xf32>
    %376 = vector.shape_cast %375 : vector<1x4x4xf32> to vector<4x4xf32>
    %c0_585 = arith.constant 0 : index
    %c16_586 = arith.constant 16 : index
    %377 = vector.load %arg3[%c0_585, %c16_586] : memref<16x64xf32, #tpu.memory_space<vmem>>, vector<4x4xf32>
    tpu.vector_store %arg3[%c0_585, %c16_586], %376 {strides = array<i32>} : memref<16x64xf32, #tpu.memory_space<vmem>>, vector<4x4xf32>,
    %c81 = arith.constant 81 : index
    %c0_587 = arith.constant 0 : index
    %c0_588 = arith.constant 0 : index
    %378 = vector.load %arg1[%c81, %c0_587, %c0_588] : memref<128x4x4xf32, #tpu.memory_space<vmem>>, vector<1x4x4xf32>
    %379 = vector.shape_cast %378 : vector<1x4x4xf32> to vector<4x4xf32>
    %c0_589 = arith.constant 0 : index
    %c20_590 = arith.constant 20 : index
    %380 = vector.load %arg3[%c0_589, %c20_590] : memref<16x64xf32, #tpu.memory_space<vmem>>, vector<4x4xf32>
    tpu.vector_store %arg3[%c0_589, %c20_590], %379 {strides = array<i32>} : memref<16x64xf32, #tpu.memory_space<vmem>>, vector<4x4xf32>,
    %c82 = arith.constant 82 : index
    %c0_591 = arith.constant 0 : index
    %c0_592 = arith.constant 0 : index
    %381 = vector.load %arg1[%c82, %c0_591, %c0_592] : memref<128x4x4xf32, #tpu.memory_space<vmem>>, vector<1x4x4xf32>
    %382 = vector.shape_cast %381 : vector<1x4x4xf32> to vector<4x4xf32>
    %c0_593 = arith.constant 0 : index
    %c24_594 = arith.constant 24 : index
    %383 = vector.load %arg3[%c0_593, %c24_594] : memref<16x64xf32, #tpu.memory_space<vmem>>, vector<4x4xf32>
    tpu.vector_store %arg3[%c0_593, %c24_594], %382 {strides = array<i32>} : memref<16x64xf32, #tpu.memory_space<vmem>>, vector<4x4xf32>,
    %c83 = arith.constant 83 : index
    %c0_595 = arith.constant 0 : index
    %c0_596 = arith.constant 0 : index
    %384 = vector.load %arg1[%c83, %c0_595, %c0_596] : memref<128x4x4xf32, #tpu.memory_space<vmem>>, vector<1x4x4xf32>
    %385 = vector.shape_cast %384 : vector<1x4x4xf32> to vector<4x4xf32>
    %c0_597 = arith.constant 0 : index
    %c28_598 = arith.constant 28 : index
    %386 = vector.load %arg3[%c0_597, %c28_598] : memref<16x64xf32, #tpu.memory_space<vmem>>, vector<4x4xf32>
    tpu.vector_store %arg3[%c0_597, %c28_598], %385 {strides = array<i32>} : memref<16x64xf32, #tpu.memory_space<vmem>>, vector<4x4xf32>,
    %c84 = arith.constant 84 : index
    %c0_599 = arith.constant 0 : index
    %c0_600 = arith.constant 0 : index
    %387 = vector.load %arg1[%c84, %c0_599, %c0_600] : memref<128x4x4xf32, #tpu.memory_space<vmem>>, vector<1x4x4xf32>
    %388 = vector.shape_cast %387 : vector<1x4x4xf32> to vector<4x4xf32>
    %c4_601 = arith.constant 4 : index
    %c16_602 = arith.constant 16 : index
    %389 = vector.load %arg3[%c4_601, %c16_602] : memref<16x64xf32, #tpu.memory_space<vmem>>, vector<4x4xf32>
    tpu.vector_store %arg3[%c4_601, %c16_602], %388 {strides = array<i32>} : memref<16x64xf32, #tpu.memory_space<vmem>>, vector<4x4xf32>,
    %c85 = arith.constant 85 : index
    %c0_603 = arith.constant 0 : index
    %c0_604 = arith.constant 0 : index
    %390 = vector.load %arg1[%c85, %c0_603, %c0_604] : memref<128x4x4xf32, #tpu.memory_space<vmem>>, vector<1x4x4xf32>
    %391 = vector.shape_cast %390 : vector<1x4x4xf32> to vector<4x4xf32>
    %c4_605 = arith.constant 4 : index
    %c20_606 = arith.constant 20 : index
    %392 = vector.load %arg3[%c4_605, %c20_606] : memref<16x64xf32, #tpu.memory_space<vmem>>, vector<4x4xf32>
    tpu.vector_store %arg3[%c4_605, %c20_606], %391 {strides = array<i32>} : memref<16x64xf32, #tpu.memory_space<vmem>>, vector<4x4xf32>,
    %c86 = arith.constant 86 : index
    %c0_607 = arith.constant 0 : index
    %c0_608 = arith.constant 0 : index
    %393 = vector.load %arg1[%c86, %c0_607, %c0_608] : memref<128x4x4xf32, #tpu.memory_space<vmem>>, vector<1x4x4xf32>
    %394 = vector.shape_cast %393 : vector<1x4x4xf32> to vector<4x4xf32>
    %c4_609 = arith.constant 4 : index
    %c24_610 = arith.constant 24 : index
    %395 = vector.load %arg3[%c4_609, %c24_610] : memref<16x64xf32, #tpu.memory_space<vmem>>, vector<4x4xf32>
    tpu.vector_store %arg3[%c4_609, %c24_610], %394 {strides = array<i32>} : memref<16x64xf32, #tpu.memory_space<vmem>>, vector<4x4xf32>,
    %c87 = arith.constant 87 : index
    %c0_611 = arith.constant 0 : index
    %c0_612 = arith.constant 0 : index
    %396 = vector.load %arg1[%c87, %c0_611, %c0_612] : memref<128x4x4xf32, #tpu.memory_space<vmem>>, vector<1x4x4xf32>
    %397 = vector.shape_cast %396 : vector<1x4x4xf32> to vector<4x4xf32>
    %c4_613 = arith.constant 4 : index
    %c28_614 = arith.constant 28 : index
    %398 = vector.load %arg3[%c4_613, %c28_614] : memref<16x64xf32, #tpu.memory_space<vmem>>, vector<4x4xf32>
    tpu.vector_store %arg3[%c4_613, %c28_614], %397 {strides = array<i32>} : memref<16x64xf32, #tpu.memory_space<vmem>>, vector<4x4xf32>,
    %c88 = arith.constant 88 : index
    %c0_615 = arith.constant 0 : index
    %c0_616 = arith.constant 0 : index
    %399 = vector.load %arg1[%c88, %c0_615, %c0_616] : memref<128x4x4xf32, #tpu.memory_space<vmem>>, vector<1x4x4xf32>
    %400 = vector.shape_cast %399 : vector<1x4x4xf32> to vector<4x4xf32>
    %c8_617 = arith.constant 8 : index
    %c16_618 = arith.constant 16 : index
    %401 = vector.load %arg3[%c8_617, %c16_618] : memref<16x64xf32, #tpu.memory_space<vmem>>, vector<4x4xf32>
    tpu.vector_store %arg3[%c8_617, %c16_618], %400 {strides = array<i32>} : memref<16x64xf32, #tpu.memory_space<vmem>>, vector<4x4xf32>,
    %c89 = arith.constant 89 : index
    %c0_619 = arith.constant 0 : index
    %c0_620 = arith.constant 0 : index
    %402 = vector.load %arg1[%c89, %c0_619, %c0_620] : memref<128x4x4xf32, #tpu.memory_space<vmem>>, vector<1x4x4xf32>
    %403 = vector.shape_cast %402 : vector<1x4x4xf32> to vector<4x4xf32>
    %c8_621 = arith.constant 8 : index
    %c20_622 = arith.constant 20 : index
    %404 = vector.load %arg3[%c8_621, %c20_622] : memref<16x64xf32, #tpu.memory_space<vmem>>, vector<4x4xf32>
    tpu.vector_store %arg3[%c8_621, %c20_622], %403 {strides = array<i32>} : memref<16x64xf32, #tpu.memory_space<vmem>>, vector<4x4xf32>,
    %c90 = arith.constant 90 : index
    %c0_623 = arith.constant 0 : index
    %c0_624 = arith.constant 0 : index
    %405 = vector.load %arg1[%c90, %c0_623, %c0_624] : memref<128x4x4xf32, #tpu.memory_space<vmem>>, vector<1x4x4xf32>
    %406 = vector.shape_cast %405 : vector<1x4x4xf32> to vector<4x4xf32>
    %c8_625 = arith.constant 8 : index
    %c24_626 = arith.constant 24 : index
    %407 = vector.load %arg3[%c8_625, %c24_626] : memref<16x64xf32, #tpu.memory_space<vmem>>, vector<4x4xf32>
    tpu.vector_store %arg3[%c8_625, %c24_626], %406 {strides = array<i32>} : memref<16x64xf32, #tpu.memory_space<vmem>>, vector<4x4xf32>,
    %c91 = arith.constant 91 : index
    %c0_627 = arith.constant 0 : index
    %c0_628 = arith.constant 0 : index
    %408 = vector.load %arg1[%c91, %c0_627, %c0_628] : memref<128x4x4xf32, #tpu.memory_space<vmem>>, vector<1x4x4xf32>
    %409 = vector.shape_cast %408 : vector<1x4x4xf32> to vector<4x4xf32>
    %c8_629 = arith.constant 8 : index
    %c28_630 = arith.constant 28 : index
    %410 = vector.load %arg3[%c8_629, %c28_630] : memref<16x64xf32, #tpu.memory_space<vmem>>, vector<4x4xf32>
    tpu.vector_store %arg3[%c8_629, %c28_630], %409 {strides = array<i32>} : memref<16x64xf32, #tpu.memory_space<vmem>>, vector<4x4xf32>,
    %c92 = arith.constant 92 : index
    %c0_631 = arith.constant 0 : index
    %c0_632 = arith.constant 0 : index
    %411 = vector.load %arg1[%c92, %c0_631, %c0_632] : memref<128x4x4xf32, #tpu.memory_space<vmem>>, vector<1x4x4xf32>
    %412 = vector.shape_cast %411 : vector<1x4x4xf32> to vector<4x4xf32>
    %c12_633 = arith.constant 12 : index
    %c16_634 = arith.constant 16 : index
    %413 = vector.load %arg3[%c12_633, %c16_634] : memref<16x64xf32, #tpu.memory_space<vmem>>, vector<4x4xf32>
    tpu.vector_store %arg3[%c12_633, %c16_634], %412 {strides = array<i32>} : memref<16x64xf32, #tpu.memory_space<vmem>>, vector<4x4xf32>,
    %c93 = arith.constant 93 : index
    %c0_635 = arith.constant 0 : index
    %c0_636 = arith.constant 0 : index
    %414 = vector.load %arg1[%c93, %c0_635, %c0_636] : memref<128x4x4xf32, #tpu.memory_space<vmem>>, vector<1x4x4xf32>
    %415 = vector.shape_cast %414 : vector<1x4x4xf32> to vector<4x4xf32>
    %c12_637 = arith.constant 12 : index
    %c20_638 = arith.constant 20 : index
    %416 = vector.load %arg3[%c12_637, %c20_638] : memref<16x64xf32, #tpu.memory_space<vmem>>, vector<4x4xf32>
    tpu.vector_store %arg3[%c12_637, %c20_638], %415 {strides = array<i32>} : memref<16x64xf32, #tpu.memory_space<vmem>>, vector<4x4xf32>,
    %c94 = arith.constant 94 : index
    %c0_639 = arith.constant 0 : index
    %c0_640 = arith.constant 0 : index
    %417 = vector.load %arg1[%c94, %c0_639, %c0_640] : memref<128x4x4xf32, #tpu.memory_space<vmem>>, vector<1x4x4xf32>
    %418 = vector.shape_cast %417 : vector<1x4x4xf32> to vector<4x4xf32>
    %c12_641 = arith.constant 12 : index
    %c24_642 = arith.constant 24 : index
    %419 = vector.load %arg3[%c12_641, %c24_642] : memref<16x64xf32, #tpu.memory_space<vmem>>, vector<4x4xf32>
    tpu.vector_store %arg3[%c12_641, %c24_642], %418 {strides = array<i32>} : memref<16x64xf32, #tpu.memory_space<vmem>>, vector<4x4xf32>,
    %c95 = arith.constant 95 : index
    %c0_643 = arith.constant 0 : index
    %c0_644 = arith.constant 0 : index
    %420 = vector.load %arg1[%c95, %c0_643, %c0_644] : memref<128x4x4xf32, #tpu.memory_space<vmem>>, vector<1x4x4xf32>
    %421 = vector.shape_cast %420 : vector<1x4x4xf32> to vector<4x4xf32>
    %c12_645 = arith.constant 12 : index
    %c28_646 = arith.constant 28 : index
    %422 = vector.load %arg3[%c12_645, %c28_646] : memref<16x64xf32, #tpu.memory_space<vmem>>, vector<4x4xf32>
    tpu.vector_store %arg3[%c12_645, %c28_646], %421 {strides = array<i32>} : memref<16x64xf32, #tpu.memory_space<vmem>>, vector<4x4xf32>,
    %c96 = arith.constant 96 : index
    %c0_647 = arith.constant 0 : index
    %c0_648 = arith.constant 0 : index
    %423 = vector.load %arg1[%c96, %c0_647, %c0_648] : memref<128x4x4xf32, #tpu.memory_space<vmem>>, vector<1x4x4xf32>
    %424 = vector.shape_cast %423 : vector<1x4x4xf32> to vector<4x4xf32>
    %c0_649 = arith.constant 0 : index
    %c32_650 = arith.constant 32 : index
    %425 = vector.load %arg3[%c0_649, %c32_650] : memref<16x64xf32, #tpu.memory_space<vmem>>, vector<4x4xf32>
    tpu.vector_store %arg3[%c0_649, %c32_650], %424 {strides = array<i32>} : memref<16x64xf32, #tpu.memory_space<vmem>>, vector<4x4xf32>,
    %c97 = arith.constant 97 : index
    %c0_651 = arith.constant 0 : index
    %c0_652 = arith.constant 0 : index
    %426 = vector.load %arg1[%c97, %c0_651, %c0_652] : memref<128x4x4xf32, #tpu.memory_space<vmem>>, vector<1x4x4xf32>
    %427 = vector.shape_cast %426 : vector<1x4x4xf32> to vector<4x4xf32>
    %c0_653 = arith.constant 0 : index
    %c36_654 = arith.constant 36 : index
    %428 = vector.load %arg3[%c0_653, %c36_654] : memref<16x64xf32, #tpu.memory_space<vmem>>, vector<4x4xf32>
    tpu.vector_store %arg3[%c0_653, %c36_654], %427 {strides = array<i32>} : memref<16x64xf32, #tpu.memory_space<vmem>>, vector<4x4xf32>,
    %c98 = arith.constant 98 : index
    %c0_655 = arith.constant 0 : index
    %c0_656 = arith.constant 0 : index
    %429 = vector.load %arg1[%c98, %c0_655, %c0_656] : memref<128x4x4xf32, #tpu.memory_space<vmem>>, vector<1x4x4xf32>
    %430 = vector.shape_cast %429 : vector<1x4x4xf32> to vector<4x4xf32>
    %c0_657 = arith.constant 0 : index
    %c40_658 = arith.constant 40 : index
    %431 = vector.load %arg3[%c0_657, %c40_658] : memref<16x64xf32, #tpu.memory_space<vmem>>, vector<4x4xf32>
    tpu.vector_store %arg3[%c0_657, %c40_658], %430 {strides = array<i32>} : memref<16x64xf32, #tpu.memory_space<vmem>>, vector<4x4xf32>,
    %c99 = arith.constant 99 : index
    %c0_659 = arith.constant 0 : index
    %c0_660 = arith.constant 0 : index
    %432 = vector.load %arg1[%c99, %c0_659, %c0_660] : memref<128x4x4xf32, #tpu.memory_space<vmem>>, vector<1x4x4xf32>
    %433 = vector.shape_cast %432 : vector<1x4x4xf32> to vector<4x4xf32>
    %c0_661 = arith.constant 0 : index
    %c44_662 = arith.constant 44 : index
    %434 = vector.load %arg3[%c0_661, %c44_662] : memref<16x64xf32, #tpu.memory_space<vmem>>, vector<4x4xf32>
    tpu.vector_store %arg3[%c0_661, %c44_662], %433 {strides = array<i32>} : memref<16x64xf32, #tpu.memory_space<vmem>>, vector<4x4xf32>,
    %c100 = arith.constant 100 : index
    %c0_663 = arith.constant 0 : index
    %c0_664 = arith.constant 0 : index
    %435 = vector.load %arg1[%c100, %c0_663, %c0_664] : memref<128x4x4xf32, #tpu.memory_space<vmem>>, vector<1x4x4xf32>
    %436 = vector.shape_cast %435 : vector<1x4x4xf32> to vector<4x4xf32>
    %c4_665 = arith.constant 4 : index
    %c32_666 = arith.constant 32 : index
    %437 = vector.load %arg3[%c4_665, %c32_666] : memref<16x64xf32, #tpu.memory_space<vmem>>, vector<4x4xf32>
    tpu.vector_store %arg3[%c4_665, %c32_666], %436 {strides = array<i32>} : memref<16x64xf32, #tpu.memory_space<vmem>>, vector<4x4xf32>,
    %c101 = arith.constant 101 : index
    %c0_667 = arith.constant 0 : index
    %c0_668 = arith.constant 0 : index
    %438 = vector.load %arg1[%c101, %c0_667, %c0_668] : memref<128x4x4xf32, #tpu.memory_space<vmem>>, vector<1x4x4xf32>
    %439 = vector.shape_cast %438 : vector<1x4x4xf32> to vector<4x4xf32>
    %c4_669 = arith.constant 4 : index
    %c36_670 = arith.constant 36 : index
    %440 = vector.load %arg3[%c4_669, %c36_670] : memref<16x64xf32, #tpu.memory_space<vmem>>, vector<4x4xf32>
    tpu.vector_store %arg3[%c4_669, %c36_670], %439 {strides = array<i32>} : memref<16x64xf32, #tpu.memory_space<vmem>>, vector<4x4xf32>,
    %c102 = arith.constant 102 : index
    %c0_671 = arith.constant 0 : index
    %c0_672 = arith.constant 0 : index
    %441 = vector.load %arg1[%c102, %c0_671, %c0_672] : memref<128x4x4xf32, #tpu.memory_space<vmem>>, vector<1x4x4xf32>
    %442 = vector.shape_cast %441 : vector<1x4x4xf32> to vector<4x4xf32>
    %c4_673 = arith.constant 4 : index
    %c40_674 = arith.constant 40 : index
    %443 = vector.load %arg3[%c4_673, %c40_674] : memref<16x64xf32, #tpu.memory_space<vmem>>, vector<4x4xf32>
    tpu.vector_store %arg3[%c4_673, %c40_674], %442 {strides = array<i32>} : memref<16x64xf32, #tpu.memory_space<vmem>>, vector<4x4xf32>,
    %c103 = arith.constant 103 : index
    %c0_675 = arith.constant 0 : index
    %c0_676 = arith.constant 0 : index
    %444 = vector.load %arg1[%c103, %c0_675, %c0_676] : memref<128x4x4xf32, #tpu.memory_space<vmem>>, vector<1x4x4xf32>
    %445 = vector.shape_cast %444 : vector<1x4x4xf32> to vector<4x4xf32>
    %c4_677 = arith.constant 4 : index
    %c44_678 = arith.constant 44 : index
    %446 = vector.load %arg3[%c4_677, %c44_678] : memref<16x64xf32, #tpu.memory_space<vmem>>, vector<4x4xf32>
    tpu.vector_store %arg3[%c4_677, %c44_678], %445 {strides = array<i32>} : memref<16x64xf32, #tpu.memory_space<vmem>>, vector<4x4xf32>,
    %c104 = arith.constant 104 : index
    %c0_679 = arith.constant 0 : index
    %c0_680 = arith.constant 0 : index
    %447 = vector.load %arg1[%c104, %c0_679, %c0_680] : memref<128x4x4xf32, #tpu.memory_space<vmem>>, vector<1x4x4xf32>
    %448 = vector.shape_cast %447 : vector<1x4x4xf32> to vector<4x4xf32>
    %c8_681 = arith.constant 8 : index
    %c32_682 = arith.constant 32 : index
    %449 = vector.load %arg3[%c8_681, %c32_682] : memref<16x64xf32, #tpu.memory_space<vmem>>, vector<4x4xf32>
    tpu.vector_store %arg3[%c8_681, %c32_682], %448 {strides = array<i32>} : memref<16x64xf32, #tpu.memory_space<vmem>>, vector<4x4xf32>,
    %c105 = arith.constant 105 : index
    %c0_683 = arith.constant 0 : index
    %c0_684 = arith.constant 0 : index
    %450 = vector.load %arg1[%c105, %c0_683, %c0_684] : memref<128x4x4xf32, #tpu.memory_space<vmem>>, vector<1x4x4xf32>
    %451 = vector.shape_cast %450 : vector<1x4x4xf32> to vector<4x4xf32>
    %c8_685 = arith.constant 8 : index
    %c36_686 = arith.constant 36 : index
    %452 = vector.load %arg3[%c8_685, %c36_686] : memref<16x64xf32, #tpu.memory_space<vmem>>, vector<4x4xf32>
    tpu.vector_store %arg3[%c8_685, %c36_686], %451 {strides = array<i32>} : memref<16x64xf32, #tpu.memory_space<vmem>>, vector<4x4xf32>,
    %c106 = arith.constant 106 : index
    %c0_687 = arith.constant 0 : index
    %c0_688 = arith.constant 0 : index
    %453 = vector.load %arg1[%c106, %c0_687, %c0_688] : memref<128x4x4xf32, #tpu.memory_space<vmem>>, vector<1x4x4xf32>
    %454 = vector.shape_cast %453 : vector<1x4x4xf32> to vector<4x4xf32>
    %c8_689 = arith.constant 8 : index
    %c40_690 = arith.constant 40 : index
    %455 = vector.load %arg3[%c8_689, %c40_690] : memref<16x64xf32, #tpu.memory_space<vmem>>, vector<4x4xf32>
    tpu.vector_store %arg3[%c8_689, %c40_690], %454 {strides = array<i32>} : memref<16x64xf32, #tpu.memory_space<vmem>>, vector<4x4xf32>,
    %c107 = arith.constant 107 : index
    %c0_691 = arith.constant 0 : index
    %c0_692 = arith.constant 0 : index
    %456 = vector.load %arg1[%c107, %c0_691, %c0_692] : memref<128x4x4xf32, #tpu.memory_space<vmem>>, vector<1x4x4xf32>
    %457 = vector.shape_cast %456 : vector<1x4x4xf32> to vector<4x4xf32>
    %c8_693 = arith.constant 8 : index
    %c44_694 = arith.constant 44 : index
    %458 = vector.load %arg3[%c8_693, %c44_694] : memref<16x64xf32, #tpu.memory_space<vmem>>, vector<4x4xf32>
    tpu.vector_store %arg3[%c8_693, %c44_694], %457 {strides = array<i32>} : memref<16x64xf32, #tpu.memory_space<vmem>>, vector<4x4xf32>,
    %c108 = arith.constant 108 : index
    %c0_695 = arith.constant 0 : index
    %c0_696 = arith.constant 0 : index
    %459 = vector.load %arg1[%c108, %c0_695, %c0_696] : memref<128x4x4xf32, #tpu.memory_space<vmem>>, vector<1x4x4xf32>
    %460 = vector.shape_cast %459 : vector<1x4x4xf32> to vector<4x4xf32>
    %c12_697 = arith.constant 12 : index
    %c32_698 = arith.constant 32 : index
    %461 = vector.load %arg3[%c12_697, %c32_698] : memref<16x64xf32, #tpu.memory_space<vmem>>, vector<4x4xf32>
    tpu.vector_store %arg3[%c12_697, %c32_698], %460 {strides = array<i32>} : memref<16x64xf32, #tpu.memory_space<vmem>>, vector<4x4xf32>,
    %c109 = arith.constant 109 : index
    %c0_699 = arith.constant 0 : index
    %c0_700 = arith.constant 0 : index
    %462 = vector.load %arg1[%c109, %c0_699, %c0_700] : memref<128x4x4xf32, #tpu.memory_space<vmem>>, vector<1x4x4xf32>
    %463 = vector.shape_cast %462 : vector<1x4x4xf32> to vector<4x4xf32>
    %c12_701 = arith.constant 12 : index
    %c36_702 = arith.constant 36 : index
    %464 = vector.load %arg3[%c12_701, %c36_702] : memref<16x64xf32, #tpu.memory_space<vmem>>, vector<4x4xf32>
    tpu.vector_store %arg3[%c12_701, %c36_702], %463 {strides = array<i32>} : memref<16x64xf32, #tpu.memory_space<vmem>>, vector<4x4xf32>,
    %c110 = arith.constant 110 : index
    %c0_703 = arith.constant 0 : index
    %c0_704 = arith.constant 0 : index
    %465 = vector.load %arg1[%c110, %c0_703, %c0_704] : memref<128x4x4xf32, #tpu.memory_space<vmem>>, vector<1x4x4xf32>
    %466 = vector.shape_cast %465 : vector<1x4x4xf32> to vector<4x4xf32>
    %c12_705 = arith.constant 12 : index
    %c40_706 = arith.constant 40 : index
    %467 = vector.load %arg3[%c12_705, %c40_706] : memref<16x64xf32, #tpu.memory_space<vmem>>, vector<4x4xf32>
    tpu.vector_store %arg3[%c12_705, %c40_706], %466 {strides = array<i32>} : memref<16x64xf32, #tpu.memory_space<vmem>>, vector<4x4xf32>,
    %c111 = arith.constant 111 : index
    %c0_707 = arith.constant 0 : index
    %c0_708 = arith.constant 0 : index
    %468 = vector.load %arg1[%c111, %c0_707, %c0_708] : memref<128x4x4xf32, #tpu.memory_space<vmem>>, vector<1x4x4xf32>
    %469 = vector.shape_cast %468 : vector<1x4x4xf32> to vector<4x4xf32>
    %c12_709 = arith.constant 12 : index
    %c44_710 = arith.constant 44 : index
    %470 = vector.load %arg3[%c12_709, %c44_710] : memref<16x64xf32, #tpu.memory_space<vmem>>, vector<4x4xf32>
    tpu.vector_store %arg3[%c12_709, %c44_710], %469 {strides = array<i32>} : memref<16x64xf32, #tpu.memory_space<vmem>>, vector<4x4xf32>,
    %c112 = arith.constant 112 : index
    %c0_711 = arith.constant 0 : index
    %c0_712 = arith.constant 0 : index
    %471 = vector.load %arg1[%c112, %c0_711, %c0_712] : memref<128x4x4xf32, #tpu.memory_space<vmem>>, vector<1x4x4xf32>
    %472 = vector.shape_cast %471 : vector<1x4x4xf32> to vector<4x4xf32>
    %c0_713 = arith.constant 0 : index
    %c48_714 = arith.constant 48 : index
    %473 = vector.load %arg3[%c0_713, %c48_714] : memref<16x64xf32, #tpu.memory_space<vmem>>, vector<4x4xf32>
    tpu.vector_store %arg3[%c0_713, %c48_714], %472 {strides = array<i32>} : memref<16x64xf32, #tpu.memory_space<vmem>>, vector<4x4xf32>,
    %c113 = arith.constant 113 : index
    %c0_715 = arith.constant 0 : index
    %c0_716 = arith.constant 0 : index
    %474 = vector.load %arg1[%c113, %c0_715, %c0_716] : memref<128x4x4xf32, #tpu.memory_space<vmem>>, vector<1x4x4xf32>
    %475 = vector.shape_cast %474 : vector<1x4x4xf32> to vector<4x4xf32>
    %c0_717 = arith.constant 0 : index
    %c52_718 = arith.constant 52 : index
    %476 = vector.load %arg3[%c0_717, %c52_718] : memref<16x64xf32, #tpu.memory_space<vmem>>, vector<4x4xf32>
    tpu.vector_store %arg3[%c0_717, %c52_718], %475 {strides = array<i32>} : memref<16x64xf32, #tpu.memory_space<vmem>>, vector<4x4xf32>,
    %c114 = arith.constant 114 : index
    %c0_719 = arith.constant 0 : index
    %c0_720 = arith.constant 0 : index
    %477 = vector.load %arg1[%c114, %c0_719, %c0_720] : memref<128x4x4xf32, #tpu.memory_space<vmem>>, vector<1x4x4xf32>
    %478 = vector.shape_cast %477 : vector<1x4x4xf32> to vector<4x4xf32>
    %c0_721 = arith.constant 0 : index
    %c56_722 = arith.constant 56 : index
    %479 = vector.load %arg3[%c0_721, %c56_722] : memref<16x64xf32, #tpu.memory_space<vmem>>, vector<4x4xf32>
    tpu.vector_store %arg3[%c0_721, %c56_722], %478 {strides = array<i32>} : memref<16x64xf32, #tpu.memory_space<vmem>>, vector<4x4xf32>,
    %c115 = arith.constant 115 : index
    %c0_723 = arith.constant 0 : index
    %c0_724 = arith.constant 0 : index
    %480 = vector.load %arg1[%c115, %c0_723, %c0_724] : memref<128x4x4xf32, #tpu.memory_space<vmem>>, vector<1x4x4xf32>
    %481 = vector.shape_cast %480 : vector<1x4x4xf32> to vector<4x4xf32>
    %c0_725 = arith.constant 0 : index
    %c60_726 = arith.constant 60 : index
    %482 = vector.load %arg3[%c0_725, %c60_726] : memref<16x64xf32, #tpu.memory_space<vmem>>, vector<4x4xf32>
    tpu.vector_store %arg3[%c0_725, %c60_726], %481 {strides = array<i32>} : memref<16x64xf32, #tpu.memory_space<vmem>>, vector<4x4xf32>,
    %c116 = arith.constant 116 : index
    %c0_727 = arith.constant 0 : index
    %c0_728 = arith.constant 0 : index
    %483 = vector.load %arg1[%c116, %c0_727, %c0_728] : memref<128x4x4xf32, #tpu.memory_space<vmem>>, vector<1x4x4xf32>
    %484 = vector.shape_cast %483 : vector<1x4x4xf32> to vector<4x4xf32>
    %c4_729 = arith.constant 4 : index
    %c48_730 = arith.constant 48 : index
    %485 = vector.load %arg3[%c4_729, %c48_730] : memref<16x64xf32, #tpu.memory_space<vmem>>, vector<4x4xf32>
    tpu.vector_store %arg3[%c4_729, %c48_730], %484 {strides = array<i32>} : memref<16x64xf32, #tpu.memory_space<vmem>>, vector<4x4xf32>,
    %c117 = arith.constant 117 : index
    %c0_731 = arith.constant 0 : index
    %c0_732 = arith.constant 0 : index
    %486 = vector.load %arg1[%c117, %c0_731, %c0_732] : memref<128x4x4xf32, #tpu.memory_space<vmem>>, vector<1x4x4xf32>
    %487 = vector.shape_cast %486 : vector<1x4x4xf32> to vector<4x4xf32>
    %c4_733 = arith.constant 4 : index
    %c52_734 = arith.constant 52 : index
    %488 = vector.load %arg3[%c4_733, %c52_734] : memref<16x64xf32, #tpu.memory_space<vmem>>, vector<4x4xf32>
    tpu.vector_store %arg3[%c4_733, %c52_734], %487 {strides = array<i32>} : memref<16x64xf32, #tpu.memory_space<vmem>>, vector<4x4xf32>,
    %c118 = arith.constant 118 : index
    %c0_735 = arith.constant 0 : index
    %c0_736 = arith.constant 0 : index
    %489 = vector.load %arg1[%c118, %c0_735, %c0_736] : memref<128x4x4xf32, #tpu.memory_space<vmem>>, vector<1x4x4xf32>
    %490 = vector.shape_cast %489 : vector<1x4x4xf32> to vector<4x4xf32>
    %c4_737 = arith.constant 4 : index
    %c56_738 = arith.constant 56 : index
    %491 = vector.load %arg3[%c4_737, %c56_738] : memref<16x64xf32, #tpu.memory_space<vmem>>, vector<4x4xf32>
    tpu.vector_store %arg3[%c4_737, %c56_738], %490 {strides = array<i32>} : memref<16x64xf32, #tpu.memory_space<vmem>>, vector<4x4xf32>,
    %c119 = arith.constant 119 : index
    %c0_739 = arith.constant 0 : index
    %c0_740 = arith.constant 0 : index
    %492 = vector.load %arg1[%c119, %c0_739, %c0_740] : memref<128x4x4xf32, #tpu.memory_space<vmem>>, vector<1x4x4xf32>
    %493 = vector.shape_cast %492 : vector<1x4x4xf32> to vector<4x4xf32>
    %c4_741 = arith.constant 4 : index
    %c60_742 = arith.constant 60 : index
    %494 = vector.load %arg3[%c4_741, %c60_742] : memref<16x64xf32, #tpu.memory_space<vmem>>, vector<4x4xf32>
    tpu.vector_store %arg3[%c4_741, %c60_742], %493 {strides = array<i32>} : memref<16x64xf32, #tpu.memory_space<vmem>>, vector<4x4xf32>,
    %c120 = arith.constant 120 : index
    %c0_743 = arith.constant 0 : index
    %c0_744 = arith.constant 0 : index
    %495 = vector.load %arg1[%c120, %c0_743, %c0_744] : memref<128x4x4xf32, #tpu.memory_space<vmem>>, vector<1x4x4xf32>
    %496 = vector.shape_cast %495 : vector<1x4x4xf32> to vector<4x4xf32>
    %c8_745 = arith.constant 8 : index
    %c48_746 = arith.constant 48 : index
    %497 = vector.load %arg3[%c8_745, %c48_746] : memref<16x64xf32, #tpu.memory_space<vmem>>, vector<4x4xf32>
    tpu.vector_store %arg3[%c8_745, %c48_746], %496 {strides = array<i32>} : memref<16x64xf32, #tpu.memory_space<vmem>>, vector<4x4xf32>,
    %c121 = arith.constant 121 : index
    %c0_747 = arith.constant 0 : index
    %c0_748 = arith.constant 0 : index
    %498 = vector.load %arg1[%c121, %c0_747, %c0_748] : memref<128x4x4xf32, #tpu.memory_space<vmem>>, vector<1x4x4xf32>
    %499 = vector.shape_cast %498 : vector<1x4x4xf32> to vector<4x4xf32>
    %c8_749 = arith.constant 8 : index
    %c52_750 = arith.constant 52 : index
    %500 = vector.load %arg3[%c8_749, %c52_750] : memref<16x64xf32, #tpu.memory_space<vmem>>, vector<4x4xf32>
    tpu.vector_store %arg3[%c8_749, %c52_750], %499 {strides = array<i32>} : memref<16x64xf32, #tpu.memory_space<vmem>>, vector<4x4xf32>,
    %c122 = arith.constant 122 : index
    %c0_751 = arith.constant 0 : index
    %c0_752 = arith.constant 0 : index
    %501 = vector.load %arg1[%c122, %c0_751, %c0_752] : memref<128x4x4xf32, #tpu.memory_space<vmem>>, vector<1x4x4xf32>
    %502 = vector.shape_cast %501 : vector<1x4x4xf32> to vector<4x4xf32>
    %c8_753 = arith.constant 8 : index
    %c56_754 = arith.constant 56 : index
    %503 = vector.load %arg3[%c8_753, %c56_754] : memref<16x64xf32, #tpu.memory_space<vmem>>, vector<4x4xf32>
    tpu.vector_store %arg3[%c8_753, %c56_754], %502 {strides = array<i32>} : memref<16x64xf32, #tpu.memory_space<vmem>>, vector<4x4xf32>,
    %c123 = arith.constant 123 : index
    %c0_755 = arith.constant 0 : index
    %c0_756 = arith.constant 0 : index
    %504 = vector.load %arg1[%c123, %c0_755, %c0_756] : memref<128x4x4xf32, #tpu.memory_space<vmem>>, vector<1x4x4xf32>
    %505 = vector.shape_cast %504 : vector<1x4x4xf32> to vector<4x4xf32>
    %c8_757 = arith.constant 8 : index
    %c60_758 = arith.constant 60 : index
    %506 = vector.load %arg3[%c8_757, %c60_758] : memref<16x64xf32, #tpu.memory_space<vmem>>, vector<4x4xf32>
    tpu.vector_store %arg3[%c8_757, %c60_758], %505 {strides = array<i32>} : memref<16x64xf32, #tpu.memory_space<vmem>>, vector<4x4xf32>,
    %c124 = arith.constant 124 : index
    %c0_759 = arith.constant 0 : index
    %c0_760 = arith.constant 0 : index
    %507 = vector.load %arg1[%c124, %c0_759, %c0_760] : memref<128x4x4xf32, #tpu.memory_space<vmem>>, vector<1x4x4xf32>
    %508 = vector.shape_cast %507 : vector<1x4x4xf32> to vector<4x4xf32>
    %c12_761 = arith.constant 12 : index
    %c48_762 = arith.constant 48 : index
    %509 = vector.load %arg3[%c12_761, %c48_762] : memref<16x64xf32, #tpu.memory_space<vmem>>, vector<4x4xf32>
    tpu.vector_store %arg3[%c12_761, %c48_762], %508 {strides = array<i32>} : memref<16x64xf32, #tpu.memory_space<vmem>>, vector<4x4xf32>,
    %c125 = arith.constant 125 : index
    %c0_763 = arith.constant 0 : index
    %c0_764 = arith.constant 0 : index
    %510 = vector.load %arg1[%c125, %c0_763, %c0_764] : memref<128x4x4xf32, #tpu.memory_space<vmem>>, vector<1x4x4xf32>
    %511 = vector.shape_cast %510 : vector<1x4x4xf32> to vector<4x4xf32>
    %c12_765 = arith.constant 12 : index
    %c52_766 = arith.constant 52 : index
    %512 = vector.load %arg3[%c12_765, %c52_766] : memref<16x64xf32, #tpu.memory_space<vmem>>, vector<4x4xf32>
    tpu.vector_store %arg3[%c12_765, %c52_766], %511 {strides = array<i32>} : memref<16x64xf32, #tpu.memory_space<vmem>>, vector<4x4xf32>,
    %c126 = arith.constant 126 : index
    %c0_767 = arith.constant 0 : index
    %c0_768 = arith.constant 0 : index
    %513 = vector.load %arg1[%c126, %c0_767, %c0_768] : memref<128x4x4xf32, #tpu.memory_space<vmem>>, vector<1x4x4xf32>
    %514 = vector.shape_cast %513 : vector<1x4x4xf32> to vector<4x4xf32>
    %c12_769 = arith.constant 12 : index
    %c56_770 = arith.constant 56 : index
    %515 = vector.load %arg3[%c12_769, %c56_770] : memref<16x64xf32, #tpu.memory_space<vmem>>, vector<4x4xf32>
    tpu.vector_store %arg3[%c12_769, %c56_770], %514 {strides = array<i32>} : memref<16x64xf32, #tpu.memory_space<vmem>>, vector<4x4xf32>,
    %c127 = arith.constant 127 : index
    %c0_771 = arith.constant 0 : index
    %c0_772 = arith.constant 0 : index
    %516 = vector.load %arg1[%c127, %c0_771, %c0_772] : memref<128x4x4xf32, #tpu.memory_space<vmem>>, vector<1x4x4xf32>
    %517 = vector.shape_cast %516 : vector<1x4x4xf32> to vector<4x4xf32>
    %c12_773 = arith.constant 12 : index
    %c60_774 = arith.constant 60 : index
    %518 = vector.load %arg3[%c12_773, %c60_774] : memref<16x64xf32, #tpu.memory_space<vmem>>, vector<4x4xf32>
    tpu.vector_store %arg3[%c12_773, %c60_774], %517 {strides = array<i32>} : memref<16x64xf32, #tpu.memory_space<vmem>>, vector<4x4xf32>,
    %c0_775 = arith.constant 0 : index
    %c0_776 = arith.constant 0 : index
    %519 = vector.load %arg3[%c0_775, %c0_776] : memref<16x64xf32, #tpu.memory_space<vmem>>, vector<1x16xf32>
    %c0_777 = arith.constant 0 : index
    %c0_778 = arith.constant 0 : index
    %520 = vector.load %arg4[%c0_777, %c0_778] : memref<128x16xf32, #tpu.memory_space<vmem>>, vector<1x16xf32>
    tpu.vector_store %arg4[%c0_777, %c0_778], %519 {strides = array<i32>} : memref<128x16xf32, #tpu.memory_space<vmem>>, vector<1x16xf32>,
    %c0_779 = arith.constant 0 : index
    %c16_780 = arith.constant 16 : index
    %521 = vector.load %arg3[%c0_779, %c16_780] : memref<16x64xf32, #tpu.memory_space<vmem>>, vector<1x16xf32>
    %c1_781 = arith.constant 1 : index
    %c0_782 = arith.constant 0 : index
    %522 = vector.load %arg4[%c1_781, %c0_782] : memref<128x16xf32, #tpu.memory_space<vmem>>, vector<1x16xf32>
    tpu.vector_store %arg4[%c1_781, %c0_782], %521 {strides = array<i32>} : memref<128x16xf32, #tpu.memory_space<vmem>>, vector<1x16xf32>,
    %c0_783 = arith.constant 0 : index
    %c32_784 = arith.constant 32 : index
    %523 = vector.load %arg3[%c0_783, %c32_784] : memref<16x64xf32, #tpu.memory_space<vmem>>, vector<1x16xf32>
    %c2_785 = arith.constant 2 : index
    %c0_786 = arith.constant 0 : index
    %524 = vector.load %arg4[%c2_785, %c0_786] : memref<128x16xf32, #tpu.memory_space<vmem>>, vector<1x16xf32>
    tpu.vector_store %arg4[%c2_785, %c0_786], %523 {strides = array<i32>} : memref<128x16xf32, #tpu.memory_space<vmem>>, vector<1x16xf32>,
    %c0_787 = arith.constant 0 : index
    %c48_788 = arith.constant 48 : index
    %525 = vector.load %arg3[%c0_787, %c48_788] : memref<16x64xf32, #tpu.memory_space<vmem>>, vector<1x16xf32>
    %c3_789 = arith.constant 3 : index
    %c0_790 = arith.constant 0 : index
    %526 = vector.load %arg4[%c3_789, %c0_790] : memref<128x16xf32, #tpu.memory_space<vmem>>, vector<1x16xf32>
    tpu.vector_store %arg4[%c3_789, %c0_790], %525 {strides = array<i32>} : memref<128x16xf32, #tpu.memory_space<vmem>>, vector<1x16xf32>,
    %c1_791 = arith.constant 1 : index
    %c0_792 = arith.constant 0 : index
    %527 = vector.load %arg3[%c1_791, %c0_792] : memref<16x64xf32, #tpu.memory_space<vmem>>, vector<1x16xf32>
    %c4_793 = arith.constant 4 : index
    %c0_794 = arith.constant 0 : index
    %528 = vector.load %arg4[%c4_793, %c0_794] : memref<128x16xf32, #tpu.memory_space<vmem>>, vector<1x16xf32>
    tpu.vector_store %arg4[%c4_793, %c0_794], %527 {strides = array<i32>} : memref<128x16xf32, #tpu.memory_space<vmem>>, vector<1x16xf32>,
    %c1_795 = arith.constant 1 : index
    %c16_796 = arith.constant 16 : index
    %529 = vector.load %arg3[%c1_795, %c16_796] : memref<16x64xf32, #tpu.memory_space<vmem>>, vector<1x16xf32>
    %c5_797 = arith.constant 5 : index
    %c0_798 = arith.constant 0 : index
    %530 = vector.load %arg4[%c5_797, %c0_798] : memref<128x16xf32, #tpu.memory_space<vmem>>, vector<1x16xf32>
    tpu.vector_store %arg4[%c5_797, %c0_798], %529 {strides = array<i32>} : memref<128x16xf32, #tpu.memory_space<vmem>>, vector<1x16xf32>,
    %c1_799 = arith.constant 1 : index
    %c32_800 = arith.constant 32 : index
    %531 = vector.load %arg3[%c1_799, %c32_800] : memref<16x64xf32, #tpu.memory_space<vmem>>, vector<1x16xf32>
    %c6_801 = arith.constant 6 : index
    %c0_802 = arith.constant 0 : index
    %532 = vector.load %arg4[%c6_801, %c0_802] : memref<128x16xf32, #tpu.memory_space<vmem>>, vector<1x16xf32>
    tpu.vector_store %arg4[%c6_801, %c0_802], %531 {strides = array<i32>} : memref<128x16xf32, #tpu.memory_space<vmem>>, vector<1x16xf32>,
    %c1_803 = arith.constant 1 : index
    %c48_804 = arith.constant 48 : index
    %533 = vector.load %arg3[%c1_803, %c48_804] : memref<16x64xf32, #tpu.memory_space<vmem>>, vector<1x16xf32>
    %c7_805 = arith.constant 7 : index
    %c0_806 = arith.constant 0 : index
    %534 = vector.load %arg4[%c7_805, %c0_806] : memref<128x16xf32, #tpu.memory_space<vmem>>, vector<1x16xf32>
    tpu.vector_store %arg4[%c7_805, %c0_806], %533 {strides = array<i32>} : memref<128x16xf32, #tpu.memory_space<vmem>>, vector<1x16xf32>,
    %c2_807 = arith.constant 2 : index
    %c0_808 = arith.constant 0 : index
    %535 = vector.load %arg3[%c2_807, %c0_808] : memref<16x64xf32, #tpu.memory_space<vmem>>, vector<1x16xf32>
    %c8_809 = arith.constant 8 : index
    %c0_810 = arith.constant 0 : index
    %536 = vector.load %arg4[%c8_809, %c0_810] : memref<128x16xf32, #tpu.memory_space<vmem>>, vector<1x16xf32>
    tpu.vector_store %arg4[%c8_809, %c0_810], %535 {strides = array<i32>} : memref<128x16xf32, #tpu.memory_space<vmem>>, vector<1x16xf32>,
    %c2_811 = arith.constant 2 : index
    %c16_812 = arith.constant 16 : index
    %537 = vector.load %arg3[%c2_811, %c16_812] : memref<16x64xf32, #tpu.memory_space<vmem>>, vector<1x16xf32>
    %c9_813 = arith.constant 9 : index
    %c0_814 = arith.constant 0 : index
    %538 = vector.load %arg4[%c9_813, %c0_814] : memref<128x16xf32, #tpu.memory_space<vmem>>, vector<1x16xf32>
    tpu.vector_store %arg4[%c9_813, %c0_814], %537 {strides = array<i32>} : memref<128x16xf32, #tpu.memory_space<vmem>>, vector<1x16xf32>,
    %c2_815 = arith.constant 2 : index
    %c32_816 = arith.constant 32 : index
    %539 = vector.load %arg3[%c2_815, %c32_816] : memref<16x64xf32, #tpu.memory_space<vmem>>, vector<1x16xf32>
    %c10_817 = arith.constant 10 : index
    %c0_818 = arith.constant 0 : index
    %540 = vector.load %arg4[%c10_817, %c0_818] : memref<128x16xf32, #tpu.memory_space<vmem>>, vector<1x16xf32>
    tpu.vector_store %arg4[%c10_817, %c0_818], %539 {strides = array<i32>} : memref<128x16xf32, #tpu.memory_space<vmem>>, vector<1x16xf32>,
    %c2_819 = arith.constant 2 : index
    %c48_820 = arith.constant 48 : index
    %541 = vector.load %arg3[%c2_819, %c48_820] : memref<16x64xf32, #tpu.memory_space<vmem>>, vector<1x16xf32>
    %c11_821 = arith.constant 11 : index
    %c0_822 = arith.constant 0 : index
    %542 = vector.load %arg4[%c11_821, %c0_822] : memref<128x16xf32, #tpu.memory_space<vmem>>, vector<1x16xf32>
    tpu.vector_store %arg4[%c11_821, %c0_822], %541 {strides = array<i32>} : memref<128x16xf32, #tpu.memory_space<vmem>>, vector<1x16xf32>,
    %c3_823 = arith.constant 3 : index
    %c0_824 = arith.constant 0 : index
    %543 = vector.load %arg3[%c3_823, %c0_824] : memref<16x64xf32, #tpu.memory_space<vmem>>, vector<1x16xf32>
    %c12_825 = arith.constant 12 : index
    %c0_826 = arith.constant 0 : index
    %544 = vector.load %arg4[%c12_825, %c0_826] : memref<128x16xf32, #tpu.memory_space<vmem>>, vector<1x16xf32>
    tpu.vector_store %arg4[%c12_825, %c0_826], %543 {strides = array<i32>} : memref<128x16xf32, #tpu.memory_space<vmem>>, vector<1x16xf32>,
    %c3_827 = arith.constant 3 : index
    %c16_828 = arith.constant 16 : index
    %545 = vector.load %arg3[%c3_827, %c16_828] : memref<16x64xf32, #tpu.memory_space<vmem>>, vector<1x16xf32>
    %c13_829 = arith.constant 13 : index
    %c0_830 = arith.constant 0 : index
    %546 = vector.load %arg4[%c13_829, %c0_830] : memref<128x16xf32, #tpu.memory_space<vmem>>, vector<1x16xf32>
    tpu.vector_store %arg4[%c13_829, %c0_830], %545 {strides = array<i32>} : memref<128x16xf32, #tpu.memory_space<vmem>>, vector<1x16xf32>,
    %c3_831 = arith.constant 3 : index
    %c32_832 = arith.constant 32 : index
    %547 = vector.load %arg3[%c3_831, %c32_832] : memref<16x64xf32, #tpu.memory_space<vmem>>, vector<1x16xf32>
    %c14_833 = arith.constant 14 : index
    %c0_834 = arith.constant 0 : index
    %548 = vector.load %arg4[%c14_833, %c0_834] : memref<128x16xf32, #tpu.memory_space<vmem>>, vector<1x16xf32>
    tpu.vector_store %arg4[%c14_833, %c0_834], %547 {strides = array<i32>} : memref<128x16xf32, #tpu.memory_space<vmem>>, vector<1x16xf32>,
    %c3_835 = arith.constant 3 : index
    %c48_836 = arith.constant 48 : index
    %549 = vector.load %arg3[%c3_835, %c48_836] : memref<16x64xf32, #tpu.memory_space<vmem>>, vector<1x16xf32>
    %c15_837 = arith.constant 15 : index
    %c0_838 = arith.constant 0 : index
    %550 = vector.load %arg4[%c15_837, %c0_838] : memref<128x16xf32, #tpu.memory_space<vmem>>, vector<1x16xf32>
    tpu.vector_store %arg4[%c15_837, %c0_838], %549 {strides = array<i32>} : memref<128x16xf32, #tpu.memory_space<vmem>>, vector<1x16xf32>,
    %c4_839 = arith.constant 4 : index
    %c0_840 = arith.constant 0 : index
    %551 = vector.load %arg3[%c4_839, %c0_840] : memref<16x64xf32, #tpu.memory_space<vmem>>, vector<1x16xf32>
    %c16_841 = arith.constant 16 : index
    %c0_842 = arith.constant 0 : index
    %552 = vector.load %arg4[%c16_841, %c0_842] : memref<128x16xf32, #tpu.memory_space<vmem>>, vector<1x16xf32>
    tpu.vector_store %arg4[%c16_841, %c0_842], %551 {strides = array<i32>} : memref<128x16xf32, #tpu.memory_space<vmem>>, vector<1x16xf32>,
    %c4_843 = arith.constant 4 : index
    %c16_844 = arith.constant 16 : index
    %553 = vector.load %arg3[%c4_843, %c16_844] : memref<16x64xf32, #tpu.memory_space<vmem>>, vector<1x16xf32>
    %c17_845 = arith.constant 17 : index
    %c0_846 = arith.constant 0 : index
    %554 = vector.load %arg4[%c17_845, %c0_846] : memref<128x16xf32, #tpu.memory_space<vmem>>, vector<1x16xf32>
    tpu.vector_store %arg4[%c17_845, %c0_846], %553 {strides = array<i32>} : memref<128x16xf32, #tpu.memory_space<vmem>>, vector<1x16xf32>,
    %c4_847 = arith.constant 4 : index
    %c32_848 = arith.constant 32 : index
    %555 = vector.load %arg3[%c4_847, %c32_848] : memref<16x64xf32, #tpu.memory_space<vmem>>, vector<1x16xf32>
    %c18_849 = arith.constant 18 : index
    %c0_850 = arith.constant 0 : index
    %556 = vector.load %arg4[%c18_849, %c0_850] : memref<128x16xf32, #tpu.memory_space<vmem>>, vector<1x16xf32>
    tpu.vector_store %arg4[%c18_849, %c0_850], %555 {strides = array<i32>} : memref<128x16xf32, #tpu.memory_space<vmem>>, vector<1x16xf32>,
    %c4_851 = arith.constant 4 : index
    %c48_852 = arith.constant 48 : index
    %557 = vector.load %arg3[%c4_851, %c48_852] : memref<16x64xf32, #tpu.memory_space<vmem>>, vector<1x16xf32>
    %c19_853 = arith.constant 19 : index
    %c0_854 = arith.constant 0 : index
    %558 = vector.load %arg4[%c19_853, %c0_854] : memref<128x16xf32, #tpu.memory_space<vmem>>, vector<1x16xf32>
    tpu.vector_store %arg4[%c19_853, %c0_854], %557 {strides = array<i32>} : memref<128x16xf32, #tpu.memory_space<vmem>>, vector<1x16xf32>,
    %c5_855 = arith.constant 5 : index
    %c0_856 = arith.constant 0 : index
    %559 = vector.load %arg3[%c5_855, %c0_856] : memref<16x64xf32, #tpu.memory_space<vmem>>, vector<1x16xf32>
    %c20_857 = arith.constant 20 : index
    %c0_858 = arith.constant 0 : index
    %560 = vector.load %arg4[%c20_857, %c0_858] : memref<128x16xf32, #tpu.memory_space<vmem>>, vector<1x16xf32>
    tpu.vector_store %arg4[%c20_857, %c0_858], %559 {strides = array<i32>} : memref<128x16xf32, #tpu.memory_space<vmem>>, vector<1x16xf32>,
    %c5_859 = arith.constant 5 : index
    %c16_860 = arith.constant 16 : index
    %561 = vector.load %arg3[%c5_859, %c16_860] : memref<16x64xf32, #tpu.memory_space<vmem>>, vector<1x16xf32>
    %c21_861 = arith.constant 21 : index
    %c0_862 = arith.constant 0 : index
    %562 = vector.load %arg4[%c21_861, %c0_862] : memref<128x16xf32, #tpu.memory_space<vmem>>, vector<1x16xf32>
    tpu.vector_store %arg4[%c21_861, %c0_862], %561 {strides = array<i32>} : memref<128x16xf32, #tpu.memory_space<vmem>>, vector<1x16xf32>,
    %c5_863 = arith.constant 5 : index
    %c32_864 = arith.constant 32 : index
    %563 = vector.load %arg3[%c5_863, %c32_864] : memref<16x64xf32, #tpu.memory_space<vmem>>, vector<1x16xf32>
    %c22_865 = arith.constant 22 : index
    %c0_866 = arith.constant 0 : index
    %564 = vector.load %arg4[%c22_865, %c0_866] : memref<128x16xf32, #tpu.memory_space<vmem>>, vector<1x16xf32>
    tpu.vector_store %arg4[%c22_865, %c0_866], %563 {strides = array<i32>} : memref<128x16xf32, #tpu.memory_space<vmem>>, vector<1x16xf32>,
    %c5_867 = arith.constant 5 : index
    %c48_868 = arith.constant 48 : index
    %565 = vector.load %arg3[%c5_867, %c48_868] : memref<16x64xf32, #tpu.memory_space<vmem>>, vector<1x16xf32>
    %c23_869 = arith.constant 23 : index
    %c0_870 = arith.constant 0 : index
    %566 = vector.load %arg4[%c23_869, %c0_870] : memref<128x16xf32, #tpu.memory_space<vmem>>, vector<1x16xf32>
    tpu.vector_store %arg4[%c23_869, %c0_870], %565 {strides = array<i32>} : memref<128x16xf32, #tpu.memory_space<vmem>>, vector<1x16xf32>,
    %c6_871 = arith.constant 6 : index
    %c0_872 = arith.constant 0 : index
    %567 = vector.load %arg3[%c6_871, %c0_872] : memref<16x64xf32, #tpu.memory_space<vmem>>, vector<1x16xf32>
    %c24_873 = arith.constant 24 : index
    %c0_874 = arith.constant 0 : index
    %568 = vector.load %arg4[%c24_873, %c0_874] : memref<128x16xf32, #tpu.memory_space<vmem>>, vector<1x16xf32>
    tpu.vector_store %arg4[%c24_873, %c0_874], %567 {strides = array<i32>} : memref<128x16xf32, #tpu.memory_space<vmem>>, vector<1x16xf32>,
    %c6_875 = arith.constant 6 : index
    %c16_876 = arith.constant 16 : index
    %569 = vector.load %arg3[%c6_875, %c16_876] : memref<16x64xf32, #tpu.memory_space<vmem>>, vector<1x16xf32>
    %c25_877 = arith.constant 25 : index
    %c0_878 = arith.constant 0 : index
    %570 = vector.load %arg4[%c25_877, %c0_878] : memref<128x16xf32, #tpu.memory_space<vmem>>, vector<1x16xf32>
    tpu.vector_store %arg4[%c25_877, %c0_878], %569 {strides = array<i32>} : memref<128x16xf32, #tpu.memory_space<vmem>>, vector<1x16xf32>,
    %c6_879 = arith.constant 6 : index
    %c32_880 = arith.constant 32 : index
    %571 = vector.load %arg3[%c6_879, %c32_880] : memref<16x64xf32, #tpu.memory_space<vmem>>, vector<1x16xf32>
    %c26_881 = arith.constant 26 : index
    %c0_882 = arith.constant 0 : index
    %572 = vector.load %arg4[%c26_881, %c0_882] : memref<128x16xf32, #tpu.memory_space<vmem>>, vector<1x16xf32>
    tpu.vector_store %arg4[%c26_881, %c0_882], %571 {strides = array<i32>} : memref<128x16xf32, #tpu.memory_space<vmem>>, vector<1x16xf32>,
    %c6_883 = arith.constant 6 : index
    %c48_884 = arith.constant 48 : index
    %573 = vector.load %arg3[%c6_883, %c48_884] : memref<16x64xf32, #tpu.memory_space<vmem>>, vector<1x16xf32>
    %c27_885 = arith.constant 27 : index
    %c0_886 = arith.constant 0 : index
    %574 = vector.load %arg4[%c27_885, %c0_886] : memref<128x16xf32, #tpu.memory_space<vmem>>, vector<1x16xf32>
    tpu.vector_store %arg4[%c27_885, %c0_886], %573 {strides = array<i32>} : memref<128x16xf32, #tpu.memory_space<vmem>>, vector<1x16xf32>,
    %c7_887 = arith.constant 7 : index
    %c0_888 = arith.constant 0 : index
    %575 = vector.load %arg3[%c7_887, %c0_888] : memref<16x64xf32, #tpu.memory_space<vmem>>, vector<1x16xf32>
    %c28_889 = arith.constant 28 : index
    %c0_890 = arith.constant 0 : index
    %576 = vector.load %arg4[%c28_889, %c0_890] : memref<128x16xf32, #tpu.memory_space<vmem>>, vector<1x16xf32>
    tpu.vector_store %arg4[%c28_889, %c0_890], %575 {strides = array<i32>} : memref<128x16xf32, #tpu.memory_space<vmem>>, vector<1x16xf32>,
    %c7_891 = arith.constant 7 : index
    %c16_892 = arith.constant 16 : index
    %577 = vector.load %arg3[%c7_891, %c16_892] : memref<16x64xf32, #tpu.memory_space<vmem>>, vector<1x16xf32>
    %c29_893 = arith.constant 29 : index
    %c0_894 = arith.constant 0 : index
    %578 = vector.load %arg4[%c29_893, %c0_894] : memref<128x16xf32, #tpu.memory_space<vmem>>, vector<1x16xf32>
    tpu.vector_store %arg4[%c29_893, %c0_894], %577 {strides = array<i32>} : memref<128x16xf32, #tpu.memory_space<vmem>>, vector<1x16xf32>,
    %c7_895 = arith.constant 7 : index
    %c32_896 = arith.constant 32 : index
    %579 = vector.load %arg3[%c7_895, %c32_896] : memref<16x64xf32, #tpu.memory_space<vmem>>, vector<1x16xf32>
    %c30_897 = arith.constant 30 : index
    %c0_898 = arith.constant 0 : index
    %580 = vector.load %arg4[%c30_897, %c0_898] : memref<128x16xf32, #tpu.memory_space<vmem>>, vector<1x16xf32>
    tpu.vector_store %arg4[%c30_897, %c0_898], %579 {strides = array<i32>} : memref<128x16xf32, #tpu.memory_space<vmem>>, vector<1x16xf32>,
    %c7_899 = arith.constant 7 : index
    %c48_900 = arith.constant 48 : index
    %581 = vector.load %arg3[%c7_899, %c48_900] : memref<16x64xf32, #tpu.memory_space<vmem>>, vector<1x16xf32>
    %c31_901 = arith.constant 31 : index
    %c0_902 = arith.constant 0 : index
    %582 = vector.load %arg4[%c31_901, %c0_902] : memref<128x16xf32, #tpu.memory_space<vmem>>, vector<1x16xf32>
    tpu.vector_store %arg4[%c31_901, %c0_902], %581 {strides = array<i32>} : memref<128x16xf32, #tpu.memory_space<vmem>>, vector<1x16xf32>,
    %c8_903 = arith.constant 8 : index
    %c0_904 = arith.constant 0 : index
    %583 = vector.load %arg3[%c8_903, %c0_904] : memref<16x64xf32, #tpu.memory_space<vmem>>, vector<1x16xf32>
    %c32_905 = arith.constant 32 : index
    %c0_906 = arith.constant 0 : index
    %584 = vector.load %arg4[%c32_905, %c0_906] : memref<128x16xf32, #tpu.memory_space<vmem>>, vector<1x16xf32>
    tpu.vector_store %arg4[%c32_905, %c0_906], %583 {strides = array<i32>} : memref<128x16xf32, #tpu.memory_space<vmem>>, vector<1x16xf32>,
    %c8_907 = arith.constant 8 : index
    %c16_908 = arith.constant 16 : index
    %585 = vector.load %arg3[%c8_907, %c16_908] : memref<16x64xf32, #tpu.memory_space<vmem>>, vector<1x16xf32>
    %c33_909 = arith.constant 33 : index
    %c0_910 = arith.constant 0 : index
    %586 = vector.load %arg4[%c33_909, %c0_910] : memref<128x16xf32, #tpu.memory_space<vmem>>, vector<1x16xf32>
    tpu.vector_store %arg4[%c33_909, %c0_910], %585 {strides = array<i32>} : memref<128x16xf32, #tpu.memory_space<vmem>>, vector<1x16xf32>,
    %c8_911 = arith.constant 8 : index
    %c32_912 = arith.constant 32 : index
    %587 = vector.load %arg3[%c8_911, %c32_912] : memref<16x64xf32, #tpu.memory_space<vmem>>, vector<1x16xf32>
    %c34_913 = arith.constant 34 : index
    %c0_914 = arith.constant 0 : index
    %588 = vector.load %arg4[%c34_913, %c0_914] : memref<128x16xf32, #tpu.memory_space<vmem>>, vector<1x16xf32>
    tpu.vector_store %arg4[%c34_913, %c0_914], %587 {strides = array<i32>} : memref<128x16xf32, #tpu.memory_space<vmem>>, vector<1x16xf32>,
    %c8_915 = arith.constant 8 : index
    %c48_916 = arith.constant 48 : index
    %589 = vector.load %arg3[%c8_915, %c48_916] : memref<16x64xf32, #tpu.memory_space<vmem>>, vector<1x16xf32>
    %c35_917 = arith.constant 35 : index
    %c0_918 = arith.constant 0 : index
    %590 = vector.load %arg4[%c35_917, %c0_918] : memref<128x16xf32, #tpu.memory_space<vmem>>, vector<1x16xf32>
    tpu.vector_store %arg4[%c35_917, %c0_918], %589 {strides = array<i32>} : memref<128x16xf32, #tpu.memory_space<vmem>>, vector<1x16xf32>,
    %c9_919 = arith.constant 9 : index
    %c0_920 = arith.constant 0 : index
    %591 = vector.load %arg3[%c9_919, %c0_920] : memref<16x64xf32, #tpu.memory_space<vmem>>, vector<1x16xf32>
    %c36_921 = arith.constant 36 : index
    %c0_922 = arith.constant 0 : index
    %592 = vector.load %arg4[%c36_921, %c0_922] : memref<128x16xf32, #tpu.memory_space<vmem>>, vector<1x16xf32>
    tpu.vector_store %arg4[%c36_921, %c0_922], %591 {strides = array<i32>} : memref<128x16xf32, #tpu.memory_space<vmem>>, vector<1x16xf32>,
    %c9_923 = arith.constant 9 : index
    %c16_924 = arith.constant 16 : index
    %593 = vector.load %arg3[%c9_923, %c16_924] : memref<16x64xf32, #tpu.memory_space<vmem>>, vector<1x16xf32>
    %c37_925 = arith.constant 37 : index
    %c0_926 = arith.constant 0 : index
    %594 = vector.load %arg4[%c37_925, %c0_926] : memref<128x16xf32, #tpu.memory_space<vmem>>, vector<1x16xf32>
    tpu.vector_store %arg4[%c37_925, %c0_926], %593 {strides = array<i32>} : memref<128x16xf32, #tpu.memory_space<vmem>>, vector<1x16xf32>,
    %c9_927 = arith.constant 9 : index
    %c32_928 = arith.constant 32 : index
    %595 = vector.load %arg3[%c9_927, %c32_928] : memref<16x64xf32, #tpu.memory_space<vmem>>, vector<1x16xf32>
    %c38_929 = arith.constant 38 : index
    %c0_930 = arith.constant 0 : index
    %596 = vector.load %arg4[%c38_929, %c0_930] : memref<128x16xf32, #tpu.memory_space<vmem>>, vector<1x16xf32>
    tpu.vector_store %arg4[%c38_929, %c0_930], %595 {strides = array<i32>} : memref<128x16xf32, #tpu.memory_space<vmem>>, vector<1x16xf32>,
    %c9_931 = arith.constant 9 : index
    %c48_932 = arith.constant 48 : index
    %597 = vector.load %arg3[%c9_931, %c48_932] : memref<16x64xf32, #tpu.memory_space<vmem>>, vector<1x16xf32>
    %c39_933 = arith.constant 39 : index
    %c0_934 = arith.constant 0 : index
    %598 = vector.load %arg4[%c39_933, %c0_934] : memref<128x16xf32, #tpu.memory_space<vmem>>, vector<1x16xf32>
    tpu.vector_store %arg4[%c39_933, %c0_934], %597 {strides = array<i32>} : memref<128x16xf32, #tpu.memory_space<vmem>>, vector<1x16xf32>,
    %c10_935 = arith.constant 10 : index
    %c0_936 = arith.constant 0 : index
    %599 = vector.load %arg3[%c10_935, %c0_936] : memref<16x64xf32, #tpu.memory_space<vmem>>, vector<1x16xf32>
    %c40_937 = arith.constant 40 : index
    %c0_938 = arith.constant 0 : index
    %600 = vector.load %arg4[%c40_937, %c0_938] : memref<128x16xf32, #tpu.memory_space<vmem>>, vector<1x16xf32>
    tpu.vector_store %arg4[%c40_937, %c0_938], %599 {strides = array<i32>} : memref<128x16xf32, #tpu.memory_space<vmem>>, vector<1x16xf32>,
    %c10_939 = arith.constant 10 : index
    %c16_940 = arith.constant 16 : index
    %601 = vector.load %arg3[%c10_939, %c16_940] : memref<16x64xf32, #tpu.memory_space<vmem>>, vector<1x16xf32>
    %c41_941 = arith.constant 41 : index
    %c0_942 = arith.constant 0 : index
    %602 = vector.load %arg4[%c41_941, %c0_942] : memref<128x16xf32, #tpu.memory_space<vmem>>, vector<1x16xf32>
    tpu.vector_store %arg4[%c41_941, %c0_942], %601 {strides = array<i32>} : memref<128x16xf32, #tpu.memory_space<vmem>>, vector<1x16xf32>,
    %c10_943 = arith.constant 10 : index
    %c32_944 = arith.constant 32 : index
    %603 = vector.load %arg3[%c10_943, %c32_944] : memref<16x64xf32, #tpu.memory_space<vmem>>, vector<1x16xf32>
    %c42_945 = arith.constant 42 : index
    %c0_946 = arith.constant 0 : index
    %604 = vector.load %arg4[%c42_945, %c0_946] : memref<128x16xf32, #tpu.memory_space<vmem>>, vector<1x16xf32>
    tpu.vector_store %arg4[%c42_945, %c0_946], %603 {strides = array<i32>} : memref<128x16xf32, #tpu.memory_space<vmem>>, vector<1x16xf32>,
    %c10_947 = arith.constant 10 : index
    %c48_948 = arith.constant 48 : index
    %605 = vector.load %arg3[%c10_947, %c48_948] : memref<16x64xf32, #tpu.memory_space<vmem>>, vector<1x16xf32>
    %c43_949 = arith.constant 43 : index
    %c0_950 = arith.constant 0 : index
    %606 = vector.load %arg4[%c43_949, %c0_950] : memref<128x16xf32, #tpu.memory_space<vmem>>, vector<1x16xf32>
    tpu.vector_store %arg4[%c43_949, %c0_950], %605 {strides = array<i32>} : memref<128x16xf32, #tpu.memory_space<vmem>>, vector<1x16xf32>,
    %c11_951 = arith.constant 11 : index
    %c0_952 = arith.constant 0 : index
    %607 = vector.load %arg3[%c11_951, %c0_952] : memref<16x64xf32, #tpu.memory_space<vmem>>, vector<1x16xf32>
    %c44_953 = arith.constant 44 : index
    %c0_954 = arith.constant 0 : index
    %608 = vector.load %arg4[%c44_953, %c0_954] : memref<128x16xf32, #tpu.memory_space<vmem>>, vector<1x16xf32>
    tpu.vector_store %arg4[%c44_953, %c0_954], %607 {strides = array<i32>} : memref<128x16xf32, #tpu.memory_space<vmem>>, vector<1x16xf32>,
    %c11_955 = arith.constant 11 : index
    %c16_956 = arith.constant 16 : index
    %609 = vector.load %arg3[%c11_955, %c16_956] : memref<16x64xf32, #tpu.memory_space<vmem>>, vector<1x16xf32>
    %c45_957 = arith.constant 45 : index
    %c0_958 = arith.constant 0 : index
    %610 = vector.load %arg4[%c45_957, %c0_958] : memref<128x16xf32, #tpu.memory_space<vmem>>, vector<1x16xf32>
    tpu.vector_store %arg4[%c45_957, %c0_958], %609 {strides = array<i32>} : memref<128x16xf32, #tpu.memory_space<vmem>>, vector<1x16xf32>,
    %c11_959 = arith.constant 11 : index
    %c32_960 = arith.constant 32 : index
    %611 = vector.load %arg3[%c11_959, %c32_960] : memref<16x64xf32, #tpu.memory_space<vmem>>, vector<1x16xf32>
    %c46_961 = arith.constant 46 : index
    %c0_962 = arith.constant 0 : index
    %612 = vector.load %arg4[%c46_961, %c0_962] : memref<128x16xf32, #tpu.memory_space<vmem>>, vector<1x16xf32>
    tpu.vector_store %arg4[%c46_961, %c0_962], %611 {strides = array<i32>} : memref<128x16xf32, #tpu.memory_space<vmem>>, vector<1x16xf32>,
    %c11_963 = arith.constant 11 : index
    %c48_964 = arith.constant 48 : index
    %613 = vector.load %arg3[%c11_963, %c48_964] : memref<16x64xf32, #tpu.memory_space<vmem>>, vector<1x16xf32>
    %c47_965 = arith.constant 47 : index
    %c0_966 = arith.constant 0 : index
    %614 = vector.load %arg4[%c47_965, %c0_966] : memref<128x16xf32, #tpu.memory_space<vmem>>, vector<1x16xf32>
    tpu.vector_store %arg4[%c47_965, %c0_966], %613 {strides = array<i32>} : memref<128x16xf32, #tpu.memory_space<vmem>>, vector<1x16xf32>,
    %c12_967 = arith.constant 12 : index
    %c0_968 = arith.constant 0 : index
    %615 = vector.load %arg3[%c12_967, %c0_968] : memref<16x64xf32, #tpu.memory_space<vmem>>, vector<1x16xf32>
    %c48_969 = arith.constant 48 : index
    %c0_970 = arith.constant 0 : index
    %616 = vector.load %arg4[%c48_969, %c0_970] : memref<128x16xf32, #tpu.memory_space<vmem>>, vector<1x16xf32>
    tpu.vector_store %arg4[%c48_969, %c0_970], %615 {strides = array<i32>} : memref<128x16xf32, #tpu.memory_space<vmem>>, vector<1x16xf32>,
    %c12_971 = arith.constant 12 : index
    %c16_972 = arith.constant 16 : index
    %617 = vector.load %arg3[%c12_971, %c16_972] : memref<16x64xf32, #tpu.memory_space<vmem>>, vector<1x16xf32>
    %c49_973 = arith.constant 49 : index
    %c0_974 = arith.constant 0 : index
    %618 = vector.load %arg4[%c49_973, %c0_974] : memref<128x16xf32, #tpu.memory_space<vmem>>, vector<1x16xf32>
    tpu.vector_store %arg4[%c49_973, %c0_974], %617 {strides = array<i32>} : memref<128x16xf32, #tpu.memory_space<vmem>>, vector<1x16xf32>,
    %c12_975 = arith.constant 12 : index
    %c32_976 = arith.constant 32 : index
    %619 = vector.load %arg3[%c12_975, %c32_976] : memref<16x64xf32, #tpu.memory_space<vmem>>, vector<1x16xf32>
    %c50_977 = arith.constant 50 : index
    %c0_978 = arith.constant 0 : index
    %620 = vector.load %arg4[%c50_977, %c0_978] : memref<128x16xf32, #tpu.memory_space<vmem>>, vector<1x16xf32>
    tpu.vector_store %arg4[%c50_977, %c0_978], %619 {strides = array<i32>} : memref<128x16xf32, #tpu.memory_space<vmem>>, vector<1x16xf32>,
    %c12_979 = arith.constant 12 : index
    %c48_980 = arith.constant 48 : index
    %621 = vector.load %arg3[%c12_979, %c48_980] : memref<16x64xf32, #tpu.memory_space<vmem>>, vector<1x16xf32>
    %c51_981 = arith.constant 51 : index
    %c0_982 = arith.constant 0 : index
    %622 = vector.load %arg4[%c51_981, %c0_982] : memref<128x16xf32, #tpu.memory_space<vmem>>, vector<1x16xf32>
    tpu.vector_store %arg4[%c51_981, %c0_982], %621 {strides = array<i32>} : memref<128x16xf32, #tpu.memory_space<vmem>>, vector<1x16xf32>,
    %c13_983 = arith.constant 13 : index
    %c0_984 = arith.constant 0 : index
    %623 = vector.load %arg3[%c13_983, %c0_984] : memref<16x64xf32, #tpu.memory_space<vmem>>, vector<1x16xf32>
    %c52_985 = arith.constant 52 : index
    %c0_986 = arith.constant 0 : index
    %624 = vector.load %arg4[%c52_985, %c0_986] : memref<128x16xf32, #tpu.memory_space<vmem>>, vector<1x16xf32>
    tpu.vector_store %arg4[%c52_985, %c0_986], %623 {strides = array<i32>} : memref<128x16xf32, #tpu.memory_space<vmem>>, vector<1x16xf32>,
    %c13_987 = arith.constant 13 : index
    %c16_988 = arith.constant 16 : index
    %625 = vector.load %arg3[%c13_987, %c16_988] : memref<16x64xf32, #tpu.memory_space<vmem>>, vector<1x16xf32>
    %c53_989 = arith.constant 53 : index
    %c0_990 = arith.constant 0 : index
    %626 = vector.load %arg4[%c53_989, %c0_990] : memref<128x16xf32, #tpu.memory_space<vmem>>, vector<1x16xf32>
    tpu.vector_store %arg4[%c53_989, %c0_990], %625 {strides = array<i32>} : memref<128x16xf32, #tpu.memory_space<vmem>>, vector<1x16xf32>,
    %c13_991 = arith.constant 13 : index
    %c32_992 = arith.constant 32 : index
    %627 = vector.load %arg3[%c13_991, %c32_992] : memref<16x64xf32, #tpu.memory_space<vmem>>, vector<1x16xf32>
    %c54_993 = arith.constant 54 : index
    %c0_994 = arith.constant 0 : index
    %628 = vector.load %arg4[%c54_993, %c0_994] : memref<128x16xf32, #tpu.memory_space<vmem>>, vector<1x16xf32>
    tpu.vector_store %arg4[%c54_993, %c0_994], %627 {strides = array<i32>} : memref<128x16xf32, #tpu.memory_space<vmem>>, vector<1x16xf32>,
    %c13_995 = arith.constant 13 : index
    %c48_996 = arith.constant 48 : index
    %629 = vector.load %arg3[%c13_995, %c48_996] : memref<16x64xf32, #tpu.memory_space<vmem>>, vector<1x16xf32>
    %c55_997 = arith.constant 55 : index
    %c0_998 = arith.constant 0 : index
    %630 = vector.load %arg4[%c55_997, %c0_998] : memref<128x16xf32, #tpu.memory_space<vmem>>, vector<1x16xf32>
    tpu.vector_store %arg4[%c55_997, %c0_998], %629 {strides = array<i32>} : memref<128x16xf32, #tpu.memory_space<vmem>>, vector<1x16xf32>,
    %c14_999 = arith.constant 14 : index
    %c0_1000 = arith.constant 0 : index
    %631 = vector.load %arg3[%c14_999, %c0_1000] : memref<16x64xf32, #tpu.memory_space<vmem>>, vector<1x16xf32>
    %c56_1001 = arith.constant 56 : index
    %c0_1002 = arith.constant 0 : index
    %632 = vector.load %arg4[%c56_1001, %c0_1002] : memref<128x16xf32, #tpu.memory_space<vmem>>, vector<1x16xf32>
    tpu.vector_store %arg4[%c56_1001, %c0_1002], %631 {strides = array<i32>} : memref<128x16xf32, #tpu.memory_space<vmem>>, vector<1x16xf32>,
    %c14_1003 = arith.constant 14 : index
    %c16_1004 = arith.constant 16 : index
    %633 = vector.load %arg3[%c14_1003, %c16_1004] : memref<16x64xf32, #tpu.memory_space<vmem>>, vector<1x16xf32>
    %c57_1005 = arith.constant 57 : index
    %c0_1006 = arith.constant 0 : index
    %634 = vector.load %arg4[%c57_1005, %c0_1006] : memref<128x16xf32, #tpu.memory_space<vmem>>, vector<1x16xf32>
    tpu.vector_store %arg4[%c57_1005, %c0_1006], %633 {strides = array<i32>} : memref<128x16xf32, #tpu.memory_space<vmem>>, vector<1x16xf32>,
    %c14_1007 = arith.constant 14 : index
    %c32_1008 = arith.constant 32 : index
    %635 = vector.load %arg3[%c14_1007, %c32_1008] : memref<16x64xf32, #tpu.memory_space<vmem>>, vector<1x16xf32>
    %c58_1009 = arith.constant 58 : index
    %c0_1010 = arith.constant 0 : index
    %636 = vector.load %arg4[%c58_1009, %c0_1010] : memref<128x16xf32, #tpu.memory_space<vmem>>, vector<1x16xf32>
    tpu.vector_store %arg4[%c58_1009, %c0_1010], %635 {strides = array<i32>} : memref<128x16xf32, #tpu.memory_space<vmem>>, vector<1x16xf32>,
    %c14_1011 = arith.constant 14 : index
    %c48_1012 = arith.constant 48 : index
    %637 = vector.load %arg3[%c14_1011, %c48_1012] : memref<16x64xf32, #tpu.memory_space<vmem>>, vector<1x16xf32>
    %c59_1013 = arith.constant 59 : index
    %c0_1014 = arith.constant 0 : index
    %638 = vector.load %arg4[%c59_1013, %c0_1014] : memref<128x16xf32, #tpu.memory_space<vmem>>, vector<1x16xf32>
    tpu.vector_store %arg4[%c59_1013, %c0_1014], %637 {strides = array<i32>} : memref<128x16xf32, #tpu.memory_space<vmem>>, vector<1x16xf32>,
    %c15_1015 = arith.constant 15 : index
    %c0_1016 = arith.constant 0 : index
    %639 = vector.load %arg3[%c15_1015, %c0_1016] : memref<16x64xf32, #tpu.memory_space<vmem>>, vector<1x16xf32>
    %c60_1017 = arith.constant 60 : index
    %c0_1018 = arith.constant 0 : index
    %640 = vector.load %arg4[%c60_1017, %c0_1018] : memref<128x16xf32, #tpu.memory_space<vmem>>, vector<1x16xf32>
    tpu.vector_store %arg4[%c60_1017, %c0_1018], %639 {strides = array<i32>} : memref<128x16xf32, #tpu.memory_space<vmem>>, vector<1x16xf32>,
    %c15_1019 = arith.constant 15 : index
    %c16_1020 = arith.constant 16 : index
    %641 = vector.load %arg3[%c15_1019, %c16_1020] : memref<16x64xf32, #tpu.memory_space<vmem>>, vector<1x16xf32>
    %c61_1021 = arith.constant 61 : index
    %c0_1022 = arith.constant 0 : index
    %642 = vector.load %arg4[%c61_1021, %c0_1022] : memref<128x16xf32, #tpu.memory_space<vmem>>, vector<1x16xf32>
    tpu.vector_store %arg4[%c61_1021, %c0_1022], %641 {strides = array<i32>} : memref<128x16xf32, #tpu.memory_space<vmem>>, vector<1x16xf32>,
    %c15_1023 = arith.constant 15 : index
    %c32_1024 = arith.constant 32 : index
    %643 = vector.load %arg3[%c15_1023, %c32_1024] : memref<16x64xf32, #tpu.memory_space<vmem>>, vector<1x16xf32>
    %c62_1025 = arith.constant 62 : index
    %c0_1026 = arith.constant 0 : index
    %644 = vector.load %arg4[%c62_1025, %c0_1026] : memref<128x16xf32, #tpu.memory_space<vmem>>, vector<1x16xf32>
    tpu.vector_store %arg4[%c62_1025, %c0_1026], %643 {strides = array<i32>} : memref<128x16xf32, #tpu.memory_space<vmem>>, vector<1x16xf32>,
    %c15_1027 = arith.constant 15 : index
    %c48_1028 = arith.constant 48 : index
    %645 = vector.load %arg3[%c15_1027, %c48_1028] : memref<16x64xf32, #tpu.memory_space<vmem>>, vector<1x16xf32>
    %c63_1029 = arith.constant 63 : index
    %c0_1030 = arith.constant 0 : index
    %646 = vector.load %arg4[%c63_1029, %c0_1030] : memref<128x16xf32, #tpu.memory_space<vmem>>, vector<1x16xf32>
    tpu.vector_store %arg4[%c63_1029, %c0_1030], %645 {strides = array<i32>} : memref<128x16xf32, #tpu.memory_space<vmem>>, vector<1x16xf32>,
    %c0_1031 = arith.constant 0 : index
    %c0_1032 = arith.constant 0 : index
    %647 = vector.load %arg4[%c0_1031, %c0_1032] : memref<128x16xf32, #tpu.memory_space<vmem>>, vector<128x16xf32>
    %648 = tpu.transpose %647, [1, 0] : vector<128x16xf32> -> vector<16x128xf32>
    %c1_1033 = arith.constant 1 : index
    %c0_1034 = arith.constant 0 : index
    %c0_1035 = arith.constant 0 : index
    %649 = vector.load %arg2[%c1_1033, %c0_1034, %c0_1035] : memref<2x16x128xf32, #tpu.memory_space<vmem>>, vector<1x16x128xf32>
    %650 = vector.shape_cast %649 : vector<1x16x128xf32> to vector<16x128xf32>
    %651 = vector.shape_cast %648 : vector<16x128xf32> to vector<1x16x128xf32>
    tpu.vector_store %arg2[%c1_1033, %c0_1034, %c0_1035], %651 {strides = array<i32>} : memref<2x16x128xf32, #tpu.memory_space<vmem>>, vector<1x16x128xf32>,
    return
  }
  func.func @transform_0(%arg0: i32) -> (i32, i32, i32) {
    %c0_i32 = arith.constant 0 : i32
    %c0_i32_0 = arith.constant 0 : i32
    %c0_i32_1 = arith.constant 0 : i32
    return %arg0, %c0_i32, %c0_i32_0 : i32, i32, i32
  }
  func.func @transform_1(%arg0: i32) -> (i32, i32, i32) {
    %c0_i32 = arith.constant 0 : i32
    %c0_i32_0 = arith.constant 0 : i32
    %c0_i32_1 = arith.constant 0 : i32
    return %arg0, %c0_i32, %c0_i32_0 : i32, i32, i32
  }
}

</mosaic_0001>

<llo_original>
// kernel: tpu_custom_call.1
$region0: #{tpu_custom_call.1}
  #allocation0 [shape = 'u32[]', space=smem, size = 0x4, offset = 0x4, fixed_abs, tag = 'smem constant byte address 0x4 - core index']
  #allocation1 [shape = 'u32[144,128]{1,0:T(1,128)}', space=vmem, size = 0x12000, scoped, tag = 'internal scratch']
  #allocation2 [shape = 'f32[16,64]{1,0:T(8,128)}', space=vmem, size = 0x2000, scoped, tag = 'scratch operand']
  #allocation3 [shape = 'f32[128,16]{1,0:T(8,128)}', space=vmem, size = 0x10000, scoped, tag = 'scratch operand']
  %s0 = inlined_call_operand.vmem [shape: f32[128,4,4], index: 0, kind: input, shape index: {}]
  %s1 = inlined_call_operand.hbm [shape: f32[2,16,128], index: 1, kind: output, shape index: {}]
  %s2 = sld [smem:[#allocation0]]
  $region14: #{tpu_custom_call.1} parent=0
    _
  %s4 = ssub.s32 1, %s2
  %s5 = scalar_select 0, %s4, %s2
  $region1: #{tpu_custom_call.1} parent=0
    #allocation4 [shape = 'u8[16384]{0}', space=vmem, size = 0x4000, scoped, tag = 'output window, operand 0, single buffered']
    #allocation5 [shape = 's32[1]{0}', space=sflag, size = 0x4, scoped, tag = 'scoped memory for tpu_custom_call.1']
    %6 = vsyncpa [#allocation5], 0
    // Predicated region
    $region2: #{tpu_custom_call.1} parent=1 // pred_check
      _
    $region3: #{tpu_custom_call.1} parent=1 // pred_check_branch
      %8 = sbr.rel (0) target = $region5
    $region4: #{tpu_custom_call.1} parent=1 // pred_region
      _
    $region5: #{tpu_custom_call.1} parent=1 // pred_fallthru
      _
    %vm9 = vcmask 130048
    %10 = vst.msk [vmem:[#allocation3 + $0x40] sm:$0xff] %vm9, 0.0
    %11 = vst.msk [vmem:[#allocation3 + $0x48] sm:$0xff] %vm9, 0.0
    %12 = vst.msk [vmem:[#allocation3 + $0x50] sm:$0xff] %vm9, 0.0
    %13 = vst.msk [vmem:[#allocation3 + $0x58] sm:$0xff] %vm9, 0.0
    %14 = vst.msk [vmem:[#allocation3 + $0x60] sm:$0xff] %vm9, 0.0
    %15 = vst.msk [vmem:[#allocation3 + $0x68] sm:$0xff] %vm9, 0.0
    %16 = vst.msk [vmem:[#allocation3 + $0x70] sm:$0xff] %vm9, 0.0
    %17 = vst.msk [vmem:[#allocation3 + $0x78] sm:$0xff] %vm9, 0.0
    %v18 = vld [vmem:[%s0] sm:$0xf]
    %vm19 = vcmask 27648
    %20 = vst.msk [vmem:[#allocation2] sm:$0xf] %vm19, %v18
    %s21 = scalar_lea.vmem %s0, 4
    %v22 = vld [vmem:[%s21] sm:$0xf]
    %24 = vrot.lane.b32.xlu0 %v22, 4
    %v25 = vpop.permute.xlu0 %24
    %vm27 = vcmask 60448
    %28 = vst.msk [vmem:[#allocation2] sm:$0xf] %vm27, %v25
    %s29 = scalar_lea.vmem %s0, 8
    %v30 = vld [vmem:[%s29] sm:$0xf]
    %32 = vrot.lane.b32.xlu0 %v30, 8
    %v33 = vpop.permute.xlu0 %32
    %vm35 = vcmask 93248
    %36 = vst.msk [vmem:[#allocation2] sm:$0xf] %vm35, %v33
    %s37 = scalar_lea.vmem %s0, 12
    %v38 = vld [vmem:[%s37] sm:$0xf]
    %40 = vrot.lane.b32.xlu0 %v38, 12
    %v41 = vpop.permute.xlu0 %40
    %vm43 = vcmask 126048
    %44 = vst.msk [vmem:[#allocation2] sm:$0xf] %vm43, %v41
    %s45 = scalar_lea.vmem %s0, 16
    %v46 = vld [vmem:[%s45] sm:$0xf]
    %47 = vst.msk [vmem:[#allocation2 + $0x4] sm:$0xf] %vm19, %v46
    %s48 = scalar_lea.vmem %s0, 20
    %v49 = vld [vmem:[%s48] sm:$0xf]
    %51 = vrot.lane.b32.xlu0 %v49, 4
    %v52 = vpop.permute.xlu0 %51
    %54 = vst.msk [vmem:[#allocation2 + $0x4] sm:$0xf] %vm27, %v52
    %s55 = scalar_lea.vmem %s0, 24
    %v56 = vld [vmem:[%s55] sm:$0xf]
    %58 = vrot.lane.b32.xlu0 %v56, 8
    %v59 = vpop.permute.xlu0 %58
    %61 = vst.msk [vmem:[#allocation2 + $0x4] sm:$0xf] %vm35, %v59
    %s62 = scalar_lea.vmem %s0, 28
    %v63 = vld [vmem:[%s62] sm:$0xf]
    %65 = vrot.lane.b32.xlu0 %v63, 12
    %v66 = vpop.permute.xlu0 %65
    %68 = vst.msk [vmem:[#allocation2 + $0x4] sm:$0xf] %vm43, %v66
    %s69 = scalar_lea.vmem %s0, 32
    %v70 = vld [vmem:[%s69] sm:$0xf]
    %71 = vst.msk [vmem:[#allocation2 + $0x8] sm:$0xf] %vm19, %v70
    %s72 = scalar_lea.vmem %s0, 36
    %v73 = vld [vmem:[%s72] sm:$0xf]
    %75 = vrot.lane.b32.xlu0 %v73, 4
    %v76 = vpop.permute.xlu0 %75
    %78 = vst.msk [vmem:[#allocation2 + $0x8] sm:$0xf] %vm27, %v76
    %s79 = scalar_lea.vmem %s0, 40
    %v80 = vld [vmem:[%s79] sm:$0xf]
    %82 = vrot.lane.b32.xlu0 %v80, 8
    %v83 = vpop.permute.xlu0 %82
    %85 = vst.msk [vmem:[#allocation2 + $0x8] sm:$0xf] %vm35, %v83
    %s86 = scalar_lea.vmem %s0, 44
    %v87 = vld [vmem:[%s86] sm:$0xf]
    %89 = vrot.lane.b32.xlu0 %v87, 12
    %v90 = vpop.permute.xlu0 %89
    %92 = vst.msk [vmem:[#allocation2 + $0x8] sm:$0xf] %vm43, %v90
    %s93 = scalar_lea.vmem %s0, 48
    %v94 = vld [vmem:[%s93] sm:$0xf]
    %95 = vst.msk [vmem:[#allocation2 + $0xc] sm:$0xf] %vm19, %v94
    %s96 = scalar_lea.vmem %s0, 52
    %v97 = vld [vmem:[%s96] sm:$0xf]
    %99 = vrot.lane.b32.xlu0 %v97, 4
    %v100 = vpop.permute.xlu0 %99
    %102 = vst.msk [vmem:[#allocation2 + $0xc] sm:$0xf] %vm27, %v100
    %s103 = scalar_lea.vmem %s0, 56
    %v104 = vld [vmem:[%s103] sm:$0xf]
    %106 = vrot.lane.b32.xlu0 %v104, 8
    %v107 = vpop.permute.xlu0 %106
    %109 = vst.msk [vmem:[#allocation2 + $0xc] sm:$0xf] %vm35, %v107
    %s110 = scalar_lea.vmem %s0, 60
    %v111 = vld [vmem:[%s110] sm:$0xf]
    %113 = vrot.lane.b32.xlu0 %v111, 12
    %v114 = vpop.permute.xlu0 %113
    %116 = vst.msk [vmem:[#allocation2 + $0xc] sm:$0xf] %vm43, %v114
    %s117 = scalar_lea.vmem %s0, 64
    %v118 = vld [vmem:[%s117] sm:$0xf]
    %120 = vrot.lane.b32.xlu0 %v118, 16
    %v121 = vpop.permute.xlu0 %120
    %vm123 = vcmask 158848
    %124 = vst.msk [vmem:[#allocation2] sm:$0xf] %vm123, %v121
    %s125 = scalar_lea.vmem %s0, 68
    %v126 = vld [vmem:[%s125] sm:$0xf]
    %128 = vrot.lane.b32.xlu0 %v126, 20
    %v129 = vpop.permute.xlu0 %128
    %vm131 = vcmask 191648
    %132 = vst.msk [vmem:[#allocation2] sm:$0xf] %vm131, %v129
    %s133 = scalar_lea.vmem %s0, 72
    %v134 = vld [vmem:[%s133] sm:$0xf]
    %136 = vrot.lane.b32.xlu0 %v134, 24
    %v137 = vpop.permute.xlu0 %136
    %vm139 = vcmask 224448
    %140 = vst.msk [vmem:[#allocation2] sm:$0xf] %vm139, %v137
    %s141 = scalar_lea.vmem %s0, 76
    %v142 = vld [vmem:[%s141] sm:$0xf]
    %144 = vrot.lane.b32.xlu0 %v142, 28
    %v145 = vpop.permute.xlu0 %144
    %vm147 = vcmask 257248
    %148 = vst.msk [vmem:[#allocation2] sm:$0xf] %vm147, %v145
    %s149 = scalar_lea.vmem %s0, 80
    %v150 = vld [vmem:[%s149] sm:$0xf]
    %152 = vrot.lane.b32.xlu0 %v150, 16
    %v153 = vpop.permute.xlu0 %152
    %155 = vst.msk [vmem:[#allocation2 + $0x4] sm:$0xf] %vm123, %v153
    %s156 = scalar_lea.vmem %s0, 84
    %v157 = vld [vmem:[%s156] sm:$0xf]
    %159 = vrot.lane.b32.xlu0 %v157, 20
    %v160 = vpop.permute.xlu0 %159
    %162 = vst.msk [vmem:[#allocation2 + $0x4] sm:$0xf] %vm131, %v160
    %s163 = scalar_lea.vmem %s0, 88
    %v164 = vld [vmem:[%s163] sm:$0xf]
    %166 = vrot.lane.b32.xlu0 %v164, 24
    %v167 = vpop.permute.xlu0 %166
    %169 = vst.msk [vmem:[#allocation2 + $0x4] sm:$0xf] %vm139, %v167
    %s170 = scalar_lea.vmem %s0, 92
    %v171 = vld [vmem:[%s170] sm:$0xf]
    %173 = vrot.lane.b32.xlu0 %v171, 28
    %v174 = vpop.permute.xlu0 %173
    %176 = vst.msk [vmem:[#allocation2 + $0x4] sm:$0xf] %vm147, %v174
    %s177 = scalar_lea.vmem %s0, 96
    %v178 = vld [vmem:[%s177] sm:$0xf]
    %180 = vrot.lane.b32.xlu0 %v178, 16
    %v181 = vpop.permute.xlu0 %180
    %183 = vst.msk [vmem:[#allocation2 + $0x8] sm:$0xf] %vm123, %v181
    %s184 = scalar_lea.vmem %s0, 100
    %v185 = vld [vmem:[%s184] sm:$0xf]
    %187 = vrot.lane.b32.xlu0 %v185, 20
    %v188 = vpop.permute.xlu0 %187
    %190 = vst.msk [vmem:[#allocation2 + $0x8] sm:$0xf] %vm131, %v188
    %s191 = scalar_lea.vmem %s0, 104
    %v192 = vld [vmem:[%s191] sm:$0xf]
    %194 = vrot.lane.b32.xlu0 %v192, 24
    %v195 = vpop.permute.xlu0 %194
    %197 = vst.msk [vmem:[#allocation2 + $0x8] sm:$0xf] %vm139, %v195
    %s198 = scalar_lea.vmem %s0, 108
    %v199 = vld [vmem:[%s198] sm:$0xf]
    %201 = vrot.lane.b32.xlu0 %v199, 28
    %v202 = vpop.permute.xlu0 %201
    %204 = vst.msk [vmem:[#allocation2 + $0x8] sm:$0xf] %vm147, %v202
    %s205 = scalar_lea.vmem %s0, 112
    %v206 = vld [vmem:[%s205] sm:$0xf]
    %208 = vrot.lane.b32.xlu0 %v206, 16
    %v209 = vpop.permute.xlu0 %208
    %211 = vst.msk [vmem:[#allocation2 + $0xc] sm:$0xf] %vm123, %v209
    %s212 = scalar_lea.vmem %s0, 116
    %v213 = vld [vmem:[%s212] sm:$0xf]
    %215 = vrot.lane.b32.xlu0 %v213, 20
    %v216 = vpop.permute.xlu0 %215
    %218 = vst.msk [vmem:[#allocation2 + $0xc] sm:$0xf] %vm131, %v216
    %s219 = scalar_lea.vmem %s0, 120
    %v220 = vld [vmem:[%s219] sm:$0xf]
    %222 = vrot.lane.b32.xlu0 %v220, 24
    %v223 = vpop.permute.xlu0 %222
    %225 = vst.msk [vmem:[#allocation2 + $0xc] sm:$0xf] %vm139, %v223
    %s226 = scalar_lea.vmem %s0, 124
    %v227 = vld [vmem:[%s226] sm:$0xf]
    %229 = vrot.lane.b32.xlu0 %v227, 28
    %v230 = vpop.permute.xlu0 %229
    %232 = vst.msk [vmem:[#allocation2 + $0xc] sm:$0xf] %vm147, %v230
    %s233 = scalar_lea.vmem %s0, 128
    %v234 = vld [vmem:[%s233] sm:$0xf]
    %236 = vrot.lane.b32.xlu0 %v234, 32
    %v237 = vpop.permute.xlu0 %236
    %vm239 = vcmask 290048
    %240 = vst.msk [vmem:[#allocation2] sm:$0xf] %vm239, %v237
    %s241 = scalar_lea.vmem %s0, 132
    %v242 = vld [vmem:[%s241] sm:$0xf]
    %244 = vrot.lane.b32.xlu0 %v242, 36
    %v245 = vpop.permute.xlu0 %244
    %vm247 = vcmask 322848
    %248 = vst.msk [vmem:[#allocation2] sm:$0xf] %vm247, %v245
    %s249 = scalar_lea.vmem %s0, 136
    %v250 = vld [vmem:[%s249] sm:$0xf]
    %252 = vrot.lane.b32.xlu0 %v250, 40
    %v253 = vpop.permute.xlu0 %252
    %vm255 = vcmask 355648
    %256 = vst.msk [vmem:[#allocation2] sm:$0xf] %vm255, %v253
    %s257 = scalar_lea.vmem %s0, 140
    %v258 = vld [vmem:[%s257] sm:$0xf]
    %260 = vrot.lane.b32.xlu0 %v258, 44
    %v261 = vpop.permute.xlu0 %260
    %vm263 = vcmask 388448
    %264 = vst.msk [vmem:[#allocation2] sm:$0xf] %vm263, %v261
    %s265 = scalar_lea.vmem %s0, 144
    %v266 = vld [vmem:[%s265] sm:$0xf]
    %268 = vrot.lane.b32.xlu0 %v266, 32
    %v269 = vpop.permute.xlu0 %268
    %271 = vst.msk [vmem:[#allocation2 + $0x4] sm:$0xf] %vm239, %v269
    %s272 = scalar_lea.vmem %s0, 148
    %v273 = vld [vmem:[%s272] sm:$0xf]
    %275 = vrot.lane.b32.xlu0 %v273, 36
    %v276 = vpop.permute.xlu0 %275
    %278 = vst.msk [vmem:[#allocation2 + $0x4] sm:$0xf] %vm247, %v276
    %s279 = scalar_lea.vmem %s0, 152
    %v280 = vld [vmem:[%s279] sm:$0xf]
    %282 = vrot.lane.b32.xlu0 %v280, 40
    %v283 = vpop.permute.xlu0 %282
    %285 = vst.msk [vmem:[#allocation2 + $0x4] sm:$0xf] %vm255, %v283
    %s286 = scalar_lea.vmem %s0, 156
    %v287 = vld [vmem:[%s286] sm:$0xf]
    %289 = vrot.lane.b32.xlu0 %v287, 44
    %v290 = vpop.permute.xlu0 %289
    %292 = vst.msk [vmem:[#allocation2 + $0x4] sm:$0xf] %vm263, %v290
    %s293 = scalar_lea.vmem %s0, 160
    %v294 = vld [vmem:[%s293] sm:$0xf]
    %296 = vrot.lane.b32.xlu0 %v294, 32
    %v297 = vpop.permute.xlu0 %296
    %299 = vst.msk [vmem:[#allocation2 + $0x8] sm:$0xf] %vm239, %v297
    %s300 = scalar_lea.vmem %s0, 164
    %v301 = vld [vmem:[%s300] sm:$0xf]
    %303 = vrot.lane.b32.xlu0 %v301, 36
    %v304 = vpop.permute.xlu0 %303
    %306 = vst.msk [vmem:[#allocation2 + $0x8] sm:$0xf] %vm247, %v304
    %s307 = scalar_lea.vmem %s0, 168
    %v308 = vld [vmem:[%s307] sm:$0xf]
    %310 = vrot.lane.b32.xlu0 %v308, 40
    %v311 = vpop.permute.xlu0 %310
    %313 = vst.msk [vmem:[#allocation2 + $0x8] sm:$0xf] %vm255, %v311
    %s314 = scalar_lea.vmem %s0, 172
    %v315 = vld [vmem:[%s314] sm:$0xf]
    %317 = vrot.lane.b32.xlu0 %v315, 44
    %v318 = vpop.permute.xlu0 %317
    %320 = vst.msk [vmem:[#allocation2 + $0x8] sm:$0xf] %vm263, %v318
    %s321 = scalar_lea.vmem %s0, 176
    %v322 = vld [vmem:[%s321] sm:$0xf]
    %324 = vrot.lane.b32.xlu0 %v322, 32
    %v325 = vpop.permute.xlu0 %324
    %327 = vst.msk [vmem:[#allocation2 + $0xc] sm:$0xf] %vm239, %v325
    %s328 = scalar_lea.vmem %s0, 180
    %v329 = vld [vmem:[%s328] sm:$0xf]
    %331 = vrot.lane.b32.xlu0 %v329, 36
    %v332 = vpop.permute.xlu0 %331
    %334 = vst.msk [vmem:[#allocation2 + $0xc] sm:$0xf] %vm247, %v332
    %s335 = scalar_lea.vmem %s0, 184
    %v336 = vld [vmem:[%s335] sm:$0xf]
    %338 = vrot.lane.b32.xlu0 %v336, 40
    %v339 = vpop.permute.xlu0 %338
    %341 = vst.msk [vmem:[#allocation2 + $0xc] sm:$0xf] %vm255, %v339
    %s342 = scalar_lea.vmem %s0, 188
    %v343 = vld [vmem:[%s342] sm:$0xf]
    %345 = vrot.lane.b32.xlu0 %v343, 44
    %v346 = vpop.permute.xlu0 %345
    %348 = vst.msk [vmem:[#allocation2 + $0xc] sm:$0xf] %vm263, %v346
    %s349 = scalar_lea.vmem %s0, 192
    %v350 = vld [vmem:[%s349] sm:$0xf]
    %352 = vrot.lane.b32.xlu0 %v350, 48
    %v353 = vpop.permute.xlu0 %352
    %vm355 = vcmask 421248
    %356 = vst.msk [vmem:[#allocation2] sm:$0xf] %vm355, %v353
    %s357 = scalar_lea.vmem %s0, 196
    %v358 = vld [vmem:[%s357] sm:$0xf]
    %360 = vrot.lane.b32.xlu0 %v358, 52
    %v361 = vpop.permute.xlu0 %360
    %vm363 = vcmask 454048
    %364 = vst.msk [vmem:[#allocation2] sm:$0xf] %vm363, %v361
    %s365 = scalar_lea.vmem %s0, 200
    %v366 = vld [vmem:[%s365] sm:$0xf]
    %368 = vrot.lane.b32.xlu0 %v366, 56
    %v369 = vpop.permute.xlu0 %368
    %vm371 = vcmask 486848
    %372 = vst.msk [vmem:[#allocation2] sm:$0xf] %vm371, %v369
    %s373 = scalar_lea.vmem %s0, 204
    %v374 = vld [vmem:[%s373] sm:$0xf]
    %376 = vrot.lane.b32.xlu0 %v374, 60
    %v377 = vpop.permute.xlu0 %376
    %vm379 = vcmask 519648
    %380 = vst.msk [vmem:[#allocation2] sm:$0xf] %vm379, %v377
    %s381 = scalar_lea.vmem %s0, 208
    %v382 = vld [vmem:[%s381] sm:$0xf]
    %384 = vrot.lane.b32.xlu0 %v382, 48
    %v385 = vpop.permute.xlu0 %384
    %387 = vst.msk [vmem:[#allocation2 + $0x4] sm:$0xf] %vm355, %v385
    %s388 = scalar_lea.vmem %s0, 212
    %v389 = vld [vmem:[%s388] sm:$0xf]
    %391 = vrot.lane.b32.xlu0 %v389, 52
    %v392 = vpop.permute.xlu0 %391
    %394 = vst.msk [vmem:[#allocation2 + $0x4] sm:$0xf] %vm363, %v392
    %s395 = scalar_lea.vmem %s0, 216
    %v396 = vld [vmem:[%s395] sm:$0xf]
    %398 = vrot.lane.b32.xlu0 %v396, 56
    %v399 = vpop.permute.xlu0 %398
    %401 = vst.msk [vmem:[#allocation2 + $0x4] sm:$0xf] %vm371, %v399
    %s402 = scalar_lea.vmem %s0, 220
    %v403 = vld [vmem:[%s402] sm:$0xf]
    %405 = vrot.lane.b32.xlu0 %v403, 60
    %v406 = vpop.permute.xlu0 %405
    %408 = vst.msk [vmem:[#allocation2 + $0x4] sm:$0xf] %vm379, %v406
    %s409 = scalar_lea.vmem %s0, 224
    %v410 = vld [vmem:[%s409] sm:$0xf]
    %412 = vrot.lane.b32.xlu0 %v410, 48
    %v413 = vpop.permute.xlu0 %412
    %415 = vst.msk [vmem:[#allocation2 + $0x8] sm:$0xf] %vm355, %v413
    %s416 = scalar_lea.vmem %s0, 228
    %v417 = vld [vmem:[%s416] sm:$0xf]
    %419 = vrot.lane.b32.xlu0 %v417, 52
    %v420 = vpop.permute.xlu0 %419
    %422 = vst.msk [vmem:[#allocation2 + $0x8] sm:$0xf] %vm363, %v420
    %s423 = scalar_lea.vmem %s0, 232
    %v424 = vld [vmem:[%s423] sm:$0xf]
    %426 = vrot.lane.b32.xlu0 %v424, 56
    %v427 = vpop.permute.xlu0 %426
    %429 = vst.msk [vmem:[#allocation2 + $0x8] sm:$0xf] %vm371, %v427
    %s430 = scalar_lea.vmem %s0, 236
    %v431 = vld [vmem:[%s430] sm:$0xf]
    %433 = vrot.lane.b32.xlu0 %v431, 60
    %v434 = vpop.permute.xlu0 %433
    %436 = vst.msk [vmem:[#allocation2 + $0x8] sm:$0xf] %vm379, %v434
    %s437 = scalar_lea.vmem %s0, 240
    %v438 = vld [vmem:[%s437] sm:$0xf]
    %440 = vrot.lane.b32.xlu0 %v438, 48
    %v441 = vpop.permute.xlu0 %440
    %443 = vst.msk [vmem:[#allocation2 + $0xc] sm:$0xf] %vm355, %v441
    %s444 = scalar_lea.vmem %s0, 244
    %v445 = vld [vmem:[%s444] sm:$0xf]
    %447 = vrot.lane.b32.xlu0 %v445, 52
    %v448 = vpop.permute.xlu0 %447
    %450 = vst.msk [vmem:[#allocation2 + $0xc] sm:$0xf] %vm363, %v448
    %s451 = scalar_lea.vmem %s0, 248
    %v452 = vld [vmem:[%s451] sm:$0xf]
    %454 = vrot.lane.b32.xlu0 %v452, 56
    %v455 = vpop.permute.xlu0 %454
    %457 = vst.msk [vmem:[#allocation2 + $0xc] sm:$0xf] %vm371, %v455
    %s458 = scalar_lea.vmem %s0, 252
    %v459 = vld [vmem:[%s458] sm:$0xf]
    %461 = vrot.lane.b32.xlu0 %v459, 60
    %v462 = vpop.permute.xlu0 %461
    %464 = vst.msk [vmem:[#allocation2 + $0xc] sm:$0xf] %vm379, %v462
    %v465 = vld [vmem:[#allocation2] sm:$0x1]
    %vm466 = vcmask 122880
    %467 = vst.msk [vmem:[#allocation3] sm:$0x1] %vm466, %v465
    %v468 = vld [vmem:[#allocation2] sm:$0x1]
    %470 = vrot.lane.b32.xlu0 %v468, 112
    %v471 = vpop.permute.xlu0 %470
    %473 = vst.msk [vmem:[#allocation3 + $0x1] sm:$0x1] %vm466, %v471
    %v474 = vld [vmem:[#allocation2] sm:$0x1]
    %476 = vrot.lane.b32.xlu0 %v474, 96
    %v477 = vpop.permute.xlu0 %476
    %479 = vst.msk [vmem:[#allocation3 + $0x2] sm:$0x1] %vm466, %v477
    %v480 = vld [vmem:[#allocation2] sm:$0x1]
    %482 = vrot.lane.b32.xlu0 %v480, 80
    %v483 = vpop.permute.xlu0 %482
    %485 = vst.msk [vmem:[#allocation3 + $0x3] sm:$0x1] %vm466, %v483
    %v486 = vld [vmem:[#allocation2 + $0x1] sm:$0x1]
    %487 = vst.msk [vmem:[#allocation3 + $0x4] sm:$0x1] %vm466, %v486
    %v488 = vld [vmem:[#allocation2 + $0x1] sm:$0x1]
    %490 = vrot.lane.b32.xlu0 %v488, 112
    %v491 = vpop.permute.xlu0 %490
    %493 = vst.msk [vmem:[#allocation3 + $0x5] sm:$0x1] %vm466, %v491
    %v494 = vld [vmem:[#allocation2 + $0x1] sm:$0x1]
    %496 = vrot.lane.b32.xlu0 %v494, 96
    %v497 = vpop.permute.xlu0 %496
    %499 = vst.msk [vmem:[#allocation3 + $0x6] sm:$0x1] %vm466, %v497
    %v500 = vld [vmem:[#allocation2 + $0x1] sm:$0x1]
    %502 = vrot.lane.b32.xlu0 %v500, 80
    %v503 = vpop.permute.xlu0 %502
    %505 = vst.msk [vmem:[#allocation3 + $0x7] sm:$0x1] %vm466, %v503
    %v506 = vld [vmem:[#allocation2 + $0x2] sm:$0x1]
    %507 = vst.msk [vmem:[#allocation3 + $0x8] sm:$0x1] %vm466, %v506
    %v508 = vld [vmem:[#allocation2 + $0x2] sm:$0x1]
    %510 = vrot.lane.b32.xlu0 %v508, 112
    %v511 = vpop.permute.xlu0 %510
    %513 = vst.msk [vmem:[#allocation3 + $0x9] sm:$0x1] %vm466, %v511
    %v514 = vld [vmem:[#allocation2 + $0x2] sm:$0x1]
    %516 = vrot.lane.b32.xlu0 %v514, 96
    %v517 = vpop.permute.xlu0 %516
    %519 = vst.msk [vmem:[#allocation3 + $0xa] sm:$0x1] %vm466, %v517
    %v520 = vld [vmem:[#allocation2 + $0x2] sm:$0x1]
    %522 = vrot.lane.b32.xlu0 %v520, 80
    %v523 = vpop.permute.xlu0 %522
    %525 = vst.msk [vmem:[#allocation3 + $0xb] sm:$0x1] %vm466, %v523
    %v526 = vld [vmem:[#allocation2 + $0x3] sm:$0x1]
    %527 = vst.msk [vmem:[#allocation3 + $0xc] sm:$0x1] %vm466, %v526
    %v528 = vld [vmem:[#allocation2 + $0x3] sm:$0x1]
    %530 = vrot.lane.b32.xlu0 %v528, 112
    %v531 = vpop.permute.xlu0 %530
    %533 = vst.msk [vmem:[#allocation3 + $0xd] sm:$0x1] %vm466, %v531
    %v534 = vld [vmem:[#allocation2 + $0x3] sm:$0x1]
    %536 = vrot.lane.b32.xlu0 %v534, 96
    %v537 = vpop.permute.xlu0 %536
    %539 = vst.msk [vmem:[#allocation3 + $0xe] sm:$0x1] %vm466, %v537
    %v540 = vld [vmem:[#allocation2 + $0x3] sm:$0x1]
    %542 = vrot.lane.b32.xlu0 %v540, 80
    %v543 = vpop.permute.xlu0 %542
    %545 = vst.msk [vmem:[#allocation3 + $0xf] sm:$0x1] %vm466, %v543
    %v546 = vld [vmem:[#allocation2 + $0x4] sm:$0x1]
    %547 = vst.msk [vmem:[#allocation3 + $0x10] sm:$0x1] %vm466, %v546
    %v548 = vld [vmem:[#allocation2 + $0x4] sm:$0x1]
    %550 = vrot.lane.b32.xlu0 %v548, 112
    %v551 = vpop.permute.xlu0 %550
    %553 = vst.msk [vmem:[#allocation3 + $0x11] sm:$0x1] %vm466, %v551
    %v554 = vld [vmem:[#allocation2 + $0x4] sm:$0x1]
    %556 = vrot.lane.b32.xlu0 %v554, 96
    %v557 = vpop.permute.xlu0 %556
    %559 = vst.msk [vmem:[#allocation3 + $0x12] sm:$0x1] %vm466, %v557
    %v560 = vld [vmem:[#allocation2 + $0x4] sm:$0x1]
    %562 = vrot.lane.b32.xlu0 %v560, 80
    %v563 = vpop.permute.xlu0 %562
    %565 = vst.msk [vmem:[#allocation3 + $0x13] sm:$0x1] %vm466, %v563
    %v566 = vld [vmem:[#allocation2 + $0x5] sm:$0x1]
    %567 = vst.msk [vmem:[#allocation3 + $0x14] sm:$0x1] %vm466, %v566
    %v568 = vld [vmem:[#allocation2 + $0x5] sm:$0x1]
    %570 = vrot.lane.b32.xlu0 %v568, 112
    %v571 = vpop.permute.xlu0 %570
    %573 = vst.msk [vmem:[#allocation3 + $0x15] sm:$0x1] %vm466, %v571
    %v574 = vld [vmem:[#allocation2 + $0x5] sm:$0x1]
    %576 = vrot.lane.b32.xlu0 %v574, 96
    %v577 = vpop.permute.xlu0 %576
    %579 = vst.msk [vmem:[#allocation3 + $0x16] sm:$0x1] %vm466, %v577
    %v580 = vld [vmem:[#allocation2 + $0x5] sm:$0x1]
    %582 = vrot.lane.b32.xlu0 %v580, 80
    %v583 = vpop.permute.xlu0 %582
    %585 = vst.msk [vmem:[#allocation3 + $0x17] sm:$0x1] %vm466, %v583
    %v586 = vld [vmem:[#allocation2 + $0x6] sm:$0x1]
    %587 = vst.msk [vmem:[#allocation3 + $0x18] sm:$0x1] %vm466, %v586
    %v588 = vld [vmem:[#allocation2 + $0x6] sm:$0x1]
    %590 = vrot.lane.b32.xlu0 %v588, 112
    %v591 = vpop.permute.xlu0 %590
    %593 = vst.msk [vmem:[#allocation3 + $0x19] sm:$0x1] %vm466, %v591
    %v594 = vld [vmem:[#allocation2 + $0x6] sm:$0x1]
    %596 = vrot.lane.b32.xlu0 %v594, 96
    %v597 = vpop.permute.xlu0 %596
    %599 = vst.msk [vmem:[#allocation3 + $0x1a] sm:$0x1] %vm466, %v597
    %v600 = vld [vmem:[#allocation2 + $0x6] sm:$0x1]
    %602 = vrot.lane.b32.xlu0 %v600, 80
    %v603 = vpop.permute.xlu0 %602
    %605 = vst.msk [vmem:[#allocation3 + $0x1b] sm:$0x1] %vm466, %v603
    %v606 = vld [vmem:[#allocation2 + $0x7] sm:$0x1]
    %607 = vst.msk [vmem:[#allocation3 + $0x1c] sm:$0x1] %vm466, %v606
    %v608 = vld [vmem:[#allocation2 + $0x7] sm:$0x1]
    %610 = vrot.lane.b32.xlu0 %v608, 112
    %v611 = vpop.permute.xlu0 %610
    %613 = vst.msk [vmem:[#allocation3 + $0x1d] sm:$0x1] %vm466, %v611
    %v614 = vld [vmem:[#allocation2 + $0x7] sm:$0x1]
    %616 = vrot.lane.b32.xlu0 %v614, 96
    %v617 = vpop.permute.xlu0 %616
    %619 = vst.msk [vmem:[#allocation3 + $0x1e] sm:$0x1] %vm466, %v617
    %v620 = vld [vmem:[#allocation2 + $0x7] sm:$0x1]
    %622 = vrot.lane.b32.xlu0 %v620, 80
    %v623 = vpop.permute.xlu0 %622
    %625 = vst.msk [vmem:[#allocation3 + $0x1f] sm:$0x1] %vm466, %v623
    %v626 = vld [vmem:[#allocation2 + $0x8] sm:$0x1]
    %627 = vst.msk [vmem:[#allocation3 + $0x20] sm:$0x1] %vm466, %v626
    %v628 = vld [vmem:[#allocation2 + $0x8] sm:$0x1]
    %630 = vrot.lane.b32.xlu0 %v628, 112
    %v631 = vpop.permute.xlu0 %630
    %633 = vst.msk [vmem:[#allocation3 + $0x21] sm:$0x1] %vm466, %v631
    %v634 = vld [vmem:[#allocation2 + $0x8] sm:$0x1]
    %636 = vrot.lane.b32.xlu0 %v634, 96
    %v637 = vpop.permute.xlu0 %636
    %639 = vst.msk [vmem:[#allocation3 + $0x22] sm:$0x1] %vm466, %v637
    %v640 = vld [vmem:[#allocation2 + $0x8] sm:$0x1]
    %642 = vrot.lane.b32.xlu0 %v640, 80
    %v643 = vpop.permute.xlu0 %642
    %645 = vst.msk [vmem:[#allocation3 + $0x23] sm:$0x1] %vm466, %v643
    %v646 = vld [vmem:[#allocation2 + $0x9] sm:$0x1]
    %647 = vst.msk [vmem:[#allocation3 + $0x24] sm:$0x1] %vm466, %v646
    %v648 = vld [vmem:[#allocation2 + $0x9] sm:$0x1]
    %650 = vrot.lane.b32.xlu0 %v648, 112
    %v651 = vpop.permute.xlu0 %650
    %653 = vst.msk [vmem:[#allocation3 + $0x25] sm:$0x1] %vm466, %v651
    %v654 = vld [vmem:[#allocation2 + $0x9] sm:$0x1]
    %656 = vrot.lane.b32.xlu0 %v654, 96
    %v657 = vpop.permute.xlu0 %656
    %659 = vst.msk [vmem:[#allocation3 + $0x26] sm:$0x1] %vm466, %v657
    %v660 = vld [vmem:[#allocation2 + $0x9] sm:$0x1]
    %662 = vrot.lane.b32.xlu0 %v660, 80
    %v663 = vpop.permute.xlu0 %662
    %665 = vst.msk [vmem:[#allocation3 + $0x27] sm:$0x1] %vm466, %v663
    %v666 = vld [vmem:[#allocation2 + $0xa] sm:$0x1]
    %667 = vst.msk [vmem:[#allocation3 + $0x28] sm:$0x1] %vm466, %v666
    %v668 = vld [vmem:[#allocation2 + $0xa] sm:$0x1]
    %670 = vrot.lane.b32.xlu0 %v668, 112
    %v671 = vpop.permute.xlu0 %670
    %673 = vst.msk [vmem:[#allocation3 + $0x29] sm:$0x1] %vm466, %v671
    %v674 = vld [vmem:[#allocation2 + $0xa] sm:$0x1]
    %676 = vrot.lane.b32.xlu0 %v674, 96
    %v677 = vpop.permute.xlu0 %676
    %679 = vst.msk [vmem:[#allocation3 + $0x2a] sm:$0x1] %vm466, %v677
    %v680 = vld [vmem:[#allocation2 + $0xa] sm:$0x1]
    %682 = vrot.lane.b32.xlu0 %v680, 80
    %v683 = vpop.permute.xlu0 %682
    %685 = vst.msk [vmem:[#allocation3 + $0x2b] sm:$0x1] %vm466, %v683
    %v686 = vld [vmem:[#allocation2 + $0xb] sm:$0x1]
    %687 = vst.msk [vmem:[#allocation3 + $0x2c] sm:$0x1] %vm466, %v686
    %v688 = vld [vmem:[#allocation2 + $0xb] sm:$0x1]
    %690 = vrot.lane.b32.xlu0 %v688, 112
    %v691 = vpop.permute.xlu0 %690
    %693 = vst.msk [vmem:[#allocation3 + $0x2d] sm:$0x1] %vm466, %v691
    %v694 = vld [vmem:[#allocation2 + $0xb] sm:$0x1]
    %696 = vrot.lane.b32.xlu0 %v694, 96
    %v697 = vpop.permute.xlu0 %696
    %699 = vst.msk [vmem:[#allocation3 + $0x2e] sm:$0x1] %vm466, %v697
    %v700 = vld [vmem:[#allocation2 + $0xb] sm:$0x1]
    %702 = vrot.lane.b32.xlu0 %v700, 80
    %v703 = vpop.permute.xlu0 %702
    %705 = vst.msk [vmem:[#allocation3 + $0x2f] sm:$0x1] %vm466, %v703
    %v706 = vld [vmem:[#allocation2 + $0xc] sm:$0x1]
    %707 = vst.msk [vmem:[#allocation3 + $0x30] sm:$0x1] %vm466, %v706
    %v708 = vld [vmem:[#allocation2 + $0xc] sm:$0x1]
    %710 = vrot.lane.b32.xlu0 %v708, 112
    %v711 = vpop.permute.xlu0 %710
    %713 = vst.msk [vmem:[#allocation3 + $0x31] sm:$0x1] %vm466, %v711
    %v714 = vld [vmem:[#allocation2 + $0xc] sm:$0x1]
    %716 = vrot.lane.b32.xlu0 %v714, 96
    %v717 = vpop.permute.xlu0 %716
    %719 = vst.msk [vmem:[#allocation3 + $0x32] sm:$0x1] %vm466, %v717
    %v720 = vld [vmem:[#allocation2 + $0xc] sm:$0x1]
    %722 = vrot.lane.b32.xlu0 %v720, 80
    %v723 = vpop.permute.xlu0 %722
    %725 = vst.msk [vmem:[#allocation3 + $0x33] sm:$0x1] %vm466, %v723
    %v726 = vld [vmem:[#allocation2 + $0xd] sm:$0x1]
    %727 = vst.msk [vmem:[#allocation3 + $0x34] sm:$0x1] %vm466, %v726
    %v728 = vld [vmem:[#allocation2 + $0xd] sm:$0x1]
    %730 = vrot.lane.b32.xlu0 %v728, 112
    %v731 = vpop.permute.xlu0 %730
    %733 = vst.msk [vmem:[#allocation3 + $0x35] sm:$0x1] %vm466, %v731
    %v734 = vld [vmem:[#allocation2 + $0xd] sm:$0x1]
    %736 = vrot.lane.b32.xlu0 %v734, 96
    %v737 = vpop.permute.xlu0 %736
    %739 = vst.msk [vmem:[#allocation3 + $0x36] sm:$0x1] %vm466, %v737
    %v740 = vld [vmem:[#allocation2 + $0xd] sm:$0x1]
    %742 = vrot.lane.b32.xlu0 %v740, 80
    %v743 = vpop.permute.xlu0 %742
    %745 = vst.msk [vmem:[#allocation3 + $0x37] sm:$0x1] %vm466, %v743
    %v746 = vld [vmem:[#allocation2 + $0xe] sm:$0x1]
    %747 = vst.msk [vmem:[#allocation3 + $0x38] sm:$0x1] %vm466, %v746
    %v748 = vld [vmem:[#allocation2 + $0xe] sm:$0x1]
    %750 = vrot.lane.b32.xlu0 %v748, 112
    %v751 = vpop.permute.xlu0 %750
    %753 = vst.msk [vmem:[#allocation3 + $0x39] sm:$0x1] %vm466, %v751
    %v754 = vld [vmem:[#allocation2 + $0xe] sm:$0x1]
    %756 = vrot.lane.b32.xlu0 %v754, 96
    %v757 = vpop.permute.xlu0 %756
    %759 = vst.msk [vmem:[#allocation3 + $0x3a] sm:$0x1] %vm466, %v757
    %v760 = vld [vmem:[#allocation2 + $0xe] sm:$0x1]
    %762 = vrot.lane.b32.xlu0 %v760, 80
    %v763 = vpop.permute.xlu0 %762
    %765 = vst.msk [vmem:[#allocation3 + $0x3b] sm:$0x1] %vm466, %v763
    %v766 = vld [vmem:[#allocation2 + $0xf] sm:$0x1]
    %767 = vst.msk [vmem:[#allocation3 + $0x3c] sm:$0x1] %vm466, %v766
    %v768 = vld [vmem:[#allocation2 + $0xf] sm:$0x1]
    %770 = vrot.lane.b32.xlu0 %v768, 112
    %v771 = vpop.permute.xlu0 %770
    %773 = vst.msk [vmem:[#allocation3 + $0x3d] sm:$0x1] %vm466, %v771
    %v774 = vld [vmem:[#allocation2 + $0xf] sm:$0x1]
    %776 = vrot.lane.b32.xlu0 %v774, 96
    %v777 = vpop.permute.xlu0 %776
    %779 = vst.msk [vmem:[#allocation3 + $0x3e] sm:$0x1] %vm466, %v777
    %v780 = vld [vmem:[#allocation2 + $0xf] sm:$0x1]
    %782 = vrot.lane.b32.xlu0 %v780, 80
    %v783 = vpop.permute.xlu0 %782
    %785 = vst.msk [vmem:[#allocation3 + $0x3f] sm:$0x1] %vm466, %v783
    %v786 = vld [vmem:[#allocation3] sm:$0xff]
    %v787 = vld [vmem:[#allocation3 + $0x8] sm:$0xff]
    %v788 = vld [vmem:[#allocation3 + $0x10] sm:$0xff]
    %v789 = vld [vmem:[#allocation3 + $0x18] sm:$0xff]
    %v790 = vld [vmem:[#allocation3 + $0x20] sm:$0xff]
    %v791 = vld [vmem:[#allocation3 + $0x28] sm:$0xff]
    %v792 = vld [vmem:[#allocation3 + $0x30] sm:$0xff]
    %v793 = vld [vmem:[#allocation3 + $0x38] sm:$0xff]
    %v794 = vld [vmem:[#allocation3 + $0x40] sm:$0xff]
    %v795 = vld [vmem:[#allocation3 + $0x48] sm:$0xff]
    %v796 = vld [vmem:[#allocation3 + $0x50] sm:$0xff]
    %v797 = vld [vmem:[#allocation3 + $0x58] sm:$0xff]
    %v798 = vld [vmem:[#allocation3 + $0x60] sm:$0xff]
    %v799 = vld [vmem:[#allocation3 + $0x68] sm:$0xff]
    %v800 = vld [vmem:[#allocation3 + $0x70] sm:$0xff]
    %v801 = vld [vmem:[#allocation3 + $0x78] sm:$0xff]
    %802 = vxpose.xlu0.b32.start [1/16] %v786, 128
    %803 = vxpose.xlu0.b32.cont [2/16] %v787, 128
    %804 = vxpose.xlu0.b32.cont [3/16] %v788, 128
    %805 = vxpose.xlu0.b32.cont [4/16] %v789, 128
    %806 = vxpose.xlu0.b32.cont [5/16] %v790, 128
    %807 = vxpose.xlu0.b32.cont [6/16] %v791, 128
    %808 = vxpose.xlu0.b32.cont [7/16] %v792, 128
    %809 = vxpose.xlu0.b32.cont [8/16] %v793, 128
    %810 = vxpose.xlu0.b32.cont [9/16] %v794, 128
    %811 = vxpose.xlu0.b32.cont [10/16] %v795, 128
    %812 = vxpose.xlu0.b32.cont [11/16] %v796, 128
    %813 = vxpose.xlu0.b32.cont [12/16] %v797, 128
    %814 = vxpose.xlu0.b32.cont [13/16] %v798, 128
    %815 = vxpose.xlu0.b32.cont [14/16] %v799, 128
    %816 = vxpose.xlu0.b32.cont [15/16] %v800, 128
    %817 = vxpose.xlu0.b32.end [16/16] %v801, 128
    %v818 = vpop.trf.xlu0
    %v819 = vpop.trf.xlu0
    %v820 = vpop.trf.xlu0
    %v821 = vpop.trf.xlu0
    %v822 = vpop.trf.xlu0
    %v823 = vpop.trf.xlu0
    %v824 = vpop.trf.xlu0
    %v825 = vpop.trf.xlu0
    %v826 = vpop.trf.xlu0
    %v827 = vpop.trf.xlu0
    %v828 = vpop.trf.xlu0
    %v829 = vpop.trf.xlu0
    %v830 = vpop.trf.xlu0
    %v831 = vpop.trf.xlu0
    %v832 = vpop.trf.xlu0
    %v833 = vpop.trf.xlu0
    %834 = vst [vmem:[#allocation4] sm:$0xff] %v818
    %835 = vst [vmem:[#allocation4 + $0x8] sm:$0xff] %v819
    %s836 = scalar_lea.vmem %s0, 256
    %v837 = vld [vmem:[%s836] sm:$0xf]
    %838 = vst.msk [vmem:[#allocation2] sm:$0xf] %vm19, %v837
    %s839 = scalar_lea.vmem %s0, 260
    %v840 = vld [vmem:[%s839] sm:$0xf]
    %842 = vrot.lane.b32.xlu0 %v840, 4
    %v843 = vpop.permute.xlu0 %842
    %845 = vst.msk [vmem:[#allocation2] sm:$0xf] %vm27, %v843
    %s846 = scalar_lea.vmem %s0, 264
    %v847 = vld [vmem:[%s846] sm:$0xf]
    %849 = vrot.lane.b32.xlu0 %v847, 8
    %v850 = vpop.permute.xlu0 %849
    %852 = vst.msk [vmem:[#allocation2] sm:$0xf] %vm35, %v850
    %s853 = scalar_lea.vmem %s0, 268
    %v854 = vld [vmem:[%s853] sm:$0xf]
    %856 = vrot.lane.b32.xlu0 %v854, 12
    %v857 = vpop.permute.xlu0 %856
    %859 = vst.msk [vmem:[#allocation2] sm:$0xf] %vm43, %v857
    %s860 = scalar_lea.vmem %s0, 272
    %v861 = vld [vmem:[%s860] sm:$0xf]
    %862 = vst.msk [vmem:[#allocation2 + $0x4] sm:$0xf] %vm19, %v861
    %s863 = scalar_lea.vmem %s0, 276
    %v864 = vld [vmem:[%s863] sm:$0xf]
    %866 = vrot.lane.b32.xlu0 %v864, 4
    %v867 = vpop.permute.xlu0 %866
    %869 = vst.msk [vmem:[#allocation2 + $0x4] sm:$0xf] %vm27, %v867
    %s870 = scalar_lea.vmem %s0, 280
    %v871 = vld [vmem:[%s870] sm:$0xf]
    %873 = vrot.lane.b32.xlu0 %v871, 8
    %v874 = vpop.permute.xlu0 %873
    %876 = vst.msk [vmem:[#allocation2 + $0x4] sm:$0xf] %vm35, %v874
    %s877 = scalar_lea.vmem %s0, 284
    %v878 = vld [vmem:[%s877] sm:$0xf]
    %880 = vrot.lane.b32.xlu0 %v878, 12
    %v881 = vpop.permute.xlu0 %880
    %883 = vst.msk [vmem:[#allocation2 + $0x4] sm:$0xf] %vm43, %v881
    %s884 = scalar_lea.vmem %s0, 288
    %v885 = vld [vmem:[%s884] sm:$0xf]
    %886 = vst.msk [vmem:[#allocation2 + $0x8] sm:$0xf] %vm19, %v885
    %s887 = scalar_lea.vmem %s0, 292
    %v888 = vld [vmem:[%s887] sm:$0xf]
    %890 = vrot.lane.b32.xlu0 %v888, 4
    %v891 = vpop.permute.xlu0 %890
    %893 = vst.msk [vmem:[#allocation2 + $0x8] sm:$0xf] %vm27, %v891
    %s894 = scalar_lea.vmem %s0, 296
    %v895 = vld [vmem:[%s894] sm:$0xf]
    %897 = vrot.lane.b32.xlu0 %v895, 8
    %v898 = vpop.permute.xlu0 %897
    %900 = vst.msk [vmem:[#allocation2 + $0x8] sm:$0xf] %vm35, %v898
    %s901 = scalar_lea.vmem %s0, 300
    %v902 = vld [vmem:[%s901] sm:$0xf]
    %904 = vrot.lane.b32.xlu0 %v902, 12
    %v905 = vpop.permute.xlu0 %904
    %907 = vst.msk [vmem:[#allocation2 + $0x8] sm:$0xf] %vm43, %v905
    %s908 = scalar_lea.vmem %s0, 304
    %v909 = vld [vmem:[%s908] sm:$0xf]
    %910 = vst.msk [vmem:[#allocation2 + $0xc] sm:$0xf] %vm19, %v909
    %s911 = scalar_lea.vmem %s0, 308
    %v912 = vld [vmem:[%s911] sm:$0xf]
    %914 = vrot.lane.b32.xlu0 %v912, 4
    %v915 = vpop.permute.xlu0 %914
    %917 = vst.msk [vmem:[#allocation2 + $0xc] sm:$0xf] %vm27, %v915
    %s918 = scalar_lea.vmem %s0, 312
    %v919 = vld [vmem:[%s918] sm:$0xf]
    %921 = vrot.lane.b32.xlu0 %v919, 8
    %v922 = vpop.permute.xlu0 %921
    %924 = vst.msk [vmem:[#allocation2 + $0xc] sm:$0xf] %vm35, %v922
    %s925 = scalar_lea.vmem %s0, 316
    %v926 = vld [vmem:[%s925] sm:$0xf]
    %928 = vrot.lane.b32.xlu0 %v926, 12
    %v929 = vpop.permute.xlu0 %928
    %931 = vst.msk [vmem:[#allocation2 + $0xc] sm:$0xf] %vm43, %v929
    %s932 = scalar_lea.vmem %s0, 320
    %v933 = vld [vmem:[%s932] sm:$0xf]
    %935 = vrot.lane.b32.xlu0 %v933, 16
    %v936 = vpop.permute.xlu0 %935
    %938 = vst.msk [vmem:[#allocation2] sm:$0xf] %vm123, %v936
    %s939 = scalar_lea.vmem %s0, 324
    %v940 = vld [vmem:[%s939] sm:$0xf]
    %942 = vrot.lane.b32.xlu0 %v940, 20
    %v943 = vpop.permute.xlu0 %942
    %945 = vst.msk [vmem:[#allocation2] sm:$0xf] %vm131, %v943
    %s946 = scalar_lea.vmem %s0, 328
    %v947 = vld [vmem:[%s946] sm:$0xf]
    %949 = vrot.lane.b32.xlu0 %v947, 24
    %v950 = vpop.permute.xlu0 %949
    %952 = vst.msk [vmem:[#allocation2] sm:$0xf] %vm139, %v950
    %s953 = scalar_lea.vmem %s0, 332
    %v954 = vld [vmem:[%s953] sm:$0xf]
    %956 = vrot.lane.b32.xlu0 %v954, 28
    %v957 = vpop.permute.xlu0 %956
    %959 = vst.msk [vmem:[#allocation2] sm:$0xf] %vm147, %v957
    %s960 = scalar_lea.vmem %s0, 336
    %v961 = vld [vmem:[%s960] sm:$0xf]
    %963 = vrot.lane.b32.xlu0 %v961, 16
    %v964 = vpop.permute.xlu0 %963
    %966 = vst.msk [vmem:[#allocation2 + $0x4] sm:$0xf] %vm123, %v964
    %s967 = scalar_lea.vmem %s0, 340
    %v968 = vld [vmem:[%s967] sm:$0xf]
    %970 = vrot.lane.b32.xlu0 %v968, 20
    %v971 = vpop.permute.xlu0 %970
    %973 = vst.msk [vmem:[#allocation2 + $0x4] sm:$0xf] %vm131, %v971
    %s974 = scalar_lea.vmem %s0, 344
    %v975 = vld [vmem:[%s974] sm:$0xf]
    %977 = vrot.lane.b32.xlu0 %v975, 24
    %v978 = vpop.permute.xlu0 %977
    %980 = vst.msk [vmem:[#allocation2 + $0x4] sm:$0xf] %vm139, %v978
    %s981 = scalar_lea.vmem %s0, 348
    %v982 = vld [vmem:[%s981] sm:$0xf]
    %984 = vrot.lane.b32.xlu0 %v982, 28
    %v985 = vpop.permute.xlu0 %984
    %987 = vst.msk [vmem:[#allocation2 + $0x4] sm:$0xf] %vm147, %v985
    %s988 = scalar_lea.vmem %s0, 352
    %v989 = vld [vmem:[%s988] sm:$0xf]
    %991 = vrot.lane.b32.xlu0 %v989, 16
    %v992 = vpop.permute.xlu0 %991
    %994 = vst.msk [vmem:[#allocation2 + $0x8] sm:$0xf] %vm123, %v992
    %s995 = scalar_lea.vmem %s0, 356
    %v996 = vld [vmem:[%s995] sm:$0xf]
    %998 = vrot.lane.b32.xlu0 %v996, 20
    %v999 = vpop.permute.xlu0 %998
    %1001 = vst.msk [vmem:[#allocation2 + $0x8] sm:$0xf] %vm131, %v999
    %s1002 = scalar_lea.vmem %s0, 360
    %v1003 = vld [vmem:[%s1002] sm:$0xf]
    %1005 = vrot.lane.b32.xlu0 %v1003, 24
    %v1006 = vpop.permute.xlu0 %1005
    %1008 = vst.msk [vmem:[#allocation2 + $0x8] sm:$0xf] %vm139, %v1006
    %s1009 = scalar_lea.vmem %s0, 364
    %v1010 = vld [vmem:[%s1009] sm:$0xf]
    %1012 = vrot.lane.b32.xlu0 %v1010, 28
    %v1013 = vpop.permute.xlu0 %1012
    %1015 = vst.msk [vmem:[#allocation2 + $0x8] sm:$0xf] %vm147, %v1013
    %s1016 = scalar_lea.vmem %s0, 368
    %v1017 = vld [vmem:[%s1016] sm:$0xf]
    %1019 = vrot.lane.b32.xlu0 %v1017, 16
    %v1020 = vpop.permute.xlu0 %1019
    %1022 = vst.msk [vmem:[#allocation2 + $0xc] sm:$0xf] %vm123, %v1020
    %s1023 = scalar_lea.vmem %s0, 372
    %v1024 = vld [vmem:[%s1023] sm:$0xf]
    %1026 = vrot.lane.b32.xlu0 %v1024, 20
    %v1027 = vpop.permute.xlu0 %1026
    %1029 = vst.msk [vmem:[#allocation2 + $0xc] sm:$0xf] %vm131, %v1027
    %s1030 = scalar_lea.vmem %s0, 376
    %v1031 = vld [vmem:[%s1030] sm:$0xf]
    %1033 = vrot.lane.b32.xlu0 %v1031, 24
    %v1034 = vpop.permute.xlu0 %1033
    %1036 = vst.msk [vmem:[#allocation2 + $0xc] sm:$0xf] %vm139, %v1034
    %s1037 = scalar_lea.vmem %s0, 380
    %v1038 = vld [vmem:[%s1037] sm:$0xf]
    %1040 = vrot.lane.b32.xlu0 %v1038, 28
    %v1041 = vpop.permute.xlu0 %1040
    %1043 = vst.msk [vmem:[#allocation2 + $0xc] sm:$0xf] %vm147, %v1041
    %s1044 = scalar_lea.vmem %s0, 384
    %v1045 = vld [vmem:[%s1044] sm:$0xf]
    %1047 = vrot.lane.b32.xlu0 %v1045, 32
    %v1048 = vpop.permute.xlu0 %1047
    %1050 = vst.msk [vmem:[#allocation2] sm:$0xf] %vm239, %v1048
    %s1051 = scalar_lea.vmem %s0, 388
    %v1052 = vld [vmem:[%s1051] sm:$0xf]
    %1054 = vrot.lane.b32.xlu0 %v1052, 36
    %v1055 = vpop.permute.xlu0 %1054
    %1057 = vst.msk [vmem:[#allocation2] sm:$0xf] %vm247, %v1055
    %s1058 = scalar_lea.vmem %s0, 392
    %v1059 = vld [vmem:[%s1058] sm:$0xf]
    %1061 = vrot.lane.b32.xlu0 %v1059, 40
    %v1062 = vpop.permute.xlu0 %1061
    %1064 = vst.msk [vmem:[#allocation2] sm:$0xf] %vm255, %v1062
    %s1065 = scalar_lea.vmem %s0, 396
    %v1066 = vld [vmem:[%s1065] sm:$0xf]
    %1068 = vrot.lane.b32.xlu0 %v1066, 44
    %v1069 = vpop.permute.xlu0 %1068
    %1071 = vst.msk [vmem:[#allocation2] sm:$0xf] %vm263, %v1069
    %s1072 = scalar_lea.vmem %s0, 400
    %v1073 = vld [vmem:[%s1072] sm:$0xf]
    %1075 = vrot.lane.b32.xlu0 %v1073, 32
    %v1076 = vpop.permute.xlu0 %1075
    %1078 = vst.msk [vmem:[#allocation2 + $0x4] sm:$0xf] %vm239, %v1076
    %s1079 = scalar_lea.vmem %s0, 404
    %v1080 = vld [vmem:[%s1079] sm:$0xf]
    %1082 = vrot.lane.b32.xlu0 %v1080, 36
    %v1083 = vpop.permute.xlu0 %1082
    %1085 = vst.msk [vmem:[#allocation2 + $0x4] sm:$0xf] %vm247, %v1083
    %s1086 = scalar_lea.vmem %s0, 408
    %v1087 = vld [vmem:[%s1086] sm:$0xf]
    %1089 = vrot.lane.b32.xlu0 %v1087, 40
    %v1090 = vpop.permute.xlu0 %1089
    %1092 = vst.msk [vmem:[#allocation2 + $0x4] sm:$0xf] %vm255, %v1090
    %s1093 = scalar_lea.vmem %s0, 412
    %v1094 = vld [vmem:[%s1093] sm:$0xf]
    %1096 = vrot.lane.b32.xlu0 %v1094, 44
    %v1097 = vpop.permute.xlu0 %1096
    %1099 = vst.msk [vmem:[#allocation2 + $0x4] sm:$0xf] %vm263, %v1097
    %s1100 = scalar_lea.vmem %s0, 416
    %v1101 = vld [vmem:[%s1100] sm:$0xf]
    %1103 = vrot.lane.b32.xlu0 %v1101, 32
    %v1104 = vpop.permute.xlu0 %1103
    %1106 = vst.msk [vmem:[#allocation2 + $0x8] sm:$0xf] %vm239, %v1104
    %s1107 = scalar_lea.vmem %s0, 420
    %v1108 = vld [vmem:[%s1107] sm:$0xf]
    %1110 = vrot.lane.b32.xlu0 %v1108, 36
    %v1111 = vpop.permute.xlu0 %1110
    %1113 = vst.msk [vmem:[#allocation2 + $0x8] sm:$0xf] %vm247, %v1111
    %s1114 = scalar_lea.vmem %s0, 424
    %v1115 = vld [vmem:[%s1114] sm:$0xf]
    %1117 = vrot.lane.b32.xlu0 %v1115, 40
    %v1118 = vpop.permute.xlu0 %1117
    %1120 = vst.msk [vmem:[#allocation2 + $0x8] sm:$0xf] %vm255, %v1118
    %s1121 = scalar_lea.vmem %s0, 428
    %v1122 = vld [vmem:[%s1121] sm:$0xf]
    %1124 = vrot.lane.b32.xlu0 %v1122, 44
    %v1125 = vpop.permute.xlu0 %1124
    %1127 = vst.msk [vmem:[#allocation2 + $0x8] sm:$0xf] %vm263, %v1125
    %s1128 = scalar_lea.vmem %s0, 432
    %v1129 = vld [vmem:[%s1128] sm:$0xf]
    %1131 = vrot.lane.b32.xlu0 %v1129, 32
    %v1132 = vpop.permute.xlu0 %1131
    %1134 = vst.msk [vmem:[#allocation2 + $0xc] sm:$0xf] %vm239, %v1132
    %s1135 = scalar_lea.vmem %s0, 436
    %v1136 = vld [vmem:[%s1135] sm:$0xf]
    %1138 = vrot.lane.b32.xlu0 %v1136, 36
    %v1139 = vpop.permute.xlu0 %1138
    %1141 = vst.msk [vmem:[#allocation2 + $0xc] sm:$0xf] %vm247, %v1139
    %s1142 = scalar_lea.vmem %s0, 440
    %v1143 = vld [vmem:[%s1142] sm:$0xf]
    %1145 = vrot.lane.b32.xlu0 %v1143, 40
    %v1146 = vpop.permute.xlu0 %1145
    %1148 = vst.msk [vmem:[#allocation2 + $0xc] sm:$0xf] %vm255, %v1146
    %s1149 = scalar_lea.vmem %s0, 444
    %v1150 = vld [vmem:[%s1149] sm:$0xf]
    %1152 = vrot.lane.b32.xlu0 %v1150, 44
    %v1153 = vpop.permute.xlu0 %1152
    %1155 = vst.msk [vmem:[#allocation2 + $0xc] sm:$0xf] %vm263, %v1153
    %s1156 = scalar_lea.vmem %s0, 448
    %v1157 = vld [vmem:[%s1156] sm:$0xf]
    %1159 = vrot.lane.b32.xlu0 %v1157, 48
    %v1160 = vpop.permute.xlu0 %1159
    %1162 = vst.msk [vmem:[#allocation2] sm:$0xf] %vm355, %v1160
    %s1163 = scalar_lea.vmem %s0, 452
    %v1164 = vld [vmem:[%s1163] sm:$0xf]
    %1166 = vrot.lane.b32.xlu0 %v1164, 52
    %v1167 = vpop.permute.xlu0 %1166
    %1169 = vst.msk [vmem:[#allocation2] sm:$0xf] %vm363, %v1167
    %s1170 = scalar_lea.vmem %s0, 456
    %v1171 = vld [vmem:[%s1170] sm:$0xf]
    %1173 = vrot.lane.b32.xlu0 %v1171, 56
    %v1174 = vpop.permute.xlu0 %1173
    %1176 = vst.msk [vmem:[#allocation2] sm:$0xf] %vm371, %v1174
    %s1177 = scalar_lea.vmem %s0, 460
    %v1178 = vld [vmem:[%s1177] sm:$0xf]
    %1180 = vrot.lane.b32.xlu0 %v1178, 60
    %v1181 = vpop.permute.xlu0 %1180
    %1183 = vst.msk [vmem:[#allocation2] sm:$0xf] %vm379, %v1181
    %s1184 = scalar_lea.vmem %s0, 464
    %v1185 = vld [vmem:[%s1184] sm:$0xf]
    %1187 = vrot.lane.b32.xlu0 %v1185, 48
    %v1188 = vpop.permute.xlu0 %1187
    %1190 = vst.msk [vmem:[#allocation2 + $0x4] sm:$0xf] %vm355, %v1188
    %s1191 = scalar_lea.vmem %s0, 468
    %v1192 = vld [vmem:[%s1191] sm:$0xf]
    %1194 = vrot.lane.b32.xlu0 %v1192, 52
    %v1195 = vpop.permute.xlu0 %1194
    %1197 = vst.msk [vmem:[#allocation2 + $0x4] sm:$0xf] %vm363, %v1195
    %s1198 = scalar_lea.vmem %s0, 472
    %v1199 = vld [vmem:[%s1198] sm:$0xf]
    %1201 = vrot.lane.b32.xlu0 %v1199, 56
    %v1202 = vpop.permute.xlu0 %1201
    %1204 = vst.msk [vmem:[#allocation2 + $0x4] sm:$0xf] %vm371, %v1202
    %s1205 = scalar_lea.vmem %s0, 476
    %v1206 = vld [vmem:[%s1205] sm:$0xf]
    %1208 = vrot.lane.b32.xlu0 %v1206, 60
    %v1209 = vpop.permute.xlu0 %1208
    %1211 = vst.msk [vmem:[#allocation2 + $0x4] sm:$0xf] %vm379, %v1209
    %s1212 = scalar_lea.vmem %s0, 480
    %v1213 = vld [vmem:[%s1212] sm:$0xf]
    %1215 = vrot.lane.b32.xlu0 %v1213, 48
    %v1216 = vpop.permute.xlu0 %1215
    %1218 = vst.msk [vmem:[#allocation2 + $0x8] sm:$0xf] %vm355, %v1216
    %s1219 = scalar_lea.vmem %s0, 484
    %v1220 = vld [vmem:[%s1219] sm:$0xf]
    %1222 = vrot.lane.b32.xlu0 %v1220, 52
    %v1223 = vpop.permute.xlu0 %1222
    %1225 = vst.msk [vmem:[#allocation2 + $0x8] sm:$0xf] %vm363, %v1223
    %s1226 = scalar_lea.vmem %s0, 488
    %v1227 = vld [vmem:[%s1226] sm:$0xf]
    %1229 = vrot.lane.b32.xlu0 %v1227, 56
    %v1230 = vpop.permute.xlu0 %1229
    %1232 = vst.msk [vmem:[#allocation2 + $0x8] sm:$0xf] %vm371, %v1230
    %s1233 = scalar_lea.vmem %s0, 492
    %v1234 = vld [vmem:[%s1233] sm:$0xf]
    %1236 = vrot.lane.b32.xlu0 %v1234, 60
    %v1237 = vpop.permute.xlu0 %1236
    %1239 = vst.msk [vmem:[#allocation2 + $0x8] sm:$0xf] %vm379, %v1237
    %s1240 = scalar_lea.vmem %s0, 496
    %v1241 = vld [vmem:[%s1240] sm:$0xf]
    %1243 = vrot.lane.b32.xlu0 %v1241, 48
    %v1244 = vpop.permute.xlu0 %1243
    %1246 = vst.msk [vmem:[#allocation2 + $0xc] sm:$0xf] %vm355, %v1244
    %s1247 = scalar_lea.vmem %s0, 500
    %v1248 = vld [vmem:[%s1247] sm:$0xf]
    %1250 = vrot.lane.b32.xlu0 %v1248, 52
    %v1251 = vpop.permute.xlu0 %1250
    %1253 = vst.msk [vmem:[#allocation2 + $0xc] sm:$0xf] %vm363, %v1251
    %s1254 = scalar_lea.vmem %s0, 504
    %v1255 = vld [vmem:[%s1254] sm:$0xf]
    %1257 = vrot.lane.b32.xlu0 %v1255, 56
    %v1258 = vpop.permute.xlu0 %1257
    %1260 = vst.msk [vmem:[#allocation2 + $0xc] sm:$0xf] %vm371, %v1258
    %s1261 = scalar_lea.vmem %s0, 508
    %v1262 = vld [vmem:[%s1261] sm:$0xf]
    %1264 = vrot.lane.b32.xlu0 %v1262, 60
    %v1265 = vpop.permute.xlu0 %1264
    %1267 = vst.msk [vmem:[#allocation2 + $0xc] sm:$0xf] %vm379, %v1265
    %v1268 = vld [vmem:[#allocation2] sm:$0x1]
    %1269 = vst.msk [vmem:[#allocation3] sm:$0x1] %vm466, %v1268
    %v1270 = vld [vmem:[#allocation2] sm:$0x1]
    %1272 = vrot.lane.b32.xlu0 %v1270, 112
    %v1273 = vpop.permute.xlu0 %1272
    %1275 = vst.msk [vmem:[#allocation3 + $0x1] sm:$0x1] %vm466, %v1273
    %v1276 = vld [vmem:[#allocation2] sm:$0x1]
    %1278 = vrot.lane.b32.xlu0 %v1276, 96
    %v1279 = vpop.permute.xlu0 %1278
    %1281 = vst.msk [vmem:[#allocation3 + $0x2] sm:$0x1] %vm466, %v1279
    %v1282 = vld [vmem:[#allocation2] sm:$0x1]
    %1284 = vrot.lane.b32.xlu0 %v1282, 80
    %v1285 = vpop.permute.xlu0 %1284
    %1287 = vst.msk [vmem:[#allocation3 + $0x3] sm:$0x1] %vm466, %v1285
    %v1288 = vld [vmem:[#allocation2 + $0x1] sm:$0x1]
    %1289 = vst.msk [vmem:[#allocation3 + $0x4] sm:$0x1] %vm466, %v1288
    %v1290 = vld [vmem:[#allocation2 + $0x1] sm:$0x1]
    %1292 = vrot.lane.b32.xlu0 %v1290, 112
    %v1293 = vpop.permute.xlu0 %1292
    %1295 = vst.msk [vmem:[#allocation3 + $0x5] sm:$0x1] %vm466, %v1293
    %v1296 = vld [vmem:[#allocation2 + $0x1] sm:$0x1]
    %1298 = vrot.lane.b32.xlu0 %v1296, 96
    %v1299 = vpop.permute.xlu0 %1298
    %1301 = vst.msk [vmem:[#allocation3 + $0x6] sm:$0x1] %vm466, %v1299
    %v1302 = vld [vmem:[#allocation2 + $0x1] sm:$0x1]
    %1304 = vrot.lane.b32.xlu0 %v1302, 80
    %v1305 = vpop.permute.xlu0 %1304
    %1307 = vst.msk [vmem:[#allocation3 + $0x7] sm:$0x1] %vm466, %v1305
    %v1308 = vld [vmem:[#allocation2 + $0x2] sm:$0x1]
    %1309 = vst.msk [vmem:[#allocation3 + $0x8] sm:$0x1] %vm466, %v1308
    %v1310 = vld [vmem:[#allocation2 + $0x2] sm:$0x1]
    %1312 = vrot.lane.b32.xlu0 %v1310, 112
    %v1313 = vpop.permute.xlu0 %1312
    %1315 = vst.msk [vmem:[#allocation3 + $0x9] sm:$0x1] %vm466, %v1313
    %v1316 = vld [vmem:[#allocation2 + $0x2] sm:$0x1]
    %1318 = vrot.lane.b32.xlu0 %v1316, 96
    %v1319 = vpop.permute.xlu0 %1318
    %1321 = vst.msk [vmem:[#allocation3 + $0xa] sm:$0x1] %vm466, %v1319
    %v1322 = vld [vmem:[#allocation2 + $0x2] sm:$0x1]
    %1324 = vrot.lane.b32.xlu0 %v1322, 80
    %v1325 = vpop.permute.xlu0 %1324
    %1327 = vst.msk [vmem:[#allocation3 + $0xb] sm:$0x1] %vm466, %v1325
    %v1328 = vld [vmem:[#allocation2 + $0x3] sm:$0x1]
    %1329 = vst.msk [vmem:[#allocation3 + $0xc] sm:$0x1] %vm466, %v1328
    %v1330 = vld [vmem:[#allocation2 + $0x3] sm:$0x1]
    %1332 = vrot.lane.b32.xlu0 %v1330, 112
    %v1333 = vpop.permute.xlu0 %1332
    %1335 = vst.msk [vmem:[#allocation3 + $0xd] sm:$0x1] %vm466, %v1333
    %v1336 = vld [vmem:[#allocation2 + $0x3] sm:$0x1]
    %1338 = vrot.lane.b32.xlu0 %v1336, 96
    %v1339 = vpop.permute.xlu0 %1338
    %1341 = vst.msk [vmem:[#allocation3 + $0xe] sm:$0x1] %vm466, %v1339
    %v1342 = vld [vmem:[#allocation2 + $0x3] sm:$0x1]
    %1344 = vrot.lane.b32.xlu0 %v1342, 80
    %v1345 = vpop.permute.xlu0 %1344
    %1347 = vst.msk [vmem:[#allocation3 + $0xf] sm:$0x1] %vm466, %v1345
    %v1348 = vld [vmem:[#allocation2 + $0x4] sm:$0x1]
    %1349 = vst.msk [vmem:[#allocation3 + $0x10] sm:$0x1] %vm466, %v1348
    %v1350 = vld [vmem:[#allocation2 + $0x4] sm:$0x1]
    %1352 = vrot.lane.b32.xlu0 %v1350, 112
    %v1353 = vpop.permute.xlu0 %1352
    %1355 = vst.msk [vmem:[#allocation3 + $0x11] sm:$0x1] %vm466, %v1353
    %v1356 = vld [vmem:[#allocation2 + $0x4] sm:$0x1]
    %1358 = vrot.lane.b32.xlu0 %v1356, 96
    %v1359 = vpop.permute.xlu0 %1358
    %1361 = vst.msk [vmem:[#allocation3 + $0x12] sm:$0x1] %vm466, %v1359
    %v1362 = vld [vmem:[#allocation2 + $0x4] sm:$0x1]
    %1364 = vrot.lane.b32.xlu0 %v1362, 80
    %v1365 = vpop.permute.xlu0 %1364
    %1367 = vst.msk [vmem:[#allocation3 + $0x13] sm:$0x1] %vm466, %v1365
    %v1368 = vld [vmem:[#allocation2 + $0x5] sm:$0x1]
    %1369 = vst.msk [vmem:[#allocation3 + $0x14] sm:$0x1] %vm466, %v1368
    %v1370 = vld [vmem:[#allocation2 + $0x5] sm:$0x1]
    %1372 = vrot.lane.b32.xlu0 %v1370, 112
    %v1373 = vpop.permute.xlu0 %1372
    %1375 = vst.msk [vmem:[#allocation3 + $0x15] sm:$0x1] %vm466, %v1373
    %v1376 = vld [vmem:[#allocation2 + $0x5] sm:$0x1]
    %1378 = vrot.lane.b32.xlu0 %v1376, 96
    %v1379 = vpop.permute.xlu0 %1378
    %1381 = vst.msk [vmem:[#allocation3 + $0x16] sm:$0x1] %vm466, %v1379
    %v1382 = vld [vmem:[#allocation2 + $0x5] sm:$0x1]
    %1384 = vrot.lane.b32.xlu0 %v1382, 80
    %v1385 = vpop.permute.xlu0 %1384
    %1387 = vst.msk [vmem:[#allocation3 + $0x17] sm:$0x1] %vm466, %v1385
    %v1388 = vld [vmem:[#allocation2 + $0x6] sm:$0x1]
    %1389 = vst.msk [vmem:[#allocation3 + $0x18] sm:$0x1] %vm466, %v1388
    %v1390 = vld [vmem:[#allocation2 + $0x6] sm:$0x1]
    %1392 = vrot.lane.b32.xlu0 %v1390, 112
    %v1393 = vpop.permute.xlu0 %1392
    %1395 = vst.msk [vmem:[#allocation3 + $0x19] sm:$0x1] %vm466, %v1393
    %v1396 = vld [vmem:[#allocation2 + $0x6] sm:$0x1]
    %1398 = vrot.lane.b32.xlu0 %v1396, 96
    %v1399 = vpop.permute.xlu0 %1398
    %1401 = vst.msk [vmem:[#allocation3 + $0x1a] sm:$0x1] %vm466, %v1399
    %v1402 = vld [vmem:[#allocation2 + $0x6] sm:$0x1]
    %1404 = vrot.lane.b32.xlu0 %v1402, 80
    %v1405 = vpop.permute.xlu0 %1404
    %1407 = vst.msk [vmem:[#allocation3 + $0x1b] sm:$0x1] %vm466, %v1405
    %v1408 = vld [vmem:[#allocation2 + $0x7] sm:$0x1]
    %1409 = vst.msk [vmem:[#allocation3 + $0x1c] sm:$0x1] %vm466, %v1408
    %v1410 = vld [vmem:[#allocation2 + $0x7] sm:$0x1]
    %1412 = vrot.lane.b32.xlu0 %v1410, 112
    %v1413 = vpop.permute.xlu0 %1412
    %1415 = vst.msk [vmem:[#allocation3 + $0x1d] sm:$0x1] %vm466, %v1413
    %v1416 = vld [vmem:[#allocation2 + $0x7] sm:$0x1]
    %1418 = vrot.lane.b32.xlu0 %v1416, 96
    %v1419 = vpop.permute.xlu0 %1418
    %1421 = vst.msk [vmem:[#allocation3 + $0x1e] sm:$0x1] %vm466, %v1419
    %v1422 = vld [vmem:[#allocation2 + $0x7] sm:$0x1]
    %1424 = vrot.lane.b32.xlu0 %v1422, 80
    %v1425 = vpop.permute.xlu0 %1424
    %1427 = vst.msk [vmem:[#allocation3 + $0x1f] sm:$0x1] %vm466, %v1425
    %v1428 = vld [vmem:[#allocation2 + $0x8] sm:$0x1]
    %1429 = vst.msk [vmem:[#allocation3 + $0x20] sm:$0x1] %vm466, %v1428
    %v1430 = vld [vmem:[#allocation2 + $0x8] sm:$0x1]
    %1432 = vrot.lane.b32.xlu0 %v1430, 112
    %v1433 = vpop.permute.xlu0 %1432
    %1435 = vst.msk [vmem:[#allocation3 + $0x21] sm:$0x1] %vm466, %v1433
    %v1436 = vld [vmem:[#allocation2 + $0x8] sm:$0x1]
    %1438 = vrot.lane.b32.xlu0 %v1436, 96
    %v1439 = vpop.permute.xlu0 %1438
    %1441 = vst.msk [vmem:[#allocation3 + $0x22] sm:$0x1] %vm466, %v1439
    %v1442 = vld [vmem:[#allocation2 + $0x8] sm:$0x1]
    %1444 = vrot.lane.b32.xlu0 %v1442, 80
    %v1445 = vpop.permute.xlu0 %1444
    %1447 = vst.msk [vmem:[#allocation3 + $0x23] sm:$0x1] %vm466, %v1445
    %v1448 = vld [vmem:[#allocation2 + $0x9] sm:$0x1]
    %1449 = vst.msk [vmem:[#allocation3 + $0x24] sm:$0x1] %vm466, %v1448
    %v1450 = vld [vmem:[#allocation2 + $0x9] sm:$0x1]
    %1452 = vrot.lane.b32.xlu0 %v1450, 112
    %v1453 = vpop.permute.xlu0 %1452
    %1455 = vst.msk [vmem:[#allocation3 + $0x25] sm:$0x1] %vm466, %v1453
    %v1456 = vld [vmem:[#allocation2 + $0x9] sm:$0x1]
    %1458 = vrot.lane.b32.xlu0 %v1456, 96
    %v1459 = vpop.permute.xlu0 %1458
    %1461 = vst.msk [vmem:[#allocation3 + $0x26] sm:$0x1] %vm466, %v1459
    %v1462 = vld [vmem:[#allocation2 + $0x9] sm:$0x1]
    %1464 = vrot.lane.b32.xlu0 %v1462, 80
    %v1465 = vpop.permute.xlu0 %1464
    %1467 = vst.msk [vmem:[#allocation3 + $0x27] sm:$0x1] %vm466, %v1465
    %v1468 = vld [vmem:[#allocation2 + $0xa] sm:$0x1]
    %1469 = vst.msk [vmem:[#allocation3 + $0x28] sm:$0x1] %vm466, %v1468
    %v1470 = vld [vmem:[#allocation2 + $0xa] sm:$0x1]
    %1472 = vrot.lane.b32.xlu0 %v1470, 112
    %v1473 = vpop.permute.xlu0 %1472
    %1475 = vst.msk [vmem:[#allocation3 + $0x29] sm:$0x1] %vm466, %v1473
    %v1476 = vld [vmem:[#allocation2 + $0xa] sm:$0x1]
    %1478 = vrot.lane.b32.xlu0 %v1476, 96
    %v1479 = vpop.permute.xlu0 %1478
    %1481 = vst.msk [vmem:[#allocation3 + $0x2a] sm:$0x1] %vm466, %v1479
    %v1482 = vld [vmem:[#allocation2 + $0xa] sm:$0x1]
    %1484 = vrot.lane.b32.xlu0 %v1482, 80
    %v1485 = vpop.permute.xlu0 %1484
    %1487 = vst.msk [vmem:[#allocation3 + $0x2b] sm:$0x1] %vm466, %v1485
    %v1488 = vld [vmem:[#allocation2 + $0xb] sm:$0x1]
    %1489 = vst.msk [vmem:[#allocation3 + $0x2c] sm:$0x1] %vm466, %v1488
    %v1490 = vld [vmem:[#allocation2 + $0xb] sm:$0x1]
    %1492 = vrot.lane.b32.xlu0 %v1490, 112
    %v1493 = vpop.permute.xlu0 %1492
    %1495 = vst.msk [vmem:[#allocation3 + $0x2d] sm:$0x1] %vm466, %v1493
    %v1496 = vld [vmem:[#allocation2 + $0xb] sm:$0x1]
    %1498 = vrot.lane.b32.xlu0 %v1496, 96
    %v1499 = vpop.permute.xlu0 %1498
    %1501 = vst.msk [vmem:[#allocation3 + $0x2e] sm:$0x1] %vm466, %v1499
    %v1502 = vld [vmem:[#allocation2 + $0xb] sm:$0x1]
    %1504 = vrot.lane.b32.xlu0 %v1502, 80
    %v1505 = vpop.permute.xlu0 %1504
    %1507 = vst.msk [vmem:[#allocation3 + $0x2f] sm:$0x1] %vm466, %v1505
    %v1508 = vld [vmem:[#allocation2 + $0xc] sm:$0x1]
    %1509 = vst.msk [vmem:[#allocation3 + $0x30] sm:$0x1] %vm466, %v1508
    %v1510 = vld [vmem:[#allocation2 + $0xc] sm:$0x1]
    %1512 = vrot.lane.b32.xlu0 %v1510, 112
    %v1513 = vpop.permute.xlu0 %1512
    %1515 = vst.msk [vmem:[#allocation3 + $0x31] sm:$0x1] %vm466, %v1513
    %v1516 = vld [vmem:[#allocation2 + $0xc] sm:$0x1]
    %1518 = vrot.lane.b32.xlu0 %v1516, 96
    %v1519 = vpop.permute.xlu0 %1518
    %1521 = vst.msk [vmem:[#allocation3 + $0x32] sm:$0x1] %vm466, %v1519
    %v1522 = vld [vmem:[#allocation2 + $0xc] sm:$0x1]
    %1524 = vrot.lane.b32.xlu0 %v1522, 80
    %v1525 = vpop.permute.xlu0 %1524
    %1527 = vst.msk [vmem:[#allocation3 + $0x33] sm:$0x1] %vm466, %v1525
    %v1528 = vld [vmem:[#allocation2 + $0xd] sm:$0x1]
    %1529 = vst.msk [vmem:[#allocation3 + $0x34] sm:$0x1] %vm466, %v1528
    %v1530 = vld [vmem:[#allocation2 + $0xd] sm:$0x1]
    %1532 = vrot.lane.b32.xlu0 %v1530, 112
    %v1533 = vpop.permute.xlu0 %1532
    %1535 = vst.msk [vmem:[#allocation3 + $0x35] sm:$0x1] %vm466, %v1533
    %v1536 = vld [vmem:[#allocation2 + $0xd] sm:$0x1]
    %1538 = vrot.lane.b32.xlu0 %v1536, 96
    %v1539 = vpop.permute.xlu0 %1538
    %1541 = vst.msk [vmem:[#allocation3 + $0x36] sm:$0x1] %vm466, %v1539
    %v1542 = vld [vmem:[#allocation2 + $0xd] sm:$0x1]
    %1544 = vrot.lane.b32.xlu0 %v1542, 80
    %v1545 = vpop.permute.xlu0 %1544
    %1547 = vst.msk [vmem:[#allocation3 + $0x37] sm:$0x1] %vm466, %v1545
    %v1548 = vld [vmem:[#allocation2 + $0xe] sm:$0x1]
    %1549 = vst.msk [vmem:[#allocation3 + $0x38] sm:$0x1] %vm466, %v1548
    %v1550 = vld [vmem:[#allocation2 + $0xe] sm:$0x1]
    %1552 = vrot.lane.b32.xlu0 %v1550, 112
    %v1553 = vpop.permute.xlu0 %1552
    %1555 = vst.msk [vmem:[#allocation3 + $0x39] sm:$0x1] %vm466, %v1553
    %v1556 = vld [vmem:[#allocation2 + $0xe] sm:$0x1]
    %1558 = vrot.lane.b32.xlu0 %v1556, 96
    %v1559 = vpop.permute.xlu0 %1558
    %1561 = vst.msk [vmem:[#allocation3 + $0x3a] sm:$0x1] %vm466, %v1559
    %v1562 = vld [vmem:[#allocation2 + $0xe] sm:$0x1]
    %1564 = vrot.lane.b32.xlu0 %v1562, 80
    %v1565 = vpop.permute.xlu0 %1564
    %1567 = vst.msk [vmem:[#allocation3 + $0x3b] sm:$0x1] %vm466, %v1565
    %v1568 = vld [vmem:[#allocation2 + $0xf] sm:$0x1]
    %1569 = vst.msk [vmem:[#allocation3 + $0x3c] sm:$0x1] %vm466, %v1568
    %v1570 = vld [vmem:[#allocation2 + $0xf] sm:$0x1]
    %1572 = vrot.lane.b32.xlu0 %v1570, 112
    %v1573 = vpop.permute.xlu0 %1572
    %1575 = vst.msk [vmem:[#allocation3 + $0x3d] sm:$0x1] %vm466, %v1573
    %v1576 = vld [vmem:[#allocation2 + $0xf] sm:$0x1]
    %1578 = vrot.lane.b32.xlu0 %v1576, 96
    %v1579 = vpop.permute.xlu0 %1578
    %1581 = vst.msk [vmem:[#allocation3 + $0x3e] sm:$0x1] %vm466, %v1579
    %v1582 = vld [vmem:[#allocation2 + $0xf] sm:$0x1]
    %1584 = vrot.lane.b32.xlu0 %v1582, 80
    %v1585 = vpop.permute.xlu0 %1584
    %1587 = vst.msk [vmem:[#allocation3 + $0x3f] sm:$0x1] %vm466, %v1585
    %v1588 = vld [vmem:[#allocation3] sm:$0xff]
    %v1589 = vld [vmem:[#allocation3 + $0x8] sm:$0xff]
    %v1590 = vld [vmem:[#allocation3 + $0x10] sm:$0xff]
    %v1591 = vld [vmem:[#allocation3 + $0x18] sm:$0xff]
    %v1592 = vld [vmem:[#allocation3 + $0x20] sm:$0xff]
    %v1593 = vld [vmem:[#allocation3 + $0x28] sm:$0xff]
    %v1594 = vld [vmem:[#allocation3 + $0x30] sm:$0xff]
    %v1595 = vld [vmem:[#allocation3 + $0x38] sm:$0xff]
    %v1596 = vld [vmem:[#allocation3 + $0x40] sm:$0xff]
    %v1597 = vld [vmem:[#allocation3 + $0x48] sm:$0xff]
    %v1598 = vld [vmem:[#allocation3 + $0x50] sm:$0xff]
    %v1599 = vld [vmem:[#allocation3 + $0x58] sm:$0xff]
    %v1600 = vld [vmem:[#allocation3 + $0x60] sm:$0xff]
    %v1601 = vld [vmem:[#allocation3 + $0x68] sm:$0xff]
    %v1602 = vld [vmem:[#allocation3 + $0x70] sm:$0xff]
    %v1603 = vld [vmem:[#allocation3 + $0x78] sm:$0xff]
    %1604 = vxpose.xlu0.b32.start [1/16] %v1588, 128
    %1605 = vxpose.xlu0.b32.cont [2/16] %v1589, 128
    %1606 = vxpose.xlu0.b32.cont [3/16] %v1590, 128
    %1607 = vxpose.xlu0.b32.cont [4/16] %v1591, 128
    %1608 = vxpose.xlu0.b32.cont [5/16] %v1592, 128
    %1609 = vxpose.xlu0.b32.cont [6/16] %v1593, 128
    %1610 = vxpose.xlu0.b32.cont [7/16] %v1594, 128
    %1611 = vxpose.xlu0.b32.cont [8/16] %v1595, 128
    %1612 = vxpose.xlu0.b32.cont [9/16] %v1596, 128
    %1613 = vxpose.xlu0.b32.cont [10/16] %v1597, 128
    %1614 = vxpose.xlu0.b32.cont [11/16] %v1598, 128
    %1615 = vxpose.xlu0.b32.cont [12/16] %v1599, 128
    %1616 = vxpose.xlu0.b32.cont [13/16] %v1600, 128
    %1617 = vxpose.xlu0.b32.cont [14/16] %v1601, 128
    %1618 = vxpose.xlu0.b32.cont [15/16] %v1602, 128
    %1619 = vxpose.xlu0.b32.end [16/16] %v1603, 128
    %v1620 = vpop.trf.xlu0
    %v1621 = vpop.trf.xlu0
    %v1622 = vpop.trf.xlu0
    %v1623 = vpop.trf.xlu0
    %v1624 = vpop.trf.xlu0
    %v1625 = vpop.trf.xlu0
    %v1626 = vpop.trf.xlu0
    %v1627 = vpop.trf.xlu0
    %v1628 = vpop.trf.xlu0
    %v1629 = vpop.trf.xlu0
    %v1630 = vpop.trf.xlu0
    %v1631 = vpop.trf.xlu0
    %v1632 = vpop.trf.xlu0
    %v1633 = vpop.trf.xlu0
    %v1634 = vpop.trf.xlu0
    %v1635 = vpop.trf.xlu0
    %s1636 = scalar_lea.vmem [#allocation4], 16
    %1637 = vst [vmem:[%s1636] sm:$0xff] %v1620
    %1638 = vst [vmem:[%s1636 + $0x8] sm:$0xff] %v1621
    // Predicated region
    $region6: #{tpu_custom_call.1} parent=1 // pred_check
      _
    $region7: #{tpu_custom_call.1} parent=1 // pred_check_branch
      %1640 = sbr.rel (0) target = $region9
    $region8: #{tpu_custom_call.1} parent=1 // pred_region
      %s1642 = ssub.s32 512, 512
      %1643 = vsyncadd [#allocation5], %s1642
      %s1644 = sshll.u32 [#allocation4], 4
      %s1645 = int_to_ptr.vmem [resolvable:$true] %s1644
      %1650 = dma.vmem_to_hbm [thread:$0]  %s1645, 512, %s1, [#allocation5], 128, 128, 8
    $region9: #{tpu_custom_call.1} parent=1 // pred_fallthru
      _
    // Predicated region
    $region10: #{tpu_custom_call.1} parent=1 // pred_check
      _
    $region11: #{tpu_custom_call.1} parent=1 // pred_check_branch
      %1652 = sbr.rel (0) target = $region13
    $region12: #{tpu_custom_call.1} parent=1 // pred_region
      %1653 = dma.done [#allocation5], 512
    $region13: #{tpu_custom_call.1} parent=1 // pred_fallthru
      _
    %1654 = vsyncpa [#allocation5], 1

</llo_original>
